<compile_context>
chip_gen: v7x
topology: tpu7x:2x2x1
jax: 0.10.0
libtpu: 0.0.40
codegen_flags: <defaults>
</compile_context>

<pallas_src>
import functools

import jax
import jax.numpy as jnp
from jax import lax
from jax.experimental import pallas as pl
from jax.experimental.pallas import tpu as pltpu


_VMEM = pl.BlockSpec(memory_space=pltpu.MemorySpace.VMEM)


def _r8(x):
    return ((x + 7) // 8) * 8


def _sel_col0(c):
    # template slab: weight cols [0:9C), bias col 9C, scale col 9C+1, selection
    # matrices start at the next 8-aligned column.
    return _r8(9 * c + 2)


def _taps(k):
    return [(i, j) for i in range(k) for j in range(k)]


# ----------------------------- Pallas kernels --------------------------------

def _make_search_kernel(B, C, nact, nout, W, HW, ps):
    """Fused search branch (per call: merged x_cls|x_bbox 3x3 conv -> cls corr +
    refine-folded bbox corr), channel-major lane-dense layout.

      x_ref : (B, C, H*W)      f32  (bitcast-reshaped NCHW input)
      p_ref : (R, 128)         f32  packed parameter slab
      o_ref : (B, nout, H*W)   f32  lane-dense output (cls rows 0:2na, bbox after)
    """
    offs1 = tuple(i * W + j for (i, j) in _taps(3))
    offs2 = tuple(i * W + j for (i, j) in _taps(ps))
    b1_col = 9 * C
    tpb = 128 // nact                                  # stage-2 taps per row block
    nblk = (ps * ps + tpb - 1) // tpb
    b2_row = nact + nblk * nout

    def kernel(x_ref, p_ref, o_ref):
        b1 = p_ref[0:nact, b1_col:b1_col + 1]          # (nact, 1) stage-1 bias
        b2 = p_ref[b2_row:b2_row + nout, 0:1]          # (nout, 1) cls_bias | b_refine
        for b in range(B):
            x_img = x_ref[b]                           # (C, HW)
            # --- stage 1: merged 3x3 conv as 9 accumulating MXU matmuls ---------
            act = None
            for s, off in enumerate(offs1):
                xs = x_img if off == 0 else pltpu.roll(x_img, shift=HW - off, axis=1)
                c = jnp.dot(p_ref[0:nact, C * s:C * (s + 1)], xs,
                            preferred_element_type=jnp.float32)
                act = c if act is None else act + c
            act = act + b1                             # (nact, HW) cls|bbox acts
            # --- stage 2: cls corr + (bbox corr . folded 1x1 refine) ------------
            out = None
            for s, off in enumerate(offs2):
                a_s = act if off == 0 else pltpu.roll(act, shift=HW - off, axis=1)
                r0 = nact + (s // tpb) * nout
                c0 = (s % tpb) * nact
                c = jnp.dot(p_ref[r0:r0 + nout, c0:c0 + nact], a_s,
                            preferred_element_type=jnp.float32)
                out = c if out is None else out + c
            o_ref[b] = out + b2

    return kernel


def _make_template_kernel(C, Hz, Wz, n_oc, ps):
    """Merged (z_cls | z_bbox) 3x3 template conv with bias + per-channel scale
    fused, evaluated only at the ps*ps valid positions via MXU selection matmuls.

      z_ref : (1, C, Hz*Wz) f32
      p_ref : (n_oc, sel_col0 + 9*ps*ps) f32 packed slab
      o_ref : (n_oc, ps*ps) f32, o_ref[oc, kh*ps+kw] = scaled template conv output
    """
    HWz = Hz * Wz
    npos = ps * ps
    bias_col = 9 * C
    scale_col = bias_col + 1
    sel0 = _sel_col0(C)

    def kernel(z_ref, p_ref, o_ref):
        z_img = z_ref[0]                               # (C, Hz*Wz)
        acc = None
        for t in range(9):
            sel = p_ref[0:HWz, sel0 + npos * t: sel0 + npos * (t + 1)]   # (HWz, npos)
            zt = jnp.dot(z_img, sel, preferred_element_type=jnp.float32)  # (C, npos)
            c = jnp.dot(p_ref[0:n_oc, C * t:C * (t + 1)], zt,
                        preferred_element_type=jnp.float32)               # (n_oc, npos)
            acc = c if acc is None else acc + c
        o_ref[...] = ((acc + p_ref[0:n_oc, bias_col:bias_col + 1])
                      * p_ref[0:n_oc, scale_col:scale_col + 1])

    return kernel


# ----------------------------- jitted passes ----------------------------------

@functools.partial(jax.jit, static_argnames=("nc", "na", "ps"))
def _template_update(z_nchw, pz, refine2d, static_slab, *, nc, na, ps):
    """ONE program for the whole template update: Pallas conv kernel + refine fold
    + repack of the stage-2 rows of the search parameter slab."""
    Bz, C, Hz, Wz = z_nchw.shape
    n_oc = nc * na * 6
    nact, nout = 2 * nc, 6 * na
    tpb = 128 // nact
    nblk = (ps * ps) // tpb

    z2 = z_nchw.reshape(Bz, C, Hz * Wz).astype(jnp.float32)   # free bitcast
    cv = pl.pallas_call(
        _make_template_kernel(C, Hz, Wz, n_oc, ps),
        out_shape=jax.ShapeDtypeStruct((n_oc, ps * ps), jnp.float32),
        in_specs=[_VMEM, _VMEM],
        out_specs=_VMEM,
    )(z2, pz)                                                  # cv[oc, kh*ps+kw]

    ncls = nc * na * 2
    z_cls_w = cv[:ncls].reshape(na * 2, nc, ps, ps)            # scaled, mirrors buffer
    z_bbox_w = cv[ncls:].reshape(na * 4, nc, ps, ps)

    # fold the 1x1 bbox refine and repack to the search slab's per-tap layout:
    # slab row block j holds taps j*tpb..; within a block: row = out channel,
    # col = (s % tpb)*nact + act_channel.
    cls_osa = jnp.transpose(cv[:ncls].reshape(na * 2, nc, ps * ps), (0, 2, 1))
    bbox_mas = cv[ncls:].reshape(na * 4, nc, ps * ps)
    bbox_osa = jnp.transpose(jnp.einsum("om,mas->oas", refine2d, bbox_mas), (0, 2, 1))

    dyn = jnp.zeros((nblk, nout, tpb, nact), jnp.float32)
    dyn = dyn.at[:, :na * 2, :, :nc].set(
        jnp.transpose(cls_osa.reshape(na * 2, nblk, tpb, nc), (1, 0, 2, 3)))
    dyn = dyn.at[:, na * 2:, :, nc:].set(
        jnp.transpose(bbox_osa.reshape(na * 4, nblk, tpb, nc), (1, 0, 2, 3)))
    slab = static_slab.at[nact:nact + nblk * nout, :].set(
        dyn.reshape(nblk * nout, tpb * nact))
    return slab, z_cls_w, z_bbox_w


@functools.partial(jax.jit, static_argnames=("nc", "na", "ps"))
def _search_pass(x_nchw, slab, *, nc, na, ps):
    B, C, H, W = x_nchw.shape
    nact, nout = 2 * nc, 6 * na
    Ho = H - 2 - ps + 1
    Wo = W - 2 - ps + 1

    x2 = x_nchw.reshape(B, C, H * W).astype(jnp.float32)       # free bitcast
    out = pl.pallas_call(
        _make_search_kernel(B, C, nact, nout, W, H * W, ps),
        out_shape=jax.ShapeDtypeStruct((B, nout, H * W), jnp.float32),
        in_specs=[_VMEM, _VMEM],
        out_specs=_VMEM,
    )(x2, slab)

    grid = out.reshape(B, nout, H, W)                          # free bitcast
    rpn_cls_logit = grid[:, :na * 2, :Ho, :Wo]
    rpn_bbox_delta = grid[:, na * 2:, :Ho, :Wo]
    return rpn_cls_logit, rpn_bbox_delta


# ----------------------------- module -----------------------------------------

class CMStageHeadPallas:
    """JAX/Pallas re-implementation of CM_Stage_Head.forward()."""

    def __init__(self, key, conv_channels=8, num_channels=8, num_anchors=4,
                 cls_scale_factor=0.1, bbox_scale_factor=0.01, param_size=4):
        self.conv_channels = conv_channels
        self.num_channels = num_channels
        self.num_anchors = num_anchors
        self.cls_scale_factor = cls_scale_factor
        self.bbox_scale_factor = bbox_scale_factor
        self.param_size = param_size

        nc, na, ci, ps = num_channels, num_anchors, conv_channels, param_size
        nact, nout = 2 * nc, 6 * na
        assert 128 % nact == 0 and nact % 8 == 0 and nout % 8 == 0
        tpb = 128 // nact
        assert (ps * ps) % tpb == 0
        nblk = (ps * ps) // tpb
        assert nc * na * 6 >= (ps + 2) * (ps + 2)   # template slab holds sel matrices

        ks = jax.random.split(key, 10)

        def w_init(k, shape, s=0.05):
            return jax.random.normal(k, shape, jnp.float32) * s

        # nn.Conv2d parameters (deterministic synthetic init)
        self.w_z_cls = w_init(ks[0], (nc * na * 2, ci, 3, 3))
        self.b_z_cls = w_init(ks[1], (nc * na * 2,), 0.01)
        self.w_z_bbox = w_init(ks[2], (nc * na * 4, ci, 3, 3))
        self.b_z_bbox = w_init(ks[3], (nc * na * 4,), 0.01)
        self.w_x_cls = w_init(ks[4], (nc, ci, 3, 3))
        self.b_x_cls = w_init(ks[5], (nc,), 0.01)
        self.w_x_bbox = w_init(ks[6], (nc, ci, 3, 3))
        self.b_x_bbox = w_init(ks[7], (nc,), 0.01)
        self.w_refine = w_init(ks[8], (na * 4, na * 4, 1, 1))
        self.b_refine = w_init(ks[9], (na * 4,), 0.01)

        # frozen buffers (mirror the PyTorch module)
        self.cls_bias = jnp.zeros((1, na * 2, 1, 1), jnp.float32)
        self.z_cls_weights = jnp.zeros((na * 2, nc, ps, ps), jnp.float32)
        self.z_bbox_weights = jnp.zeros((na * 4, nc, ps, ps), jnp.float32)
        self._refine2d = self.w_refine[:, :, 0, 0]

        taps3 = _taps(3)

        # ---- static rows of the search parameter slab (built once) ------------
        #  rows 0:nact          cols [C*t:C*(t+1)] = merged x_cls|x_bbox tap t,
        #                       col 9*C            = stage-1 bias
        #  rows nact:nact+2*nout  stage-2 weights (filled by the template update)
        #  rows nact+2*nout:..    col 0            = cls_bias | b_refine
        slab = jnp.zeros((nact + (nblk + 1) * nout, 128), jnp.float32)
        w1 = jnp.concatenate([self.w_x_cls, self.w_x_bbox], axis=0)
        for t, (i, j) in enumerate(taps3):
            slab = slab.at[0:nact, ci * t:ci * (t + 1)].set(w1[:, :, i, j])
        slab = slab.at[0:nact, 9 * ci].set(
            jnp.concatenate([self.b_x_cls, self.b_x_bbox]))
        b2row = nact + nblk * nout
        slab = slab.at[b2row:b2row + na * 2, 0].set(self.cls_bias.reshape(-1))
        slab = slab.at[b2row + na * 2:b2row + nout, 0].set(self.b_refine)
        self._static_slab = slab
        # template weights start at zero (same as the PyTorch buffers)
        self._search_slab = slab

        # ---- template parameter slab -------------------------------------------
        n_oc = nc * na * 6
        Hz = Wz = ps + 2
        sel0 = _sel_col0(ci)
        pz = jnp.zeros((n_oc, sel0 + 9 * ps * ps), jnp.float32)
        wz = jnp.concatenate([self.w_z_cls, self.w_z_bbox], axis=0)
        for t, (i, j) in enumerate(taps3):
            pz = pz.at[:, ci * t:ci * (t + 1)].set(wz[:, :, i, j])
        pz = pz.at[:, 9 * ci].set(jnp.concatenate([self.b_z_cls, self.b_z_bbox]))
        pz = pz.at[:, 9 * ci + 1].set(jnp.concatenate(
            [jnp.full((nc * na * 2,), cls_scale_factor, jnp.float32),
             jnp.full((nc * na * 4,), bbox_scale_factor, jnp.float32)]))
        # 0/1 selection matrices: T_t[(h+i)*Wz + (w+j), h*ps+w] = 1 -> the tap-shift
        # plus valid-position gather both run on the MXU (no rolls in that kernel).
        pos = jnp.arange(ps * ps)
        ph, pw = pos // ps, pos % ps
        for t, (i, j) in enumerate(taps3):
            rows = (ph + i) * Wz + (pw + j)
            pz = pz.at[rows, sel0 + ps * ps * t + pos].set(1.0)
        self._pz = pz

    def forward(self, z_embedding=None, x_embedding=None):
        nc, na, ps = self.num_channels, self.num_anchors, self.param_size
        if z_embedding is not None:
            assert z_embedding.shape[0] == 1, "Support batch=1 only. (for inference)."
            assert z_embedding.shape[2] == ps + 2 and z_embedding.shape[3] == ps + 2
            slab, zc, zb = _template_update(
                z_embedding, self._pz, self._refine2d, self._static_slab,
                nc=nc, na=na, ps=ps)
            # NOTE: stateful buffer update mirrors the PyTorch module; when jitting a
            # whole tracker, thread `_search_slab` functionally instead of via self.
            self.z_cls_weights, self.z_bbox_weights = zc, zb
            self._search_slab = slab
            return None, None
        return _search_pass(x_embedding, self._search_slab, nc=nc, na=na, ps=ps)


# ----------------------------- pure-JAX reference -----------------------------

def _conv_ref(x, w, b=None):
    out = lax.conv_general_dilated(x, w, window_strides=(1, 1), padding="VALID",
                                   dimension_numbers=("NCHW", "OIHW", "NCHW"))
    if b is not None:
        out = out + b.reshape(1, -1, 1, 1)
    return out


def reference_forward(head, z, x):
    na, nc, ps = head.num_anchors, head.num_channels, head.param_size
    z_cls = _conv_ref(z, head.w_z_cls, head.b_z_cls) * head.cls_scale_factor
    z_bbox = _conv_ref(z, head.w_z_bbox, head.b_z_bbox) * head.bbox_scale_factor
    z_cls_w = z_cls.reshape(na * 2, nc, ps, ps)
    z_bbox_w = z_bbox.reshape(na * 4, nc, ps, ps)
    x_cls = _conv_ref(x, head.w_x_cls, head.b_x_cls)
    x_bbox = _conv_ref(x, head.w_x_bbox, head.b_x_bbox)
    cls_logit = _conv_ref(x_cls, z_cls_w) + head.cls_bias
    bbox_delta = _conv_ref(x_bbox, z_bbox_w)
    bbox_delta = _conv_ref(bbox_delta, head.w_refine, head.b_refine)
    return cls_logit, bbox_delta


# ----------------------------- main --------------------------------------------

if __name__ == "__main__":
    key = jax.random.PRNGKey(0)
    k_params, k_z, k_x = jax.random.split(key, 3)

    head = CMStageHeadPallas(k_params)

    # z_embedding: (1, C_in, 6, 6)  (z_res = param_size + 2)
    z_embedding = jax.random.normal(k_z, (1, head.conv_channels, 6, 6), jnp.float32)
    # x_embedding: (B, C_in, 16, 16)
    x_embedding = jax.random.normal(k_x, (2, head.conv_channels, 16, 16), jnp.float32)

    # template pass (builds correlation weights + search slab), then search pass
    out_none = head.forward(z_embedding=z_embedding)
    assert out_none == (None, None)
    rpn_cls_logit, rpn_bbox_delta = head.forward(x_embedding=x_embedding)
    jax.block_until_ready((rpn_cls_logit, rpn_bbox_delta))

    assert rpn_cls_logit.shape == (2, head.num_anchors * 2, 11, 11)
    assert rpn_bbox_delta.shape == (2, head.num_anchors * 4, 11, 11)

    # correctness vs pure-JAX reference
    ref_cls, ref_bbox = reference_forward(head, z_embedding, x_embedding)
    assert jnp.allclose(rpn_cls_logit, ref_cls, atol=1e-3, rtol=1e-3), \
        float(jnp.max(jnp.abs(rpn_cls_logit - ref_cls)))
    assert jnp.allclose(rpn_bbox_delta, ref_bbox, atol=1e-3, rtol=1e-3), \
        float(jnp.max(jnp.abs(rpn_bbox_delta - ref_bbox)))

    print("KERNEL_OK")
</pallas_src>

<mosaic_0001>
module attributes {stable_mosaic.version = 11 : i64} {
  func.func @kernel(%arg0: memref<1x8x36xf32, #tpu.memory_space<vmem>>, %arg1: memref<192x224xf32, #tpu.memory_space<vmem>>, %arg2: memref<192x16xf32, #tpu.memory_space<vmem>>) attributes {dimension_semantics = [], scalar_prefetch = 0 : i64, scratch_operands = 0 : i64, tpu.core_type = #tpu.core_type<tc>} {
    %c0 = arith.constant 0 : index
    %c0_0 = arith.constant 0 : index
    %c0_1 = arith.constant 0 : index
    %0 = vector.load %arg0[%c0, %c0_0, %c0_1] : memref<1x8x36xf32, #tpu.memory_space<vmem>>, vector<1x8x36xf32>
    %1 = vector.shape_cast %0 : vector<1x8x36xf32> to vector<8x36xf32>
    %c0_2 = arith.constant 0 : index
    %c80 = arith.constant 80 : index
    %2 = vector.load %arg1[%c0_2, %c80] : memref<192x224xf32, #tpu.memory_space<vmem>>, vector<36x16xf32>
    %cst = arith.constant dense<0.000000e+00> : vector<8x16xf32>
    %3 = tpu.matmul %1, %2, %cst {dimension_numbers = #tpu.dot_dimension_numbers<[1], [0], [0], [1], [0, 0, 1, 1], [], []>} : vector<8x36xf32>, vector<36x16xf32>, vector<8x16xf32> -> vector<8x16xf32>
    %c0_3 = arith.constant 0 : index
    %c0_4 = arith.constant 0 : index
    %4 = vector.load %arg1[%c0_3, %c0_4] : memref<192x224xf32, #tpu.memory_space<vmem>>, vector<192x8xf32>
    %cst_5 = arith.constant dense<0.000000e+00> : vector<192x16xf32>
    %5 = tpu.matmul %4, %3, %cst_5 {dimension_numbers = #tpu.dot_dimension_numbers<[1], [0], [0], [1], [0, 0, 1, 1], [], []>} : vector<192x8xf32>, vector<8x16xf32>, vector<192x16xf32> -> vector<192x16xf32>
    %c0_6 = arith.constant 0 : index
    %c96 = arith.constant 96 : index
    %6 = vector.load %arg1[%c0_6, %c96] : memref<192x224xf32, #tpu.memory_space<vmem>>, vector<36x16xf32>
    %cst_7 = arith.constant dense<0.000000e+00> : vector<8x16xf32>
    %7 = tpu.matmul %1, %6, %cst_7 {dimension_numbers = #tpu.dot_dimension_numbers<[1], [0], [0], [1], [0, 0, 1, 1], [], []>} : vector<8x36xf32>, vector<36x16xf32>, vector<8x16xf32> -> vector<8x16xf32>
    %c0_8 = arith.constant 0 : index
    %c8 = arith.constant 8 : index
    %8 = vector.load %arg1[%c0_8, %c8] : memref<192x224xf32, #tpu.memory_space<vmem>>, vector<192x8xf32>
    %cst_9 = arith.constant dense<0.000000e+00> : vector<192x16xf32>
    %9 = tpu.matmul %8, %7, %cst_9 {dimension_numbers = #tpu.dot_dimension_numbers<[1], [0], [0], [1], [0, 0, 1, 1], [], []>} : vector<192x8xf32>, vector<8x16xf32>, vector<192x16xf32> -> vector<192x16xf32>
    %10 = arith.addf %5, %9 : vector<192x16xf32>
    %c0_10 = arith.constant 0 : index
    %c112 = arith.constant 112 : index
    %11 = vector.load %arg1[%c0_10, %c112] : memref<192x224xf32, #tpu.memory_space<vmem>>, vector<36x16xf32>
    %cst_11 = arith.constant dense<0.000000e+00> : vector<8x16xf32>
    %12 = tpu.matmul %1, %11, %cst_11 {dimension_numbers = #tpu.dot_dimension_numbers<[1], [0], [0], [1], [0, 0, 1, 1], [], []>} : vector<8x36xf32>, vector<36x16xf32>, vector<8x16xf32> -> vector<8x16xf32>
    %c0_12 = arith.constant 0 : index
    %c16 = arith.constant 16 : index
    %13 = vector.load %arg1[%c0_12, %c16] : memref<192x224xf32, #tpu.memory_space<vmem>>, vector<192x8xf32>
    %cst_13 = arith.constant dense<0.000000e+00> : vector<192x16xf32>
    %14 = tpu.matmul %13, %12, %cst_13 {dimension_numbers = #tpu.dot_dimension_numbers<[1], [0], [0], [1], [0, 0, 1, 1], [], []>} : vector<192x8xf32>, vector<8x16xf32>, vector<192x16xf32> -> vector<192x16xf32>
    %15 = arith.addf %10, %14 : vector<192x16xf32>
    %c0_14 = arith.constant 0 : index
    %c128 = arith.constant 128 : index
    %16 = vector.load %arg1[%c0_14, %c128] : memref<192x224xf32, #tpu.memory_space<vmem>>, vector<36x16xf32>
    %cst_15 = arith.constant dense<0.000000e+00> : vector<8x16xf32>
    %17 = tpu.matmul %1, %16, %cst_15 {dimension_numbers = #tpu.dot_dimension_numbers<[1], [0], [0], [1], [0, 0, 1, 1], [], []>} : vector<8x36xf32>, vector<36x16xf32>, vector<8x16xf32> -> vector<8x16xf32>
    %c0_16 = arith.constant 0 : index
    %c24 = arith.constant 24 : index
    %18 = vector.load %arg1[%c0_16, %c24] : memref<192x224xf32, #tpu.memory_space<vmem>>, vector<192x8xf32>
    %cst_17 = arith.constant dense<0.000000e+00> : vector<192x16xf32>
    %19 = tpu.matmul %18, %17, %cst_17 {dimension_numbers = #tpu.dot_dimension_numbers<[1], [0], [0], [1], [0, 0, 1, 1], [], []>} : vector<192x8xf32>, vector<8x16xf32>, vector<192x16xf32> -> vector<192x16xf32>
    %20 = arith.addf %15, %19 : vector<192x16xf32>
    %c0_18 = arith.constant 0 : index
    %c144 = arith.constant 144 : index
    %21 = vector.load %arg1[%c0_18, %c144] : memref<192x224xf32, #tpu.memory_space<vmem>>, vector<36x16xf32>
    %cst_19 = arith.constant dense<0.000000e+00> : vector<8x16xf32>
    %22 = tpu.matmul %1, %21, %cst_19 {dimension_numbers = #tpu.dot_dimension_numbers<[1], [0], [0], [1], [0, 0, 1, 1], [], []>} : vector<8x36xf32>, vector<36x16xf32>, vector<8x16xf32> -> vector<8x16xf32>
    %c0_20 = arith.constant 0 : index
    %c32 = arith.constant 32 : index
    %23 = vector.load %arg1[%c0_20, %c32] : memref<192x224xf32, #tpu.memory_space<vmem>>, vector<192x8xf32>
    %cst_21 = arith.constant dense<0.000000e+00> : vector<192x16xf32>
    %24 = tpu.matmul %23, %22, %cst_21 {dimension_numbers = #tpu.dot_dimension_numbers<[1], [0], [0], [1], [0, 0, 1, 1], [], []>} : vector<192x8xf32>, vector<8x16xf32>, vector<192x16xf32> -> vector<192x16xf32>
    %25 = arith.addf %20, %24 : vector<192x16xf32>
    %c0_22 = arith.constant 0 : index
    %c160 = arith.constant 160 : index
    %26 = vector.load %arg1[%c0_22, %c160] : memref<192x224xf32, #tpu.memory_space<vmem>>, vector<36x16xf32>
    %cst_23 = arith.constant dense<0.000000e+00> : vector<8x16xf32>
    %27 = tpu.matmul %1, %26, %cst_23 {dimension_numbers = #tpu.dot_dimension_numbers<[1], [0], [0], [1], [0, 0, 1, 1], [], []>} : vector<8x36xf32>, vector<36x16xf32>, vector<8x16xf32> -> vector<8x16xf32>
    %c0_24 = arith.constant 0 : index
    %c40 = arith.constant 40 : index
    %28 = vector.load %arg1[%c0_24, %c40] : memref<192x224xf32, #tpu.memory_space<vmem>>, vector<192x8xf32>
    %cst_25 = arith.constant dense<0.000000e+00> : vector<192x16xf32>
    %29 = tpu.matmul %28, %27, %cst_25 {dimension_numbers = #tpu.dot_dimension_numbers<[1], [0], [0], [1], [0, 0, 1, 1], [], []>} : vector<192x8xf32>, vector<8x16xf32>, vector<192x16xf32> -> vector<192x16xf32>
    %30 = arith.addf %25, %29 : vector<192x16xf32>
    %c0_26 = arith.constant 0 : index
    %c176 = arith.constant 176 : index
    %31 = vector.load %arg1[%c0_26, %c176] : memref<192x224xf32, #tpu.memory_space<vmem>>, vector<36x16xf32>
    %cst_27 = arith.constant dense<0.000000e+00> : vector<8x16xf32>
    %32 = tpu.matmul %1, %31, %cst_27 {dimension_numbers = #tpu.dot_dimension_numbers<[1], [0], [0], [1], [0, 0, 1, 1], [], []>} : vector<8x36xf32>, vector<36x16xf32>, vector<8x16xf32> -> vector<8x16xf32>
    %c0_28 = arith.constant 0 : index
    %c48 = arith.constant 48 : index
    %33 = vector.load %arg1[%c0_28, %c48] : memref<192x224xf32, #tpu.memory_space<vmem>>, vector<192x8xf32>
    %cst_29 = arith.constant dense<0.000000e+00> : vector<192x16xf32>
    %34 = tpu.matmul %33, %32, %cst_29 {dimension_numbers = #tpu.dot_dimension_numbers<[1], [0], [0], [1], [0, 0, 1, 1], [], []>} : vector<192x8xf32>, vector<8x16xf32>, vector<192x16xf32> -> vector<192x16xf32>
    %35 = arith.addf %30, %34 : vector<192x16xf32>
    %c0_30 = arith.constant 0 : index
    %c192 = arith.constant 192 : index
    %36 = vector.load %arg1[%c0_30, %c192] : memref<192x224xf32, #tpu.memory_space<vmem>>, vector<36x16xf32>
    %cst_31 = arith.constant dense<0.000000e+00> : vector<8x16xf32>
    %37 = tpu.matmul %1, %36, %cst_31 {dimension_numbers = #tpu.dot_dimension_numbers<[1], [0], [0], [1], [0, 0, 1, 1], [], []>} : vector<8x36xf32>, vector<36x16xf32>, vector<8x16xf32> -> vector<8x16xf32>
    %c0_32 = arith.constant 0 : index
    %c56 = arith.constant 56 : index
    %38 = vector.load %arg1[%c0_32, %c56] : memref<192x224xf32, #tpu.memory_space<vmem>>, vector<192x8xf32>
    %cst_33 = arith.constant dense<0.000000e+00> : vector<192x16xf32>
    %39 = tpu.matmul %38, %37, %cst_33 {dimension_numbers = #tpu.dot_dimension_numbers<[1], [0], [0], [1], [0, 0, 1, 1], [], []>} : vector<192x8xf32>, vector<8x16xf32>, vector<192x16xf32> -> vector<192x16xf32>
    %40 = arith.addf %35, %39 : vector<192x16xf32>
    %c0_34 = arith.constant 0 : index
    %c208 = arith.constant 208 : index
    %41 = vector.load %arg1[%c0_34, %c208] : memref<192x224xf32, #tpu.memory_space<vmem>>, vector<36x16xf32>
    %cst_35 = arith.constant dense<0.000000e+00> : vector<8x16xf32>
    %42 = tpu.matmul %1, %41, %cst_35 {dimension_numbers = #tpu.dot_dimension_numbers<[1], [0], [0], [1], [0, 0, 1, 1], [], []>} : vector<8x36xf32>, vector<36x16xf32>, vector<8x16xf32> -> vector<8x16xf32>
    %c0_36 = arith.constant 0 : index
    %c64 = arith.constant 64 : index
    %43 = vector.load %arg1[%c0_36, %c64] : memref<192x224xf32, #tpu.memory_space<vmem>>, vector<192x8xf32>
    %cst_37 = arith.constant dense<0.000000e+00> : vector<192x16xf32>
    %44 = tpu.matmul %43, %42, %cst_37 {dimension_numbers = #tpu.dot_dimension_numbers<[1], [0], [0], [1], [0, 0, 1, 1], [], []>} : vector<192x8xf32>, vector<8x16xf32>, vector<192x16xf32> -> vector<192x16xf32>
    %45 = arith.addf %40, %44 : vector<192x16xf32>
    %c0_38 = arith.constant 0 : index
    %c72 = arith.constant 72 : index
    %46 = vector.load %arg1[%c0_38, %c72] : memref<192x224xf32, #tpu.memory_space<vmem>>, vector<192x1xf32>
    %47 = vector.broadcast %46 : vector<192x1xf32> to vector<192x16xf32>
    %48 = arith.addf %45, %47 : vector<192x16xf32>
    %c0_39 = arith.constant 0 : index
    %c73 = arith.constant 73 : index
    %49 = vector.load %arg1[%c0_39, %c73] : memref<192x224xf32, #tpu.memory_space<vmem>>, vector<192x1xf32>
    %50 = vector.broadcast %49 : vector<192x1xf32> to vector<192x16xf32>
    %51 = arith.mulf %48, %50 : vector<192x16xf32>
    %c0_40 = arith.constant 0 : index
    %c0_41 = arith.constant 0 : index
    %52 = vector.load %arg2[%c0_40, %c0_41] : memref<192x16xf32, #tpu.memory_space<vmem>>, vector<192x16xf32>
    tpu.vector_store %arg2[%c0_40, %c0_41], %51 {strides = array<i32>} : memref<192x16xf32, #tpu.memory_space<vmem>>, vector<192x16xf32>,
    return
  }
}

</mosaic_0001>

<llo_original>
// kernel: _template_update.1
$region0: #{_template_update.1}
  #allocation0 [shape = 'u32[]', space=smem, size = 0x4, offset = 0x4, fixed_abs, tag = 'smem constant byte address 0x4 - core index']
  #allocation1 [shape = 'u32[144,128]{1,0:T(1,128)}', space=vmem, size = 0x12000, scoped, tag = 'internal scratch']
  %s0 = inlined_call_operand.vmem [shape: f32[1,8,36], index: 0, kind: input, shape index: {}]
  %s1 = inlined_call_operand.vmem [shape: f32[192,224], index: 1, kind: input, shape index: {}]
  %s2 = inlined_call_operand.vmem [shape: f32[192,16], index: 2, kind: output, shape index: {}]
  %s3 = sld [smem:[#allocation0]]
  $region18: #{_template_update.1} parent=0
    _
  %s5 = ssub.s32 1, %s3
  %s6 = scalar_select 0, %s5, %s3
  // Predicated region
  $region2: #{_template_update.1} parent=0 // pred_check
    _
  $region3: #{_template_update.1} parent=0 // pred_check_branch
    %8 = sbr.rel (0) target = $region5
  $region4: #{_template_update.1} parent=0 // pred_region
    _
  $region5: #{_template_update.1} parent=0 // pred_fallthru
    _
  // Predicated region
  $region6: #{_template_update.1} parent=0 // pred_check
    _
  $region7: #{_template_update.1} parent=0 // pred_check_branch
    %10 = sbr.rel (0) target = $region9
  $region8: #{_template_update.1} parent=0 // pred_region
    _
  $region9: #{_template_update.1} parent=0 // pred_fallthru
    _
  %v11 = vld [vmem:[%s0] sm:$0xff]
  %v12 = vld [vmem:[%s1] sm:$0xff]
  %v13 = vld [vmem:[%s1 + $0x10] sm:$0xff]
  %v14 = vld [vmem:[%s1 + $0x20] sm:$0xff]
  %v15 = vld [vmem:[%s1 + $0x30] sm:$0xff]
  %v16 = vld [vmem:[%s1 + $0x40] sm:$0xf]
  %22 = vrot.lane.b32.xlu0 %v12, 48
  %v23 = vpop.permute.xlu0 %22
  %24 = vrot.lane.b32.xlu0 %v13, 48
  %v25 = vpop.permute.xlu0 %24
  %26 = vrot.lane.b32.xlu0 %v14, 48
  %v27 = vpop.permute.xlu0 %26
  %28 = vrot.lane.b32.xlu0 %v15, 48
  %v29 = vpop.permute.xlu0 %28
  %30 = vrot.lane.b32.xlu0 %v16, 48
  %v31 = vpop.permute.xlu0 %30
  %vm36 = vcmask 293888
  %v38 = vsel %vm36, %v11, 0
  %vm40 = vcmask 1043456
  %v41 = vsel %vm40, %v31, 0
  %43 = vmatprep.subr.mxu0 0.0
  %44 = vmatpush1.msra.mxu0 %v23
  %45 = vmatprep.subr.mxu0 0.0
  %46 = vmatpush1.msra.mxu0 %v25
  %47 = vmatprep.subr.mxu0 0.0
  %48 = vmatpush1.msra.mxu0 %v27
  %49 = vmatprep.subr.mxu0 0.0
  %50 = vmatpush1.msra.mxu0 %v29
  %51 = vmatprep.subr.mxu0 0.0
  %52 = vmatpush1.msra.mxu0 %v41
  %53 = vmatprep.subr.mxu0 0.0
  %54 = vmatpush1.msra.mxu0 0.0
  %55 = vmatprep.subr.mxu0 0.0
  %56 = vmatpush1.msra.mxu0 0.0
  %57 = vmatprep.subr.mxu0 0.0
  %58 = vmatpush1.msra.mxu0 0.0
  %59 = vmatprep.subr.mxu0 0.0
  %60 = vmatpush1.msra.mxu0 0.0
  %61 = vmatprep.subr.mxu0 0.0
  %62 = vmatpush1.msra.mxu0 0.0
  %63 = vmatprep.subr.mxu0 0.0
  %64 = vmatpush1.msra.mxu0 0.0
  %65 = vmatprep.subr.mxu0 0.0
  %66 = vmatpush1.msra.mxu0 0.0
  %67 = vmatprep.subr.mxu0 0.0
  %68 = vmatpush1.msra.mxu0 0.0
  %69 = vmatprep.subr.mxu0 0.0
  %70 = vmatpush1.msra.mxu0 0.0
  %71 = vmatprep.subr.mxu0 0.0
  %72 = vmatpush1.msra.mxu0 0.0
  %73 = vmatprep.subr.mxu0 0.0
  %74 = vmatpush1.msra.mxu0 0.0
  %75 = vmatprep.subr.mxu0 0.0
  %76 = vmatpush1.msra.mxu0 0.0
  %77 = vmatprep.subr.mxu0 0.0
  %78 = vmatpush1.msra.mxu0 0.0
  %79 = vmatprep.subr.mxu0 0.0
  %80 = vmatpush1.msra.mxu0 0.0
  %81 = vmatprep.subr.mxu0 0.0
  %82 = vmatpush1.msra.mxu0 0.0
  %83 = vmatprep.subr.mxu0 0.0
  %84 = vmatpush1.msra.mxu0 0.0
  %85 = vmatprep.subr.mxu0 0.0
  %86 = vmatpush1.msra.mxu0 0.0
  %87 = vmatprep.subr.mxu0 0.0
  %88 = vmatpush1.msra.mxu0 0.0
  %89 = vmatprep.subr.mxu0 0.0
  %90 = vmatpush1.msra.mxu0 0.0
  %91 = vmatprep.subr.mxu0 0.0
  %92 = vmatpush1.msra.mxu0 0.0
  %93 = vmatprep.subr.mxu0 0.0
  %94 = vmatpush1.msra.mxu0 0.0
  %95 = vmatprep.subr.mxu0 0.0
  %96 = vmatpush1.msra.mxu0 0.0
  %97 = vmatprep.subr.mxu0 0.0
  %98 = vmatpush1.msra.mxu0 0.0
  %99 = vmatprep.subr.mxu0 0.0
  %100 = vmatpush1.msra.mxu0 0.0
  %101 = vmatprep.subr.mxu0 0.0
  %102 = vmatpush1.msra.mxu0 0.0
  %103 = vmatprep.subr.mxu0 0.0
  %104 = vmatpush1.msra.mxu0 0.0
  %105 = vmatprep.subr.mxu0 0.0
  %106 = vmatpush1.msra.mxu0 0.0
  %107 = vmatprep.mubr.f32.mxu0 0.0
  %108 = vmatmul.mubr.f32.gmra.mrb[0].mxu0 %v38
  %v109 = vpop.f32.mrb[0].mxu0
  %v110 = vadd.f32 0.0, %v109
  %v111 = vpop.f32.mrb[0].mxu0
  %112 = vdwg.mxu0
  %v113 = vld [vmem:[%s1] sm:$0xff]
  %v114 = vld [vmem:[%s1 + $0x10] sm:$0xff]
  %v115 = vld [vmem:[%s1 + $0x20] sm:$0xff]
  %v116 = vld [vmem:[%s1 + $0x30] sm:$0xff]
  %v117 = vld [vmem:[%s1 + $0x40] sm:$0xff]
  %v118 = vld [vmem:[%s1 + $0x50] sm:$0xff]
  %v119 = vld [vmem:[%s1 + $0x60] sm:$0xff]
  %v120 = vld [vmem:[%s1 + $0x70] sm:$0xff]
  %v121 = vld [vmem:[%s1 + $0x80] sm:$0xff]
  %v122 = vld [vmem:[%s1 + $0x90] sm:$0xff]
  %v123 = vld [vmem:[%s1 + $0xa0] sm:$0xff]
  %v124 = vld [vmem:[%s1 + $0xb0] sm:$0xff]
  %v125 = vld [vmem:[%s1 + $0xc0] sm:$0xff]
  %v126 = vld [vmem:[%s1 + $0xd0] sm:$0xff]
  %v127 = vld [vmem:[%s1 + $0xe0] sm:$0xff]
  %v128 = vld [vmem:[%s1 + $0xf0] sm:$0xff]
  %v129 = vld [vmem:[%s1 + $0x100] sm:$0xff]
  %v130 = vld [vmem:[%s1 + $0x110] sm:$0xff]
  %v131 = vld [vmem:[%s1 + $0x120] sm:$0xff]
  %v132 = vld [vmem:[%s1 + $0x130] sm:$0xff]
  %v133 = vld [vmem:[%s1 + $0x140] sm:$0xff]
  %v134 = vld [vmem:[%s1 + $0x150] sm:$0xff]
  %v135 = vld [vmem:[%s1 + $0x160] sm:$0xff]
  %v136 = vld [vmem:[%s1 + $0x170] sm:$0xff]
  %137 = vrot.lane.b32.xlu0 %v12, 32
  %v138 = vpop.permute.xlu0 %137
  %139 = vrot.lane.b32.xlu0 %v13, 32
  %v140 = vpop.permute.xlu0 %139
  %141 = vrot.lane.b32.xlu0 %v14, 32
  %v142 = vpop.permute.xlu0 %141
  %143 = vrot.lane.b32.xlu0 %v15, 32
  %v144 = vpop.permute.xlu0 %143
  %145 = vrot.lane.b32.xlu0 %v16, 32
  %v146 = vpop.permute.xlu0 %145
  %v151 = vsel %vm40, %v146, 0
  %153 = vmatprep.subr.mxu0 0.0
  %154 = vmatpush1.msra.mxu0 %v138
  %155 = vmatprep.subr.mxu0 0.0
  %156 = vmatpush1.msra.mxu0 %v140
  %157 = vmatprep.subr.mxu0 0.0
  %158 = vmatpush1.msra.mxu0 %v142
  %159 = vmatprep.subr.mxu0 0.0
  %160 = vmatpush1.msra.mxu0 %v144
  %161 = vmatprep.subr.mxu0 0.0
  %162 = vmatpush1.msra.mxu0 %v151
  %163 = vmatprep.subr.mxu0 0.0
  %164 = vmatpush1.msra.mxu0 0.0
  %165 = vmatprep.subr.mxu0 0.0
  %166 = vmatpush1.msra.mxu0 0.0
  %167 = vmatprep.subr.mxu0 0.0
  %168 = vmatpush1.msra.mxu0 0.0
  %169 = vmatprep.subr.mxu0 0.0
  %170 = vmatpush1.msra.mxu0 0.0
  %171 = vmatprep.subr.mxu0 0.0
  %172 = vmatpush1.msra.mxu0 0.0
  %173 = vmatprep.subr.mxu0 0.0
  %174 = vmatpush1.msra.mxu0 0.0
  %175 = vmatprep.subr.mxu0 0.0
  %176 = vmatpush1.msra.mxu0 0.0
  %177 = vmatprep.subr.mxu0 0.0
  %178 = vmatpush1.msra.mxu0 0.0
  %179 = vmatprep.subr.mxu0 0.0
  %180 = vmatpush1.msra.mxu0 0.0
  %181 = vmatprep.subr.mxu0 0.0
  %182 = vmatpush1.msra.mxu0 0.0
  %183 = vmatprep.subr.mxu0 0.0
  %184 = vmatpush1.msra.mxu0 0.0
  %185 = vmatprep.subr.mxu0 0.0
  %186 = vmatpush1.msra.mxu0 0.0
  %187 = vmatprep.subr.mxu0 0.0
  %188 = vmatpush1.msra.mxu0 0.0
  %189 = vmatprep.subr.mxu0 0.0
  %190 = vmatpush1.msra.mxu0 0.0
  %191 = vmatprep.subr.mxu0 0.0
  %192 = vmatpush1.msra.mxu0 0.0
  %193 = vmatprep.subr.mxu0 0.0
  %194 = vmatpush1.msra.mxu0 0.0
  %195 = vmatprep.subr.mxu0 0.0
  %196 = vmatpush1.msra.mxu0 0.0
  %197 = vmatprep.subr.mxu0 0.0
  %198 = vmatpush1.msra.mxu0 0.0
  %199 = vmatprep.subr.mxu0 0.0
  %200 = vmatpush1.msra.mxu0 0.0
  %201 = vmatprep.subr.mxu0 0.0
  %202 = vmatpush1.msra.mxu0 0.0
  %203 = vmatprep.subr.mxu0 0.0
  %204 = vmatpush1.msra.mxu0 0.0
  %205 = vmatprep.subr.mxu0 0.0
  %206 = vmatpush1.msra.mxu0 0.0
  %207 = vmatprep.subr.mxu0 0.0
  %208 = vmatpush1.msra.mxu0 0.0
  %209 = vmatprep.subr.mxu0 0.0
  %210 = vmatpush1.msra.mxu0 0.0
  %211 = vmatprep.subr.mxu0 0.0
  %212 = vmatpush1.msra.mxu0 0.0
  %213 = vmatprep.subr.mxu0 0.0
  %214 = vmatpush1.msra.mxu0 0.0
  %215 = vmatprep.subr.mxu0 0.0
  %216 = vmatpush1.msra.mxu0 0.0
  %217 = vmatprep.mubr.f32.mxu0 0.0
  %218 = vmatmul.mubr.f32.gmra.mrb[0].mxu0 %v38
  %v219 = vpop.f32.mrb[0].mxu0
  %v220 = vadd.f32 0.0, %v219
  %v221 = vpop.f32.mrb[0].mxu0
  %222 = vdwg.mxu0
  %247 = vrot.lane.b32.xlu0 %v113, 120
  %v248 = vpop.permute.xlu0 %247
  %249 = vrot.lane.b32.xlu0 %v114, 120
  %v250 = vpop.permute.xlu0 %249
  %251 = vrot.lane.b32.xlu0 %v115, 120
  %v252 = vpop.permute.xlu0 %251
  %253 = vrot.lane.b32.xlu0 %v116, 120
  %v254 = vpop.permute.xlu0 %253
  %255 = vrot.lane.b32.xlu0 %v117, 120
  %v256 = vpop.permute.xlu0 %255
  %257 = vrot.lane.b32.xlu0 %v118, 120
  %v258 = vpop.permute.xlu0 %257
  %259 = vrot.lane.b32.xlu0 %v119, 120
  %v260 = vpop.permute.xlu0 %259
  %261 = vrot.lane.b32.xlu0 %v120, 120
  %v262 = vpop.permute.xlu0 %261
  %263 = vrot.lane.b32.xlu0 %v121, 120
  %v264 = vpop.permute.xlu0 %263
  %265 = vrot.lane.b32.xlu0 %v122, 120
  %v266 = vpop.permute.xlu0 %265
  %267 = vrot.lane.b32.xlu0 %v123, 120
  %v268 = vpop.permute.xlu0 %267
  %269 = vrot.lane.b32.xlu0 %v124, 120
  %v270 = vpop.permute.xlu0 %269
  %271 = vrot.lane.b32.xlu0 %v125, 120
  %v272 = vpop.permute.xlu0 %271
  %273 = vrot.lane.b32.xlu0 %v126, 120
  %v274 = vpop.permute.xlu0 %273
  %275 = vrot.lane.b32.xlu0 %v127, 120
  %v276 = vpop.permute.xlu0 %275
  %277 = vrot.lane.b32.xlu0 %v128, 120
  %v278 = vpop.permute.xlu0 %277
  %279 = vrot.lane.b32.xlu0 %v129, 120
  %v280 = vpop.permute.xlu0 %279
  %281 = vrot.lane.b32.xlu0 %v130, 120
  %v282 = vpop.permute.xlu0 %281
  %283 = vrot.lane.b32.xlu0 %v131, 120
  %v284 = vpop.permute.xlu0 %283
  %285 = vrot.lane.b32.xlu0 %v132, 120
  %v286 = vpop.permute.xlu0 %285
  %287 = vrot.lane.b32.xlu0 %v133, 120
  %v288 = vpop.permute.xlu0 %287
  %289 = vrot.lane.b32.xlu0 %v134, 120
  %v290 = vpop.permute.xlu0 %289
  %291 = vrot.lane.b32.xlu0 %v135, 120
  %v292 = vpop.permute.xlu0 %291
  %293 = vrot.lane.b32.xlu0 %v136, 120
  %v294 = vpop.permute.xlu0 %293
  %vm295 = vcmask 64512
  %v296 = vsel %vm295, %v248, 0
  %v298 = vsel %vm295, %v250, 0
  %v300 = vsel %vm295, %v252, 0
  %v302 = vsel %vm295, %v254, 0
  %v304 = vsel %vm295, %v256, 0
  %v306 = vsel %vm295, %v258, 0
  %v308 = vsel %vm295, %v260, 0
  %v310 = vsel %vm295, %v262, 0
  %v312 = vsel %vm295, %v264, 0
  %v314 = vsel %vm295, %v266, 0
  %v316 = vsel %vm295, %v268, 0
  %v318 = vsel %vm295, %v270, 0
  %v320 = vsel %vm295, %v272, 0
  %v322 = vsel %vm295, %v274, 0
  %v324 = vsel %vm295, %v276, 0
  %v326 = vsel %vm295, %v278, 0
  %v328 = vsel %vm295, %v280, 0
  %v330 = vsel %vm295, %v282, 0
  %v332 = vsel %vm295, %v284, 0
  %v334 = vsel %vm295, %v286, 0
  %v336 = vsel %vm295, %v288, 0
  %v338 = vsel %vm295, %v290, 0
  %v340 = vsel %vm295, %v292, 0
  %v342 = vsel %vm295, %v294, 0
  %344 = vmatprep.subr.mxu0 0.0
  %345 = vmatpush1.msra.mxu0 %v220
  %346 = vmatprep.subr.mxu0 0.0
  %347 = vmatpush1.msra.mxu0 0.0
  %348 = vmatprep.subr.mxu0 0.0
  %349 = vmatpush1.msra.mxu0 0.0
  %350 = vmatprep.subr.mxu0 0.0
  %351 = vmatpush1.msra.mxu0 0.0
  %352 = vmatprep.subr.mxu0 0.0
  %353 = vmatpush1.msra.mxu0 0.0
  %354 = vmatprep.subr.mxu0 0.0
  %355 = vmatpush1.msra.mxu0 0.0
  %356 = vmatprep.subr.mxu0 0.0
  %357 = vmatpush1.msra.mxu0 0.0
  %358 = vmatprep.subr.mxu0 0.0
  %359 = vmatpush1.msra.mxu0 0.0
  %360 = vmatprep.subr.mxu0 0.0
  %361 = vmatpush1.msra.mxu0 0.0
  %362 = vmatprep.subr.mxu0 0.0
  %363 = vmatpush1.msra.mxu0 0.0
  %364 = vmatprep.subr.mxu0 0.0
  %365 = vmatpush1.msra.mxu0 0.0
  %366 = vmatprep.subr.mxu0 0.0
  %367 = vmatpush1.msra.mxu0 0.0
  %368 = vmatprep.subr.mxu0 0.0
  %369 = vmatpush1.msra.mxu0 0.0
  %370 = vmatprep.subr.mxu0 0.0
  %371 = vmatpush1.msra.mxu0 0.0
  %372 = vmatprep.subr.mxu0 0.0
  %373 = vmatpush1.msra.mxu0 0.0
  %374 = vmatprep.subr.mxu0 0.0
  %375 = vmatpush1.msra.mxu0 0.0
  %376 = vmatprep.subr.mxu0 0.0
  %377 = vmatpush1.msra.mxu0 0.0
  %378 = vmatprep.subr.mxu0 0.0
  %379 = vmatpush1.msra.mxu0 0.0
  %380 = vmatprep.subr.mxu0 0.0
  %381 = vmatpush1.msra.mxu0 0.0
  %382 = vmatprep.subr.mxu0 0.0
  %383 = vmatpush1.msra.mxu0 0.0
  %384 = vmatprep.subr.mxu0 0.0
  %385 = vmatpush1.msra.mxu0 0.0
  %386 = vmatprep.subr.mxu0 0.0
  %387 = vmatpush1.msra.mxu0 0.0
  %388 = vmatprep.subr.mxu0 0.0
  %389 = vmatpush1.msra.mxu0 0.0
  %390 = vmatprep.subr.mxu0 0.0
  %391 = vmatpush1.msra.mxu0 0.0
  %392 = vmatprep.subr.mxu0 0.0
  %393 = vmatpush1.msra.mxu0 0.0
  %394 = vmatprep.subr.mxu0 0.0
  %395 = vmatpush1.msra.mxu0 0.0
  %396 = vmatprep.subr.mxu0 0.0
  %397 = vmatpush1.msra.mxu0 0.0
  %398 = vmatprep.subr.mxu0 0.0
  %399 = vmatpush1.msra.mxu0 0.0
  %400 = vmatprep.subr.mxu0 0.0
  %401 = vmatpush1.msra.mxu0 0.0
  %402 = vmatprep.subr.mxu0 0.0
  %403 = vmatpush1.msra.mxu0 0.0
  %404 = vmatprep.subr.mxu0 0.0
  %405 = vmatpush1.msra.mxu0 0.0
  %406 = vmatprep.subr.mxu0 0.0
  %407 = vmatpush1.msra.mxu0 0.0
  %408 = vmatprep.mubr.f32.mxu0 0.0
  %409 = vmatmul.mubr.f32.gmra.mrb[0].mxu0 %v296
  %v410 = vpop.f32.mrb[0].mxu0
  %v411 = vadd.f32 0.0, %v410
  %v412 = vpop.f32.mrb[0].mxu0
  %413 = vmatprep.mubr.f32.mxu0 0.0
  %414 = vmatmul.mubr.f32.gmra.mrb[0].mxu0 %v298
  %v415 = vpop.f32.mrb[0].mxu0
  %v416 = vadd.f32 0.0, %v415
  %v417 = vpop.f32.mrb[0].mxu0
  %418 = vmatprep.mubr.f32.mxu0 0.0
  %419 = vmatmul.mubr.f32.gmra.mrb[0].mxu0 %v300
  %v420 = vpop.f32.mrb[0].mxu0
  %v421 = vadd.f32 0.0, %v420
  %v422 = vpop.f32.mrb[0].mxu0
  %423 = vmatprep.mubr.f32.mxu0 0.0
  %424 = vmatmul.mubr.f32.gmra.mrb[0].mxu0 %v302
  %v425 = vpop.f32.mrb[0].mxu0
  %v426 = vadd.f32 0.0, %v425
  %v427 = vpop.f32.mrb[0].mxu0
  %428 = vmatprep.mubr.f32.mxu0 0.0
  %429 = vmatmul.mubr.f32.gmra.mrb[0].mxu0 %v304
  %v430 = vpop.f32.mrb[0].mxu0
  %v431 = vadd.f32 0.0, %v430
  %v432 = vpop.f32.mrb[0].mxu0
  %433 = vmatprep.mubr.f32.mxu0 0.0
  %434 = vmatmul.mubr.f32.gmra.mrb[0].mxu0 %v306
  %v435 = vpop.f32.mrb[0].mxu0
  %v436 = vadd.f32 0.0, %v435
  %v437 = vpop.f32.mrb[0].mxu0
  %438 = vmatprep.mubr.f32.mxu0 0.0
  %439 = vmatmul.mubr.f32.gmra.mrb[0].mxu0 %v308
  %v440 = vpop.f32.mrb[0].mxu0
  %v441 = vadd.f32 0.0, %v440
  %v442 = vpop.f32.mrb[0].mxu0
  %443 = vmatprep.mubr.f32.mxu0 0.0
  %444 = vmatmul.mubr.f32.gmra.mrb[0].mxu0 %v310
  %v445 = vpop.f32.mrb[0].mxu0
  %v446 = vadd.f32 0.0, %v445
  %v447 = vpop.f32.mrb[0].mxu0
  %448 = vmatprep.mubr.f32.mxu0 0.0
  %449 = vmatmul.mubr.f32.gmra.mrb[0].mxu0 %v312
  %v450 = vpop.f32.mrb[0].mxu0
  %v451 = vadd.f32 0.0, %v450
  %v452 = vpop.f32.mrb[0].mxu0
  %453 = vmatprep.mubr.f32.mxu0 0.0
  %454 = vmatmul.mubr.f32.gmra.mrb[0].mxu0 %v314
  %v455 = vpop.f32.mrb[0].mxu0
  %v456 = vadd.f32 0.0, %v455
  %v457 = vpop.f32.mrb[0].mxu0
  %458 = vmatprep.mubr.f32.mxu0 0.0
  %459 = vmatmul.mubr.f32.gmra.mrb[0].mxu0 %v316
  %v460 = vpop.f32.mrb[0].mxu0
  %v461 = vadd.f32 0.0, %v460
  %v462 = vpop.f32.mrb[0].mxu0
  %463 = vmatprep.mubr.f32.mxu0 0.0
  %464 = vmatmul.mubr.f32.gmra.mrb[0].mxu0 %v318
  %v465 = vpop.f32.mrb[0].mxu0
  %v466 = vadd.f32 0.0, %v465
  %v467 = vpop.f32.mrb[0].mxu0
  %468 = vmatprep.mubr.f32.mxu0 0.0
  %469 = vmatmul.mubr.f32.gmra.mrb[0].mxu0 %v320
  %v470 = vpop.f32.mrb[0].mxu0
  %v471 = vadd.f32 0.0, %v470
  %v472 = vpop.f32.mrb[0].mxu0
  %473 = vmatprep.mubr.f32.mxu0 0.0
  %474 = vmatmul.mubr.f32.gmra.mrb[0].mxu0 %v322
  %v475 = vpop.f32.mrb[0].mxu0
  %v476 = vadd.f32 0.0, %v475
  %v477 = vpop.f32.mrb[0].mxu0
  %478 = vmatprep.mubr.f32.mxu0 0.0
  %479 = vmatmul.mubr.f32.gmra.mrb[0].mxu0 %v324
  %v480 = vpop.f32.mrb[0].mxu0
  %v481 = vadd.f32 0.0, %v480
  %v482 = vpop.f32.mrb[0].mxu0
  %483 = vmatprep.mubr.f32.mxu0 0.0
  %484 = vmatmul.mubr.f32.gmra.mrb[0].mxu0 %v326
  %v485 = vpop.f32.mrb[0].mxu0
  %v486 = vadd.f32 0.0, %v485
  %v487 = vpop.f32.mrb[0].mxu0
  %488 = vmatprep.mubr.f32.mxu0 0.0
  %489 = vmatmul.mubr.f32.gmra.mrb[0].mxu0 %v328
  %v490 = vpop.f32.mrb[0].mxu0
  %v491 = vadd.f32 0.0, %v490
  %v492 = vpop.f32.mrb[0].mxu0
  %493 = vmatprep.mubr.f32.mxu0 0.0
  %494 = vmatmul.mubr.f32.gmra.mrb[0].mxu0 %v330
  %v495 = vpop.f32.mrb[0].mxu0
  %v496 = vadd.f32 0.0, %v495
  %v497 = vpop.f32.mrb[0].mxu0
  %498 = vmatprep.mubr.f32.mxu0 0.0
  %499 = vmatmul.mubr.f32.gmra.mrb[0].mxu0 %v332
  %v500 = vpop.f32.mrb[0].mxu0
  %v501 = vadd.f32 0.0, %v500
  %v502 = vpop.f32.mrb[0].mxu0
  %503 = vmatprep.mubr.f32.mxu0 0.0
  %504 = vmatmul.mubr.f32.gmra.mrb[0].mxu0 %v334
  %v505 = vpop.f32.mrb[0].mxu0
  %v506 = vadd.f32 0.0, %v505
  %v507 = vpop.f32.mrb[0].mxu0
  %508 = vmatprep.mubr.f32.mxu0 0.0
  %509 = vmatmul.mubr.f32.gmra.mrb[0].mxu0 %v336
  %v510 = vpop.f32.mrb[0].mxu0
  %v511 = vadd.f32 0.0, %v510
  %v512 = vpop.f32.mrb[0].mxu0
  %513 = vmatprep.mubr.f32.mxu0 0.0
  %514 = vmatmul.mubr.f32.gmra.mrb[0].mxu0 %v338
  %v515 = vpop.f32.mrb[0].mxu0
  %v516 = vadd.f32 0.0, %v515
  %v517 = vpop.f32.mrb[0].mxu0
  %518 = vmatprep.mubr.f32.mxu0 0.0
  %519 = vmatmul.mubr.f32.gmra.mrb[0].mxu0 %v340
  %v520 = vpop.f32.mrb[0].mxu0
  %v521 = vadd.f32 0.0, %v520
  %v522 = vpop.f32.mrb[0].mxu0
  %523 = vmatprep.mubr.f32.mxu0 0.0
  %524 = vmatmul.mubr.f32.gmra.mrb[0].mxu0 %v342
  %v525 = vpop.f32.mrb[0].mxu0
  %v526 = vadd.f32 0.0, %v525
  %v527 = vpop.f32.mrb[0].mxu0
  %528 = vdwg.mxu0
  %v529 = vsel %vm295, %v113, 0
  %v531 = vsel %vm295, %v114, 0
  %v533 = vsel %vm295, %v115, 0
  %v535 = vsel %vm295, %v116, 0
  %v537 = vsel %vm295, %v117, 0
  %v539 = vsel %vm295, %v118, 0
  %v541 = vsel %vm295, %v119, 0
  %v543 = vsel %vm295, %v120, 0
  %v545 = vsel %vm295, %v121, 0
  %v547 = vsel %vm295, %v122, 0
  %v549 = vsel %vm295, %v123, 0
  %v551 = vsel %vm295, %v124, 0
  %v553 = vsel %vm295, %v125, 0
  %v555 = vsel %vm295, %v126, 0
  %v557 = vsel %vm295, %v127, 0
  %v559 = vsel %vm295, %v128, 0
  %v561 = vsel %vm295, %v129, 0
  %v563 = vsel %vm295, %v130, 0
  %v565 = vsel %vm295, %v131, 0
  %v567 = vsel %vm295, %v132, 0
  %v569 = vsel %vm295, %v133, 0
  %v571 = vsel %vm295, %v134, 0
  %v573 = vsel %vm295, %v135, 0
  %v575 = vsel %vm295, %v136, 0
  %577 = vmatprep.subr.mxu0 0.0
  %578 = vmatpush1.msra.mxu0 %v110
  %579 = vmatprep.subr.mxu0 0.0
  %580 = vmatpush1.msra.mxu0 0.0
  %581 = vmatprep.subr.mxu0 0.0
  %582 = vmatpush1.msra.mxu0 0.0
  %583 = vmatprep.subr.mxu0 0.0
  %584 = vmatpush1.msra.mxu0 0.0
  %585 = vmatprep.subr.mxu0 0.0
  %586 = vmatpush1.msra.mxu0 0.0
  %587 = vmatprep.subr.mxu0 0.0
  %588 = vmatpush1.msra.mxu0 0.0
  %589 = vmatprep.subr.mxu0 0.0
  %590 = vmatpush1.msra.mxu0 0.0
  %591 = vmatprep.subr.mxu0 0.0
  %592 = vmatpush1.msra.mxu0 0.0
  %593 = vmatprep.subr.mxu0 0.0
  %594 = vmatpush1.msra.mxu0 0.0
  %595 = vmatprep.subr.mxu0 0.0
  %596 = vmatpush1.msra.mxu0 0.0
  %597 = vmatprep.subr.mxu0 0.0
  %598 = vmatpush1.msra.mxu0 0.0
  %599 = vmatprep.subr.mxu0 0.0
  %600 = vmatpush1.msra.mxu0 0.0
  %601 = vmatprep.subr.mxu0 0.0
  %602 = vmatpush1.msra.mxu0 0.0
  %603 = vmatprep.subr.mxu0 0.0
  %604 = vmatpush1.msra.mxu0 0.0
  %605 = vmatprep.subr.mxu0 0.0
  %606 = vmatpush1.msra.mxu0 0.0
  %607 = vmatprep.subr.mxu0 0.0
  %608 = vmatpush1.msra.mxu0 0.0
  %609 = vmatprep.subr.mxu0 0.0
  %610 = vmatpush1.msra.mxu0 0.0
  %611 = vmatprep.subr.mxu0 0.0
  %612 = vmatpush1.msra.mxu0 0.0
  %613 = vmatprep.subr.mxu0 0.0
  %614 = vmatpush1.msra.mxu0 0.0
  %615 = vmatprep.subr.mxu0 0.0
  %616 = vmatpush1.msra.mxu0 0.0
  %617 = vmatprep.subr.mxu0 0.0
  %618 = vmatpush1.msra.mxu0 0.0
  %619 = vmatprep.subr.mxu0 0.0
  %620 = vmatpush1.msra.mxu0 0.0
  %621 = vmatprep.subr.mxu0 0.0
  %622 = vmatpush1.msra.mxu0 0.0
  %623 = vmatprep.subr.mxu0 0.0
  %624 = vmatpush1.msra.mxu0 0.0
  %625 = vmatprep.subr.mxu0 0.0
  %626 = vmatpush1.msra.mxu0 0.0
  %627 = vmatprep.subr.mxu0 0.0
  %628 = vmatpush1.msra.mxu0 0.0
  %629 = vmatprep.subr.mxu0 0.0
  %630 = vmatpush1.msra.mxu0 0.0
  %631 = vmatprep.subr.mxu0 0.0
  %632 = vmatpush1.msra.mxu0 0.0
  %633 = vmatprep.subr.mxu0 0.0
  %634 = vmatpush1.msra.mxu0 0.0
  %635 = vmatprep.subr.mxu0 0.0
  %636 = vmatpush1.msra.mxu0 0.0
  %637 = vmatprep.subr.mxu0 0.0
  %638 = vmatpush1.msra.mxu0 0.0
  %639 = vmatprep.subr.mxu0 0.0
  %640 = vmatpush1.msra.mxu0 0.0
  %641 = vmatprep.mubr.f32.mxu0 0.0
  %642 = vmatmul.mubr.f32.gmra.mrb[0].mxu0 %v529
  %v643 = vpop.f32.mrb[0].mxu0
  %v644 = vadd.f32 %v411, %v643
  %v645 = vpop.f32.mrb[0].mxu0
  %646 = vmatprep.mubr.f32.mxu0 0.0
  %647 = vmatmul.mubr.f32.gmra.mrb[0].mxu0 %v531
  %v648 = vpop.f32.mrb[0].mxu0
  %v649 = vadd.f32 %v416, %v648
  %v650 = vpop.f32.mrb[0].mxu0
  %651 = vmatprep.mubr.f32.mxu0 0.0
  %652 = vmatmul.mubr.f32.gmra.mrb[0].mxu0 %v533
  %v653 = vpop.f32.mrb[0].mxu0
  %v654 = vadd.f32 %v421, %v653
  %v655 = vpop.f32.mrb[0].mxu0
  %656 = vmatprep.mubr.f32.mxu0 0.0
  %657 = vmatmul.mubr.f32.gmra.mrb[0].mxu0 %v535
  %v658 = vpop.f32.mrb[0].mxu0
  %v659 = vadd.f32 %v426, %v658
  %v660 = vpop.f32.mrb[0].mxu0
  %661 = vmatprep.mubr.f32.mxu0 0.0
  %662 = vmatmul.mubr.f32.gmra.mrb[0].mxu0 %v537
  %v663 = vpop.f32.mrb[0].mxu0
  %v664 = vadd.f32 %v431, %v663
  %v665 = vpop.f32.mrb[0].mxu0
  %666 = vmatprep.mubr.f32.mxu0 0.0
  %667 = vmatmul.mubr.f32.gmra.mrb[0].mxu0 %v539
  %v668 = vpop.f32.mrb[0].mxu0
  %v669 = vadd.f32 %v436, %v668
  %v670 = vpop.f32.mrb[0].mxu0
  %671 = vmatprep.mubr.f32.mxu0 0.0
  %672 = vmatmul.mubr.f32.gmra.mrb[0].mxu0 %v541
  %v673 = vpop.f32.mrb[0].mxu0
  %v674 = vadd.f32 %v441, %v673
  %v675 = vpop.f32.mrb[0].mxu0
  %676 = vmatprep.mubr.f32.mxu0 0.0
  %677 = vmatmul.mubr.f32.gmra.mrb[0].mxu0 %v543
  %v678 = vpop.f32.mrb[0].mxu0
  %v679 = vadd.f32 %v446, %v678
  %v680 = vpop.f32.mrb[0].mxu0
  %681 = vmatprep.mubr.f32.mxu0 0.0
  %682 = vmatmul.mubr.f32.gmra.mrb[0].mxu0 %v545
  %v683 = vpop.f32.mrb[0].mxu0
  %v684 = vadd.f32 %v451, %v683
  %v685 = vpop.f32.mrb[0].mxu0
  %686 = vmatprep.mubr.f32.mxu0 0.0
  %687 = vmatmul.mubr.f32.gmra.mrb[0].mxu0 %v547
  %v688 = vpop.f32.mrb[0].mxu0
  %v689 = vadd.f32 %v456, %v688
  %v690 = vpop.f32.mrb[0].mxu0
  %691 = vmatprep.mubr.f32.mxu0 0.0
  %692 = vmatmul.mubr.f32.gmra.mrb[0].mxu0 %v549
  %v693 = vpop.f32.mrb[0].mxu0
  %v694 = vadd.f32 %v461, %v693
  %v695 = vpop.f32.mrb[0].mxu0
  %696 = vmatprep.mubr.f32.mxu0 0.0
  %697 = vmatmul.mubr.f32.gmra.mrb[0].mxu0 %v551
  %v698 = vpop.f32.mrb[0].mxu0
  %v699 = vadd.f32 %v466, %v698
  %v700 = vpop.f32.mrb[0].mxu0
  %701 = vmatprep.mubr.f32.mxu0 0.0
  %702 = vmatmul.mubr.f32.gmra.mrb[0].mxu0 %v553
  %v703 = vpop.f32.mrb[0].mxu0
  %v704 = vadd.f32 %v471, %v703
  %v705 = vpop.f32.mrb[0].mxu0
  %706 = vmatprep.mubr.f32.mxu0 0.0
  %707 = vmatmul.mubr.f32.gmra.mrb[0].mxu0 %v555
  %v708 = vpop.f32.mrb[0].mxu0
  %v709 = vadd.f32 %v476, %v708
  %v710 = vpop.f32.mrb[0].mxu0
  %711 = vmatprep.mubr.f32.mxu0 0.0
  %712 = vmatmul.mubr.f32.gmra.mrb[0].mxu0 %v557
  %v713 = vpop.f32.mrb[0].mxu0
  %v714 = vadd.f32 %v481, %v713
  %v715 = vpop.f32.mrb[0].mxu0
  %716 = vmatprep.mubr.f32.mxu0 0.0
  %717 = vmatmul.mubr.f32.gmra.mrb[0].mxu0 %v559
  %v718 = vpop.f32.mrb[0].mxu0
  %v719 = vadd.f32 %v486, %v718
  %v720 = vpop.f32.mrb[0].mxu0
  %721 = vmatprep.mubr.f32.mxu0 0.0
  %722 = vmatmul.mubr.f32.gmra.mrb[0].mxu0 %v561
  %v723 = vpop.f32.mrb[0].mxu0
  %v724 = vadd.f32 %v491, %v723
  %v725 = vpop.f32.mrb[0].mxu0
  %726 = vmatprep.mubr.f32.mxu0 0.0
  %727 = vmatmul.mubr.f32.gmra.mrb[0].mxu0 %v563
  %v728 = vpop.f32.mrb[0].mxu0
  %v729 = vadd.f32 %v496, %v728
  %v730 = vpop.f32.mrb[0].mxu0
  %731 = vmatprep.mubr.f32.mxu0 0.0
  %732 = vmatmul.mubr.f32.gmra.mrb[0].mxu0 %v565
  %v733 = vpop.f32.mrb[0].mxu0
  %v734 = vadd.f32 %v501, %v733
  %v735 = vpop.f32.mrb[0].mxu0
  %736 = vmatprep.mubr.f32.mxu0 0.0
  %737 = vmatmul.mubr.f32.gmra.mrb[0].mxu0 %v567
  %v738 = vpop.f32.mrb[0].mxu0
  %v739 = vadd.f32 %v506, %v738
  %v740 = vpop.f32.mrb[0].mxu0
  %741 = vmatprep.mubr.f32.mxu0 0.0
  %742 = vmatmul.mubr.f32.gmra.mrb[0].mxu0 %v569
  %v743 = vpop.f32.mrb[0].mxu0
  %v744 = vadd.f32 %v511, %v743
  %v745 = vpop.f32.mrb[0].mxu0
  %746 = vmatprep.mubr.f32.mxu0 0.0
  %747 = vmatmul.mubr.f32.gmra.mrb[0].mxu0 %v571
  %v748 = vpop.f32.mrb[0].mxu0
  %v749 = vadd.f32 %v516, %v748
  %v750 = vpop.f32.mrb[0].mxu0
  %751 = vmatprep.mubr.f32.mxu0 0.0
  %752 = vmatmul.mubr.f32.gmra.mrb[0].mxu0 %v573
  %v753 = vpop.f32.mrb[0].mxu0
  %v754 = vadd.f32 %v521, %v753
  %v755 = vpop.f32.mrb[0].mxu0
  %756 = vmatprep.mubr.f32.mxu0 0.0
  %757 = vmatmul.mubr.f32.gmra.mrb[0].mxu0 %v575
  %v758 = vpop.f32.mrb[0].mxu0
  %v759 = vadd.f32 %v526, %v758
  %v760 = vpop.f32.mrb[0].mxu0
  %761 = vdwg.mxu0
  %762 = vrot.lane.b32.xlu0 %v12, 16
  %v763 = vpop.permute.xlu0 %762
  %764 = vrot.lane.b32.xlu0 %v13, 16
  %v765 = vpop.permute.xlu0 %764
  %766 = vrot.lane.b32.xlu0 %v14, 16
  %v767 = vpop.permute.xlu0 %766
  %768 = vrot.lane.b32.xlu0 %v15, 16
  %v769 = vpop.permute.xlu0 %768
  %770 = vrot.lane.b32.xlu0 %v16, 16
  %v771 = vpop.permute.xlu0 %770
  %v776 = vsel %vm40, %v771, 0
  %778 = vmatprep.subr.mxu0 0.0
  %779 = vmatpush1.msra.mxu0 %v763
  %780 = vmatprep.subr.mxu0 0.0
  %781 = vmatpush1.msra.mxu0 %v765
  %782 = vmatprep.subr.mxu0 0.0
  %783 = vmatpush1.msra.mxu0 %v767
  %784 = vmatprep.subr.mxu0 0.0
  %785 = vmatpush1.msra.mxu0 %v769
  %786 = vmatprep.subr.mxu0 0.0
  %787 = vmatpush1.msra.mxu0 %v776
  %788 = vmatprep.subr.mxu0 0.0
  %789 = vmatpush1.msra.mxu0 0.0
  %790 = vmatprep.subr.mxu0 0.0
  %791 = vmatpush1.msra.mxu0 0.0
  %792 = vmatprep.subr.mxu0 0.0
  %793 = vmatpush1.msra.mxu0 0.0
  %794 = vmatprep.subr.mxu0 0.0
  %795 = vmatpush1.msra.mxu0 0.0
  %796 = vmatprep.subr.mxu0 0.0
  %797 = vmatpush1.msra.mxu0 0.0
  %798 = vmatprep.subr.mxu0 0.0
  %799 = vmatpush1.msra.mxu0 0.0
  %800 = vmatprep.subr.mxu0 0.0
  %801 = vmatpush1.msra.mxu0 0.0
  %802 = vmatprep.subr.mxu0 0.0
  %803 = vmatpush1.msra.mxu0 0.0
  %804 = vmatprep.subr.mxu0 0.0
  %805 = vmatpush1.msra.mxu0 0.0
  %806 = vmatprep.subr.mxu0 0.0
  %807 = vmatpush1.msra.mxu0 0.0
  %808 = vmatprep.subr.mxu0 0.0
  %809 = vmatpush1.msra.mxu0 0.0
  %810 = vmatprep.subr.mxu0 0.0
  %811 = vmatpush1.msra.mxu0 0.0
  %812 = vmatprep.subr.mxu0 0.0
  %813 = vmatpush1.msra.mxu0 0.0
  %814 = vmatprep.subr.mxu0 0.0
  %815 = vmatpush1.msra.mxu0 0.0
  %816 = vmatprep.subr.mxu0 0.0
  %817 = vmatpush1.msra.mxu0 0.0
  %818 = vmatprep.subr.mxu0 0.0
  %819 = vmatpush1.msra.mxu0 0.0
  %820 = vmatprep.subr.mxu0 0.0
  %821 = vmatpush1.msra.mxu0 0.0
  %822 = vmatprep.subr.mxu0 0.0
  %823 = vmatpush1.msra.mxu0 0.0
  %824 = vmatprep.subr.mxu0 0.0
  %825 = vmatpush1.msra.mxu0 0.0
  %826 = vmatprep.subr.mxu0 0.0
  %827 = vmatpush1.msra.mxu0 0.0
  %828 = vmatprep.subr.mxu0 0.0
  %829 = vmatpush1.msra.mxu0 0.0
  %830 = vmatprep.subr.mxu0 0.0
  %831 = vmatpush1.msra.mxu0 0.0
  %832 = vmatprep.subr.mxu0 0.0
  %833 = vmatpush1.msra.mxu0 0.0
  %834 = vmatprep.subr.mxu0 0.0
  %835 = vmatpush1.msra.mxu0 0.0
  %836 = vmatprep.subr.mxu0 0.0
  %837 = vmatpush1.msra.mxu0 0.0
  %838 = vmatprep.subr.mxu0 0.0
  %839 = vmatpush1.msra.mxu0 0.0
  %840 = vmatprep.subr.mxu0 0.0
  %841 = vmatpush1.msra.mxu0 0.0
  %842 = vmatprep.mubr.f32.mxu0 0.0
  %843 = vmatmul.mubr.f32.gmra.mrb[0].mxu0 %v38
  %v844 = vpop.f32.mrb[0].mxu0
  %v845 = vadd.f32 0.0, %v844
  %v846 = vpop.f32.mrb[0].mxu0
  %847 = vdwg.mxu0
  %848 = vrot.lane.b32.xlu0 %v113, 112
  %v849 = vpop.permute.xlu0 %848
  %850 = vrot.lane.b32.xlu0 %v114, 112
  %v851 = vpop.permute.xlu0 %850
  %852 = vrot.lane.b32.xlu0 %v115, 112
  %v853 = vpop.permute.xlu0 %852
  %854 = vrot.lane.b32.xlu0 %v116, 112
  %v855 = vpop.permute.xlu0 %854
  %856 = vrot.lane.b32.xlu0 %v117, 112
  %v857 = vpop.permute.xlu0 %856
  %858 = vrot.lane.b32.xlu0 %v118, 112
  %v859 = vpop.permute.xlu0 %858
  %860 = vrot.lane.b32.xlu0 %v119, 112
  %v861 = vpop.permute.xlu0 %860
  %862 = vrot.lane.b32.xlu0 %v120, 112
  %v863 = vpop.permute.xlu0 %862
  %864 = vrot.lane.b32.xlu0 %v121, 112
  %v865 = vpop.permute.xlu0 %864
  %866 = vrot.lane.b32.xlu0 %v122, 112
  %v867 = vpop.permute.xlu0 %866
  %868 = vrot.lane.b32.xlu0 %v123, 112
  %v869 = vpop.permute.xlu0 %868
  %870 = vrot.lane.b32.xlu0 %v124, 112
  %v871 = vpop.permute.xlu0 %870
  %872 = vrot.lane.b32.xlu0 %v125, 112
  %v873 = vpop.permute.xlu0 %872
  %874 = vrot.lane.b32.xlu0 %v126, 112
  %v875 = vpop.permute.xlu0 %874
  %876 = vrot.lane.b32.xlu0 %v127, 112
  %v877 = vpop.permute.xlu0 %876
  %878 = vrot.lane.b32.xlu0 %v128, 112
  %v879 = vpop.permute.xlu0 %878
  %880 = vrot.lane.b32.xlu0 %v129, 112
  %v881 = vpop.permute.xlu0 %880
  %882 = vrot.lane.b32.xlu0 %v130, 112
  %v883 = vpop.permute.xlu0 %882
  %884 = vrot.lane.b32.xlu0 %v131, 112
  %v885 = vpop.permute.xlu0 %884
  %886 = vrot.lane.b32.xlu0 %v132, 112
  %v887 = vpop.permute.xlu0 %886
  %888 = vrot.lane.b32.xlu0 %v133, 112
  %v889 = vpop.permute.xlu0 %888
  %890 = vrot.lane.b32.xlu0 %v134, 112
  %v891 = vpop.permute.xlu0 %890
  %892 = vrot.lane.b32.xlu0 %v135, 112
  %v893 = vpop.permute.xlu0 %892
  %894 = vrot.lane.b32.xlu0 %v136, 112
  %v895 = vpop.permute.xlu0 %894
  %v896 = vsel %vm295, %v849, 0
  %v898 = vsel %vm295, %v851, 0
  %v900 = vsel %vm295, %v853, 0
  %v902 = vsel %vm295, %v855, 0
  %v904 = vsel %vm295, %v857, 0
  %v906 = vsel %vm295, %v859, 0
  %v908 = vsel %vm295, %v861, 0
  %v910 = vsel %vm295, %v863, 0
  %v912 = vsel %vm295, %v865, 0
  %v914 = vsel %vm295, %v867, 0
  %v916 = vsel %vm295, %v869, 0
  %v918 = vsel %vm295, %v871, 0
  %v920 = vsel %vm295, %v873, 0
  %v922 = vsel %vm295, %v875, 0
  %v924 = vsel %vm295, %v877, 0
  %v926 = vsel %vm295, %v879, 0
  %v928 = vsel %vm295, %v881, 0
  %v930 = vsel %vm295, %v883, 0
  %v932 = vsel %vm295, %v885, 0
  %v934 = vsel %vm295, %v887, 0
  %v936 = vsel %vm295, %v889, 0
  %v938 = vsel %vm295, %v891, 0
  %v940 = vsel %vm295, %v893, 0
  %v942 = vsel %vm295, %v895, 0
  %944 = vmatprep.subr.mxu0 0.0
  %945 = vmatpush1.msra.mxu0 %v845
  %946 = vmatprep.subr.mxu0 0.0
  %947 = vmatpush1.msra.mxu0 0.0
  %948 = vmatprep.subr.mxu0 0.0
  %949 = vmatpush1.msra.mxu0 0.0
  %950 = vmatprep.subr.mxu0 0.0
  %951 = vmatpush1.msra.mxu0 0.0
  %952 = vmatprep.subr.mxu0 0.0
  %953 = vmatpush1.msra.mxu0 0.0
  %954 = vmatprep.subr.mxu0 0.0
  %955 = vmatpush1.msra.mxu0 0.0
  %956 = vmatprep.subr.mxu0 0.0
  %957 = vmatpush1.msra.mxu0 0.0
  %958 = vmatprep.subr.mxu0 0.0
  %959 = vmatpush1.msra.mxu0 0.0
  %960 = vmatprep.subr.mxu0 0.0
  %961 = vmatpush1.msra.mxu0 0.0
  %962 = vmatprep.subr.mxu0 0.0
  %963 = vmatpush1.msra.mxu0 0.0
  %964 = vmatprep.subr.mxu0 0.0
  %965 = vmatpush1.msra.mxu0 0.0
  %966 = vmatprep.subr.mxu0 0.0
  %967 = vmatpush1.msra.mxu0 0.0
  %968 = vmatprep.subr.mxu0 0.0
  %969 = vmatpush1.msra.mxu0 0.0
  %970 = vmatprep.subr.mxu0 0.0
  %971 = vmatpush1.msra.mxu0 0.0
  %972 = vmatprep.subr.mxu0 0.0
  %973 = vmatpush1.msra.mxu0 0.0
  %974 = vmatprep.subr.mxu0 0.0
  %975 = vmatpush1.msra.mxu0 0.0
  %976 = vmatprep.subr.mxu0 0.0
  %977 = vmatpush1.msra.mxu0 0.0
  %978 = vmatprep.subr.mxu0 0.0
  %979 = vmatpush1.msra.mxu0 0.0
  %980 = vmatprep.subr.mxu0 0.0
  %981 = vmatpush1.msra.mxu0 0.0
  %982 = vmatprep.subr.mxu0 0.0
  %983 = vmatpush1.msra.mxu0 0.0
  %984 = vmatprep.subr.mxu0 0.0
  %985 = vmatpush1.msra.mxu0 0.0
  %986 = vmatprep.subr.mxu0 0.0
  %987 = vmatpush1.msra.mxu0 0.0
  %988 = vmatprep.subr.mxu0 0.0
  %989 = vmatpush1.msra.mxu0 0.0
  %990 = vmatprep.subr.mxu0 0.0
  %991 = vmatpush1.msra.mxu0 0.0
  %992 = vmatprep.subr.mxu0 0.0
  %993 = vmatpush1.msra.mxu0 0.0
  %994 = vmatprep.subr.mxu0 0.0
  %995 = vmatpush1.msra.mxu0 0.0
  %996 = vmatprep.subr.mxu0 0.0
  %997 = vmatpush1.msra.mxu0 0.0
  %998 = vmatprep.subr.mxu0 0.0
  %999 = vmatpush1.msra.mxu0 0.0
  %1000 = vmatprep.subr.mxu0 0.0
  %1001 = vmatpush1.msra.mxu0 0.0
  %1002 = vmatprep.subr.mxu0 0.0
  %1003 = vmatpush1.msra.mxu0 0.0
  %1004 = vmatprep.subr.mxu0 0.0
  %1005 = vmatpush1.msra.mxu0 0.0
  %1006 = vmatprep.subr.mxu0 0.0
  %1007 = vmatpush1.msra.mxu0 0.0
  %1008 = vmatprep.mubr.f32.mxu0 0.0
  %1009 = vmatmul.mubr.f32.gmra.mrb[0].mxu0 %v896
  %v1010 = vpop.f32.mrb[0].mxu0
  %v1011 = vadd.f32 0.0, %v1010
  %v1012 = vpop.f32.mrb[0].mxu0
  %1013 = vmatprep.mubr.f32.mxu0 0.0
  %1014 = vmatmul.mubr.f32.gmra.mrb[0].mxu0 %v898
  %v1015 = vpop.f32.mrb[0].mxu0
  %v1016 = vadd.f32 0.0, %v1015
  %v1017 = vpop.f32.mrb[0].mxu0
  %1018 = vmatprep.mubr.f32.mxu0 0.0
  %1019 = vmatmul.mubr.f32.gmra.mrb[0].mxu0 %v900
  %v1020 = vpop.f32.mrb[0].mxu0
  %v1021 = vadd.f32 0.0, %v1020
  %v1022 = vpop.f32.mrb[0].mxu0
  %1023 = vmatprep.mubr.f32.mxu0 0.0
  %1024 = vmatmul.mubr.f32.gmra.mrb[0].mxu0 %v902
  %v1025 = vpop.f32.mrb[0].mxu0
  %v1026 = vadd.f32 0.0, %v1025
  %v1027 = vpop.f32.mrb[0].mxu0
  %1028 = vmatprep.mubr.f32.mxu0 0.0
  %1029 = vmatmul.mubr.f32.gmra.mrb[0].mxu0 %v904
  %v1030 = vpop.f32.mrb[0].mxu0
  %v1031 = vadd.f32 0.0, %v1030
  %v1032 = vpop.f32.mrb[0].mxu0
  %1033 = vmatprep.mubr.f32.mxu0 0.0
  %1034 = vmatmul.mubr.f32.gmra.mrb[0].mxu0 %v906
  %v1035 = vpop.f32.mrb[0].mxu0
  %v1036 = vadd.f32 0.0, %v1035
  %v1037 = vpop.f32.mrb[0].mxu0
  %1038 = vmatprep.mubr.f32.mxu0 0.0
  %1039 = vmatmul.mubr.f32.gmra.mrb[0].mxu0 %v908
  %v1040 = vpop.f32.mrb[0].mxu0
  %v1041 = vadd.f32 0.0, %v1040
  %v1042 = vpop.f32.mrb[0].mxu0
  %1043 = vmatprep.mubr.f32.mxu0 0.0
  %1044 = vmatmul.mubr.f32.gmra.mrb[0].mxu0 %v910
  %v1045 = vpop.f32.mrb[0].mxu0
  %v1046 = vadd.f32 0.0, %v1045
  %v1047 = vpop.f32.mrb[0].mxu0
  %1048 = vmatprep.mubr.f32.mxu0 0.0
  %1049 = vmatmul.mubr.f32.gmra.mrb[0].mxu0 %v912
  %v1050 = vpop.f32.mrb[0].mxu0
  %v1051 = vadd.f32 0.0, %v1050
  %v1052 = vpop.f32.mrb[0].mxu0
  %1053 = vmatprep.mubr.f32.mxu0 0.0
  %1054 = vmatmul.mubr.f32.gmra.mrb[0].mxu0 %v914
  %v1055 = vpop.f32.mrb[0].mxu0
  %v1056 = vadd.f32 0.0, %v1055
  %v1057 = vpop.f32.mrb[0].mxu0
  %1058 = vmatprep.mubr.f32.mxu0 0.0
  %1059 = vmatmul.mubr.f32.gmra.mrb[0].mxu0 %v916
  %v1060 = vpop.f32.mrb[0].mxu0
  %v1061 = vadd.f32 0.0, %v1060
  %v1062 = vpop.f32.mrb[0].mxu0
  %1063 = vmatprep.mubr.f32.mxu0 0.0
  %1064 = vmatmul.mubr.f32.gmra.mrb[0].mxu0 %v918
  %v1065 = vpop.f32.mrb[0].mxu0
  %v1066 = vadd.f32 0.0, %v1065
  %v1067 = vpop.f32.mrb[0].mxu0
  %1068 = vmatprep.mubr.f32.mxu0 0.0
  %1069 = vmatmul.mubr.f32.gmra.mrb[0].mxu0 %v920
  %v1070 = vpop.f32.mrb[0].mxu0
  %v1071 = vadd.f32 0.0, %v1070
  %v1072 = vpop.f32.mrb[0].mxu0
  %1073 = vmatprep.mubr.f32.mxu0 0.0
  %1074 = vmatmul.mubr.f32.gmra.mrb[0].mxu0 %v922
  %v1075 = vpop.f32.mrb[0].mxu0
  %v1076 = vadd.f32 0.0, %v1075
  %v1077 = vpop.f32.mrb[0].mxu0
  %1078 = vmatprep.mubr.f32.mxu0 0.0
  %1079 = vmatmul.mubr.f32.gmra.mrb[0].mxu0 %v924
  %v1080 = vpop.f32.mrb[0].mxu0
  %v1081 = vadd.f32 0.0, %v1080
  %v1082 = vpop.f32.mrb[0].mxu0
  %1083 = vmatprep.mubr.f32.mxu0 0.0
  %1084 = vmatmul.mubr.f32.gmra.mrb[0].mxu0 %v926
  %v1085 = vpop.f32.mrb[0].mxu0
  %v1086 = vadd.f32 0.0, %v1085
  %v1087 = vpop.f32.mrb[0].mxu0
  %1088 = vmatprep.mubr.f32.mxu0 0.0
  %1089 = vmatmul.mubr.f32.gmra.mrb[0].mxu0 %v928
  %v1090 = vpop.f32.mrb[0].mxu0
  %v1091 = vadd.f32 0.0, %v1090
  %v1092 = vpop.f32.mrb[0].mxu0
  %1093 = vmatprep.mubr.f32.mxu0 0.0
  %1094 = vmatmul.mubr.f32.gmra.mrb[0].mxu0 %v930
  %v1095 = vpop.f32.mrb[0].mxu0
  %v1096 = vadd.f32 0.0, %v1095
  %v1097 = vpop.f32.mrb[0].mxu0
  %1098 = vmatprep.mubr.f32.mxu0 0.0
  %1099 = vmatmul.mubr.f32.gmra.mrb[0].mxu0 %v932
  %v1100 = vpop.f32.mrb[0].mxu0
  %v1101 = vadd.f32 0.0, %v1100
  %v1102 = vpop.f32.mrb[0].mxu0
  %1103 = vmatprep.mubr.f32.mxu0 0.0
  %1104 = vmatmul.mubr.f32.gmra.mrb[0].mxu0 %v934
  %v1105 = vpop.f32.mrb[0].mxu0
  %v1106 = vadd.f32 0.0, %v1105
  %v1107 = vpop.f32.mrb[0].mxu0
  %1108 = vmatprep.mubr.f32.mxu0 0.0
  %1109 = vmatmul.mubr.f32.gmra.mrb[0].mxu0 %v936
  %v1110 = vpop.f32.mrb[0].mxu0
  %v1111 = vadd.f32 0.0, %v1110
  %v1112 = vpop.f32.mrb[0].mxu0
  %1113 = vmatprep.mubr.f32.mxu0 0.0
  %1114 = vmatmul.mubr.f32.gmra.mrb[0].mxu0 %v938
  %v1115 = vpop.f32.mrb[0].mxu0
  %v1116 = vadd.f32 0.0, %v1115
  %v1117 = vpop.f32.mrb[0].mxu0
  %1118 = vmatprep.mubr.f32.mxu0 0.0
  %1119 = vmatmul.mubr.f32.gmra.mrb[0].mxu0 %v940
  %v1120 = vpop.f32.mrb[0].mxu0
  %v1121 = vadd.f32 0.0, %v1120
  %v1122 = vpop.f32.mrb[0].mxu0
  %1123 = vmatprep.mubr.f32.mxu0 0.0
  %1124 = vmatmul.mubr.f32.gmra.mrb[0].mxu0 %v942
  %v1125 = vpop.f32.mrb[0].mxu0
  %v1126 = vadd.f32 0.0, %v1125
  %v1127 = vpop.f32.mrb[0].mxu0
  %1128 = vdwg.mxu0
  %v1129 = vadd.f32 %v644, %v1011
  %v1130 = vadd.f32 %v649, %v1016
  %v1131 = vadd.f32 %v654, %v1021
  %v1132 = vadd.f32 %v659, %v1026
  %v1133 = vadd.f32 %v664, %v1031
  %v1134 = vadd.f32 %v669, %v1036
  %v1135 = vadd.f32 %v674, %v1041
  %v1136 = vadd.f32 %v679, %v1046
  %v1137 = vadd.f32 %v684, %v1051
  %v1138 = vadd.f32 %v689, %v1056
  %v1139 = vadd.f32 %v694, %v1061
  %v1140 = vadd.f32 %v699, %v1066
  %v1141 = vadd.f32 %v704, %v1071
  %v1142 = vadd.f32 %v709, %v1076
  %v1143 = vadd.f32 %v714, %v1081
  %v1144 = vadd.f32 %v719, %v1086
  %v1145 = vadd.f32 %v724, %v1091
  %v1146 = vadd.f32 %v729, %v1096
  %v1147 = vadd.f32 %v734, %v1101
  %v1148 = vadd.f32 %v739, %v1106
  %v1149 = vadd.f32 %v744, %v1111
  %v1150 = vadd.f32 %v749, %v1116
  %v1151 = vadd.f32 %v754, %v1121
  %v1152 = vadd.f32 %v759, %v1126
  %v1153 = vld [vmem:[%s1 + $0x8] sm:$0xff]
  %v1154 = vld [vmem:[%s1 + $0x18] sm:$0xff]
  %v1155 = vld [vmem:[%s1 + $0x28] sm:$0xff]
  %v1156 = vld [vmem:[%s1 + $0x38] sm:$0xff]
  %v1157 = vld [vmem:[%s1 + $0x48] sm:$0xf]
  %v1159 = vsel %vm40, %v1157, 0
  %1161 = vmatprep.subr.mxu0 0.0
  %1162 = vmatpush1.msra.mxu0 %v1153
  %1163 = vmatprep.subr.mxu0 0.0
  %1164 = vmatpush1.msra.mxu0 %v1154
  %1165 = vmatprep.subr.mxu0 0.0
  %1166 = vmatpush1.msra.mxu0 %v1155
  %1167 = vmatprep.subr.mxu0 0.0
  %1168 = vmatpush1.msra.mxu0 %v1156
  %1169 = vmatprep.subr.mxu0 0.0
  %1170 = vmatpush1.msra.mxu0 %v1159
  %1171 = vmatprep.subr.mxu0 0.0
  %1172 = vmatpush1.msra.mxu0 0.0
  %1173 = vmatprep.subr.mxu0 0.0
  %1174 = vmatpush1.msra.mxu0 0.0
  %1175 = vmatprep.subr.mxu0 0.0
  %1176 = vmatpush1.msra.mxu0 0.0
  %1177 = vmatprep.subr.mxu0 0.0
  %1178 = vmatpush1.msra.mxu0 0.0
  %1179 = vmatprep.subr.mxu0 0.0
  %1180 = vmatpush1.msra.mxu0 0.0
  %1181 = vmatprep.subr.mxu0 0.0
  %1182 = vmatpush1.msra.mxu0 0.0
  %1183 = vmatprep.subr.mxu0 0.0
  %1184 = vmatpush1.msra.mxu0 0.0
  %1185 = vmatprep.subr.mxu0 0.0
  %1186 = vmatpush1.msra.mxu0 0.0
  %1187 = vmatprep.subr.mxu0 0.0
  %1188 = vmatpush1.msra.mxu0 0.0
  %1189 = vmatprep.subr.mxu0 0.0
  %1190 = vmatpush1.msra.mxu0 0.0
  %1191 = vmatprep.subr.mxu0 0.0
  %1192 = vmatpush1.msra.mxu0 0.0
  %1193 = vmatprep.subr.mxu0 0.0
  %1194 = vmatpush1.msra.mxu0 0.0
  %1195 = vmatprep.subr.mxu0 0.0
  %1196 = vmatpush1.msra.mxu0 0.0
  %1197 = vmatprep.subr.mxu0 0.0
  %1198 = vmatpush1.msra.mxu0 0.0
  %1199 = vmatprep.subr.mxu0 0.0
  %1200 = vmatpush1.msra.mxu0 0.0
  %1201 = vmatprep.subr.mxu0 0.0
  %1202 = vmatpush1.msra.mxu0 0.0
  %1203 = vmatprep.subr.mxu0 0.0
  %1204 = vmatpush1.msra.mxu0 0.0
  %1205 = vmatprep.subr.mxu0 0.0
  %1206 = vmatpush1.msra.mxu0 0.0
  %1207 = vmatprep.subr.mxu0 0.0
  %1208 = vmatpush1.msra.mxu0 0.0
  %1209 = vmatprep.subr.mxu0 0.0
  %1210 = vmatpush1.msra.mxu0 0.0
  %1211 = vmatprep.subr.mxu0 0.0
  %1212 = vmatpush1.msra.mxu0 0.0
  %1213 = vmatprep.subr.mxu0 0.0
  %1214 = vmatpush1.msra.mxu0 0.0
  %1215 = vmatprep.subr.mxu0 0.0
  %1216 = vmatpush1.msra.mxu0 0.0
  %1217 = vmatprep.subr.mxu0 0.0
  %1218 = vmatpush1.msra.mxu0 0.0
  %1219 = vmatprep.subr.mxu0 0.0
  %1220 = vmatpush1.msra.mxu0 0.0
  %1221 = vmatprep.subr.mxu0 0.0
  %1222 = vmatpush1.msra.mxu0 0.0
  %1223 = vmatprep.subr.mxu0 0.0
  %1224 = vmatpush1.msra.mxu0 0.0
  %1225 = vmatprep.mubr.f32.mxu0 0.0
  %1226 = vmatmul.mubr.f32.gmra.mrb[0].mxu0 %v38
  %v1227 = vpop.f32.mrb[0].mxu0
  %v1228 = vadd.f32 0.0, %v1227
  %v1229 = vpop.f32.mrb[0].mxu0
  %1230 = vdwg.mxu0
  %1231 = vrot.lane.b32.xlu0 %v113, 104
  %v1232 = vpop.permute.xlu0 %1231
  %1233 = vrot.lane.b32.xlu0 %v114, 104
  %v1234 = vpop.permute.xlu0 %1233
  %1235 = vrot.lane.b32.xlu0 %v115, 104
  %v1236 = vpop.permute.xlu0 %1235
  %1237 = vrot.lane.b32.xlu0 %v116, 104
  %v1238 = vpop.permute.xlu0 %1237
  %1239 = vrot.lane.b32.xlu0 %v117, 104
  %v1240 = vpop.permute.xlu0 %1239
  %1241 = vrot.lane.b32.xlu0 %v118, 104
  %v1242 = vpop.permute.xlu0 %1241
  %1243 = vrot.lane.b32.xlu0 %v119, 104
  %v1244 = vpop.permute.xlu0 %1243
  %1245 = vrot.lane.b32.xlu0 %v120, 104
  %v1246 = vpop.permute.xlu0 %1245
  %1247 = vrot.lane.b32.xlu0 %v121, 104
  %v1248 = vpop.permute.xlu0 %1247
  %1249 = vrot.lane.b32.xlu0 %v122, 104
  %v1250 = vpop.permute.xlu0 %1249
  %1251 = vrot.lane.b32.xlu0 %v123, 104
  %v1252 = vpop.permute.xlu0 %1251
  %1253 = vrot.lane.b32.xlu0 %v124, 104
  %v1254 = vpop.permute.xlu0 %1253
  %1255 = vrot.lane.b32.xlu0 %v125, 104
  %v1256 = vpop.permute.xlu0 %1255
  %1257 = vrot.lane.b32.xlu0 %v126, 104
  %v1258 = vpop.permute.xlu0 %1257
  %1259 = vrot.lane.b32.xlu0 %v127, 104
  %v1260 = vpop.permute.xlu0 %1259
  %1261 = vrot.lane.b32.xlu0 %v128, 104
  %v1262 = vpop.permute.xlu0 %1261
  %1263 = vrot.lane.b32.xlu0 %v129, 104
  %v1264 = vpop.permute.xlu0 %1263
  %1265 = vrot.lane.b32.xlu0 %v130, 104
  %v1266 = vpop.permute.xlu0 %1265
  %1267 = vrot.lane.b32.xlu0 %v131, 104
  %v1268 = vpop.permute.xlu0 %1267
  %1269 = vrot.lane.b32.xlu0 %v132, 104
  %v1270 = vpop.permute.xlu0 %1269
  %1271 = vrot.lane.b32.xlu0 %v133, 104
  %v1272 = vpop.permute.xlu0 %1271
  %1273 = vrot.lane.b32.xlu0 %v134, 104
  %v1274 = vpop.permute.xlu0 %1273
  %1275 = vrot.lane.b32.xlu0 %v135, 104
  %v1276 = vpop.permute.xlu0 %1275
  %1277 = vrot.lane.b32.xlu0 %v136, 104
  %v1278 = vpop.permute.xlu0 %1277
  %v1279 = vsel %vm295, %v1232, 0
  %v1281 = vsel %vm295, %v1234, 0
  %v1283 = vsel %vm295, %v1236, 0
  %v1285 = vsel %vm295, %v1238, 0
  %v1287 = vsel %vm295, %v1240, 0
  %v1289 = vsel %vm295, %v1242, 0
  %v1291 = vsel %vm295, %v1244, 0
  %v1293 = vsel %vm295, %v1246, 0
  %v1295 = vsel %vm295, %v1248, 0
  %v1297 = vsel %vm295, %v1250, 0
  %v1299 = vsel %vm295, %v1252, 0
  %v1301 = vsel %vm295, %v1254, 0
  %v1303 = vsel %vm295, %v1256, 0
  %v1305 = vsel %vm295, %v1258, 0
  %v1307 = vsel %vm295, %v1260, 0
  %v1309 = vsel %vm295, %v1262, 0
  %v1311 = vsel %vm295, %v1264, 0
  %v1313 = vsel %vm295, %v1266, 0
  %v1315 = vsel %vm295, %v1268, 0
  %v1317 = vsel %vm295, %v1270, 0
  %v1319 = vsel %vm295, %v1272, 0
  %v1321 = vsel %vm295, %v1274, 0
  %v1323 = vsel %vm295, %v1276, 0
  %v1325 = vsel %vm295, %v1278, 0
  %1327 = vmatprep.subr.mxu0 0.0
  %1328 = vmatpush1.msra.mxu0 %v1228
  %1329 = vmatprep.subr.mxu0 0.0
  %1330 = vmatpush1.msra.mxu0 0.0
  %1331 = vmatprep.subr.mxu0 0.0
  %1332 = vmatpush1.msra.mxu0 0.0
  %1333 = vmatprep.subr.mxu0 0.0
  %1334 = vmatpush1.msra.mxu0 0.0
  %1335 = vmatprep.subr.mxu0 0.0
  %1336 = vmatpush1.msra.mxu0 0.0
  %1337 = vmatprep.subr.mxu0 0.0
  %1338 = vmatpush1.msra.mxu0 0.0
  %1339 = vmatprep.subr.mxu0 0.0
  %1340 = vmatpush1.msra.mxu0 0.0
  %1341 = vmatprep.subr.mxu0 0.0
  %1342 = vmatpush1.msra.mxu0 0.0
  %1343 = vmatprep.subr.mxu0 0.0
  %1344 = vmatpush1.msra.mxu0 0.0
  %1345 = vmatprep.subr.mxu0 0.0
  %1346 = vmatpush1.msra.mxu0 0.0
  %1347 = vmatprep.subr.mxu0 0.0
  %1348 = vmatpush1.msra.mxu0 0.0
  %1349 = vmatprep.subr.mxu0 0.0
  %1350 = vmatpush1.msra.mxu0 0.0
  %1351 = vmatprep.subr.mxu0 0.0
  %1352 = vmatpush1.msra.mxu0 0.0
  %1353 = vmatprep.subr.mxu0 0.0
  %1354 = vmatpush1.msra.mxu0 0.0
  %1355 = vmatprep.subr.mxu0 0.0
  %1356 = vmatpush1.msra.mxu0 0.0
  %1357 = vmatprep.subr.mxu0 0.0
  %1358 = vmatpush1.msra.mxu0 0.0
  %1359 = vmatprep.subr.mxu0 0.0
  %1360 = vmatpush1.msra.mxu0 0.0
  %1361 = vmatprep.subr.mxu0 0.0
  %1362 = vmatpush1.msra.mxu0 0.0
  %1363 = vmatprep.subr.mxu0 0.0
  %1364 = vmatpush1.msra.mxu0 0.0
  %1365 = vmatprep.subr.mxu0 0.0
  %1366 = vmatpush1.msra.mxu0 0.0
  %1367 = vmatprep.subr.mxu0 0.0
  %1368 = vmatpush1.msra.mxu0 0.0
  %1369 = vmatprep.subr.mxu0 0.0
  %1370 = vmatpush1.msra.mxu0 0.0
  %1371 = vmatprep.subr.mxu0 0.0
  %1372 = vmatpush1.msra.mxu0 0.0
  %1373 = vmatprep.subr.mxu0 0.0
  %1374 = vmatpush1.msra.mxu0 0.0
  %1375 = vmatprep.subr.mxu0 0.0
  %1376 = vmatpush1.msra.mxu0 0.0
  %1377 = vmatprep.subr.mxu0 0.0
  %1378 = vmatpush1.msra.mxu0 0.0
  %1379 = vmatprep.subr.mxu0 0.0
  %1380 = vmatpush1.msra.mxu0 0.0
  %1381 = vmatprep.subr.mxu0 0.0
  %1382 = vmatpush1.msra.mxu0 0.0
  %1383 = vmatprep.subr.mxu0 0.0
  %1384 = vmatpush1.msra.mxu0 0.0
  %1385 = vmatprep.subr.mxu0 0.0
  %1386 = vmatpush1.msra.mxu0 0.0
  %1387 = vmatprep.subr.mxu0 0.0
  %1388 = vmatpush1.msra.mxu0 0.0
  %1389 = vmatprep.subr.mxu0 0.0
  %1390 = vmatpush1.msra.mxu0 0.0
  %1391 = vmatprep.mubr.f32.mxu0 0.0
  %1392 = vmatmul.mubr.f32.gmra.mrb[0].mxu0 %v1279
  %v1393 = vpop.f32.mrb[0].mxu0
  %v1394 = vadd.f32 0.0, %v1393
  %v1395 = vpop.f32.mrb[0].mxu0
  %1396 = vmatprep.mubr.f32.mxu0 0.0
  %1397 = vmatmul.mubr.f32.gmra.mrb[0].mxu0 %v1281
  %v1398 = vpop.f32.mrb[0].mxu0
  %v1399 = vadd.f32 0.0, %v1398
  %v1400 = vpop.f32.mrb[0].mxu0
  %1401 = vmatprep.mubr.f32.mxu0 0.0
  %1402 = vmatmul.mubr.f32.gmra.mrb[0].mxu0 %v1283
  %v1403 = vpop.f32.mrb[0].mxu0
  %v1404 = vadd.f32 0.0, %v1403
  %v1405 = vpop.f32.mrb[0].mxu0
  %1406 = vmatprep.mubr.f32.mxu0 0.0
  %1407 = vmatmul.mubr.f32.gmra.mrb[0].mxu0 %v1285
  %v1408 = vpop.f32.mrb[0].mxu0
  %v1409 = vadd.f32 0.0, %v1408
  %v1410 = vpop.f32.mrb[0].mxu0
  %1411 = vmatprep.mubr.f32.mxu0 0.0
  %1412 = vmatmul.mubr.f32.gmra.mrb[0].mxu0 %v1287
  %v1413 = vpop.f32.mrb[0].mxu0
  %v1414 = vadd.f32 0.0, %v1413
  %v1415 = vpop.f32.mrb[0].mxu0
  %1416 = vmatprep.mubr.f32.mxu0 0.0
  %1417 = vmatmul.mubr.f32.gmra.mrb[0].mxu0 %v1289
  %v1418 = vpop.f32.mrb[0].mxu0
  %v1419 = vadd.f32 0.0, %v1418
  %v1420 = vpop.f32.mrb[0].mxu0
  %1421 = vmatprep.mubr.f32.mxu0 0.0
  %1422 = vmatmul.mubr.f32.gmra.mrb[0].mxu0 %v1291
  %v1423 = vpop.f32.mrb[0].mxu0
  %v1424 = vadd.f32 0.0, %v1423
  %v1425 = vpop.f32.mrb[0].mxu0
  %1426 = vmatprep.mubr.f32.mxu0 0.0
  %1427 = vmatmul.mubr.f32.gmra.mrb[0].mxu0 %v1293
  %v1428 = vpop.f32.mrb[0].mxu0
  %v1429 = vadd.f32 0.0, %v1428
  %v1430 = vpop.f32.mrb[0].mxu0
  %1431 = vmatprep.mubr.f32.mxu0 0.0
  %1432 = vmatmul.mubr.f32.gmra.mrb[0].mxu0 %v1295
  %v1433 = vpop.f32.mrb[0].mxu0
  %v1434 = vadd.f32 0.0, %v1433
  %v1435 = vpop.f32.mrb[0].mxu0
  %1436 = vmatprep.mubr.f32.mxu0 0.0
  %1437 = vmatmul.mubr.f32.gmra.mrb[0].mxu0 %v1297
  %v1438 = vpop.f32.mrb[0].mxu0
  %v1439 = vadd.f32 0.0, %v1438
  %v1440 = vpop.f32.mrb[0].mxu0
  %1441 = vmatprep.mubr.f32.mxu0 0.0
  %1442 = vmatmul.mubr.f32.gmra.mrb[0].mxu0 %v1299
  %v1443 = vpop.f32.mrb[0].mxu0
  %v1444 = vadd.f32 0.0, %v1443
  %v1445 = vpop.f32.mrb[0].mxu0
  %1446 = vmatprep.mubr.f32.mxu0 0.0
  %1447 = vmatmul.mubr.f32.gmra.mrb[0].mxu0 %v1301
  %v1448 = vpop.f32.mrb[0].mxu0
  %v1449 = vadd.f32 0.0, %v1448
  %v1450 = vpop.f32.mrb[0].mxu0
  %1451 = vmatprep.mubr.f32.mxu0 0.0
  %1452 = vmatmul.mubr.f32.gmra.mrb[0].mxu0 %v1303
  %v1453 = vpop.f32.mrb[0].mxu0
  %v1454 = vadd.f32 0.0, %v1453
  %v1455 = vpop.f32.mrb[0].mxu0
  %1456 = vmatprep.mubr.f32.mxu0 0.0
  %1457 = vmatmul.mubr.f32.gmra.mrb[0].mxu0 %v1305
  %v1458 = vpop.f32.mrb[0].mxu0
  %v1459 = vadd.f32 0.0, %v1458
  %v1460 = vpop.f32.mrb[0].mxu0
  %1461 = vmatprep.mubr.f32.mxu0 0.0
  %1462 = vmatmul.mubr.f32.gmra.mrb[0].mxu0 %v1307
  %v1463 = vpop.f32.mrb[0].mxu0
  %v1464 = vadd.f32 0.0, %v1463
  %v1465 = vpop.f32.mrb[0].mxu0
  %1466 = vmatprep.mubr.f32.mxu0 0.0
  %1467 = vmatmul.mubr.f32.gmra.mrb[0].mxu0 %v1309
  %v1468 = vpop.f32.mrb[0].mxu0
  %v1469 = vadd.f32 0.0, %v1468
  %v1470 = vpop.f32.mrb[0].mxu0
  %1471 = vmatprep.mubr.f32.mxu0 0.0
  %1472 = vmatmul.mubr.f32.gmra.mrb[0].mxu0 %v1311
  %v1473 = vpop.f32.mrb[0].mxu0
  %v1474 = vadd.f32 0.0, %v1473
  %v1475 = vpop.f32.mrb[0].mxu0
  %1476 = vmatprep.mubr.f32.mxu0 0.0
  %1477 = vmatmul.mubr.f32.gmra.mrb[0].mxu0 %v1313
  %v1478 = vpop.f32.mrb[0].mxu0
  %v1479 = vadd.f32 0.0, %v1478
  %v1480 = vpop.f32.mrb[0].mxu0
  %1481 = vmatprep.mubr.f32.mxu0 0.0
  %1482 = vmatmul.mubr.f32.gmra.mrb[0].mxu0 %v1315
  %v1483 = vpop.f32.mrb[0].mxu0
  %v1484 = vadd.f32 0.0, %v1483
  %v1485 = vpop.f32.mrb[0].mxu0
  %1486 = vmatprep.mubr.f32.mxu0 0.0
  %1487 = vmatmul.mubr.f32.gmra.mrb[0].mxu0 %v1317
  %v1488 = vpop.f32.mrb[0].mxu0
  %v1489 = vadd.f32 0.0, %v1488
  %v1490 = vpop.f32.mrb[0].mxu0
  %1491 = vmatprep.mubr.f32.mxu0 0.0
  %1492 = vmatmul.mubr.f32.gmra.mrb[0].mxu0 %v1319
  %v1493 = vpop.f32.mrb[0].mxu0
  %v1494 = vadd.f32 0.0, %v1493
  %v1495 = vpop.f32.mrb[0].mxu0
  %1496 = vmatprep.mubr.f32.mxu0 0.0
  %1497 = vmatmul.mubr.f32.gmra.mrb[0].mxu0 %v1321
  %v1498 = vpop.f32.mrb[0].mxu0
  %v1499 = vadd.f32 0.0, %v1498
  %v1500 = vpop.f32.mrb[0].mxu0
  %1501 = vmatprep.mubr.f32.mxu0 0.0
  %1502 = vmatmul.mubr.f32.gmra.mrb[0].mxu0 %v1323
  %v1503 = vpop.f32.mrb[0].mxu0
  %v1504 = vadd.f32 0.0, %v1503
  %v1505 = vpop.f32.mrb[0].mxu0
  %1506 = vmatprep.mubr.f32.mxu0 0.0
  %1507 = vmatmul.mubr.f32.gmra.mrb[0].mxu0 %v1325
  %v1508 = vpop.f32.mrb[0].mxu0
  %v1509 = vadd.f32 0.0, %v1508
  %v1510 = vpop.f32.mrb[0].mxu0
  %1511 = vdwg.mxu0
  %v1512 = vadd.f32 %v1129, %v1394
  %v1513 = vadd.f32 %v1130, %v1399
  %v1514 = vadd.f32 %v1131, %v1404
  %v1515 = vadd.f32 %v1132, %v1409
  %v1516 = vadd.f32 %v1133, %v1414
  %v1517 = vadd.f32 %v1134, %v1419
  %v1518 = vadd.f32 %v1135, %v1424
  %v1519 = vadd.f32 %v1136, %v1429
  %v1520 = vadd.f32 %v1137, %v1434
  %v1521 = vadd.f32 %v1138, %v1439
  %v1522 = vadd.f32 %v1139, %v1444
  %v1523 = vadd.f32 %v1140, %v1449
  %v1524 = vadd.f32 %v1141, %v1454
  %v1525 = vadd.f32 %v1142, %v1459
  %v1526 = vadd.f32 %v1143, %v1464
  %v1527 = vadd.f32 %v1144, %v1469
  %v1528 = vadd.f32 %v1145, %v1474
  %v1529 = vadd.f32 %v1146, %v1479
  %v1530 = vadd.f32 %v1147, %v1484
  %v1531 = vadd.f32 %v1148, %v1489
  %v1532 = vadd.f32 %v1149, %v1494
  %v1533 = vadd.f32 %v1150, %v1499
  %v1534 = vadd.f32 %v1151, %v1504
  %v1535 = vadd.f32 %v1152, %v1509
  %1540 = vrot.lane.b32.xlu0 %v1153, 112
  %v1541 = vpop.permute.xlu0 %1540
  %1542 = vrot.lane.b32.xlu0 %v1154, 112
  %v1543 = vpop.permute.xlu0 %1542
  %1544 = vrot.lane.b32.xlu0 %v1155, 112
  %v1545 = vpop.permute.xlu0 %1544
  %1546 = vrot.lane.b32.xlu0 %v1156, 112
  %v1547 = vpop.permute.xlu0 %1546
  %1548 = vrot.lane.b32.xlu0 %v1157, 112
  %v1549 = vpop.permute.xlu0 %1548
  %v1554 = vsel %vm40, %v1549, 0
  %1556 = vmatprep.subr.mxu0 0.0
  %1557 = vmatpush1.msra.mxu0 %v1541
  %1558 = vmatprep.subr.mxu0 0.0
  %1559 = vmatpush1.msra.mxu0 %v1543
  %1560 = vmatprep.subr.mxu0 0.0
  %1561 = vmatpush1.msra.mxu0 %v1545
  %1562 = vmatprep.subr.mxu0 0.0
  %1563 = vmatpush1.msra.mxu0 %v1547
  %1564 = vmatprep.subr.mxu0 0.0
  %1565 = vmatpush1.msra.mxu0 %v1554
  %1566 = vmatprep.subr.mxu0 0.0
  %1567 = vmatpush1.msra.mxu0 0.0
  %1568 = vmatprep.subr.mxu0 0.0
  %1569 = vmatpush1.msra.mxu0 0.0
  %1570 = vmatprep.subr.mxu0 0.0
  %1571 = vmatpush1.msra.mxu0 0.0
  %1572 = vmatprep.subr.mxu0 0.0
  %1573 = vmatpush1.msra.mxu0 0.0
  %1574 = vmatprep.subr.mxu0 0.0
  %1575 = vmatpush1.msra.mxu0 0.0
  %1576 = vmatprep.subr.mxu0 0.0
  %1577 = vmatpush1.msra.mxu0 0.0
  %1578 = vmatprep.subr.mxu0 0.0
  %1579 = vmatpush1.msra.mxu0 0.0
  %1580 = vmatprep.subr.mxu0 0.0
  %1581 = vmatpush1.msra.mxu0 0.0
  %1582 = vmatprep.subr.mxu0 0.0
  %1583 = vmatpush1.msra.mxu0 0.0
  %1584 = vmatprep.subr.mxu0 0.0
  %1585 = vmatpush1.msra.mxu0 0.0
  %1586 = vmatprep.subr.mxu0 0.0
  %1587 = vmatpush1.msra.mxu0 0.0
  %1588 = vmatprep.subr.mxu0 0.0
  %1589 = vmatpush1.msra.mxu0 0.0
  %1590 = vmatprep.subr.mxu0 0.0
  %1591 = vmatpush1.msra.mxu0 0.0
  %1592 = vmatprep.subr.mxu0 0.0
  %1593 = vmatpush1.msra.mxu0 0.0
  %1594 = vmatprep.subr.mxu0 0.0
  %1595 = vmatpush1.msra.mxu0 0.0
  %1596 = vmatprep.subr.mxu0 0.0
  %1597 = vmatpush1.msra.mxu0 0.0
  %1598 = vmatprep.subr.mxu0 0.0
  %1599 = vmatpush1.msra.mxu0 0.0
  %1600 = vmatprep.subr.mxu0 0.0
  %1601 = vmatpush1.msra.mxu0 0.0
  %1602 = vmatprep.subr.mxu0 0.0
  %1603 = vmatpush1.msra.mxu0 0.0
  %1604 = vmatprep.subr.mxu0 0.0
  %1605 = vmatpush1.msra.mxu0 0.0
  %1606 = vmatprep.subr.mxu0 0.0
  %1607 = vmatpush1.msra.mxu0 0.0
  %1608 = vmatprep.subr.mxu0 0.0
  %1609 = vmatpush1.msra.mxu0 0.0
  %1610 = vmatprep.subr.mxu0 0.0
  %1611 = vmatpush1.msra.mxu0 0.0
  %1612 = vmatprep.subr.mxu0 0.0
  %1613 = vmatpush1.msra.mxu0 0.0
  %1614 = vmatprep.subr.mxu0 0.0
  %1615 = vmatpush1.msra.mxu0 0.0
  %1616 = vmatprep.subr.mxu0 0.0
  %1617 = vmatpush1.msra.mxu0 0.0
  %1618 = vmatprep.subr.mxu0 0.0
  %1619 = vmatpush1.msra.mxu0 0.0
  %1620 = vmatprep.mubr.f32.mxu0 0.0
  %1621 = vmatmul.mubr.f32.gmra.mrb[0].mxu0 %v38
  %v1622 = vpop.f32.mrb[0].mxu0
  %v1623 = vadd.f32 0.0, %v1622
  %v1624 = vpop.f32.mrb[0].mxu0
  %1625 = vdwg.mxu0
  %1626 = vrot.lane.b32.xlu0 %v113, 96
  %v1627 = vpop.permute.xlu0 %1626
  %1628 = vrot.lane.b32.xlu0 %v114, 96
  %v1629 = vpop.permute.xlu0 %1628
  %1630 = vrot.lane.b32.xlu0 %v115, 96
  %v1631 = vpop.permute.xlu0 %1630
  %1632 = vrot.lane.b32.xlu0 %v116, 96
  %v1633 = vpop.permute.xlu0 %1632
  %1634 = vrot.lane.b32.xlu0 %v117, 96
  %v1635 = vpop.permute.xlu0 %1634
  %1636 = vrot.lane.b32.xlu0 %v118, 96
  %v1637 = vpop.permute.xlu0 %1636
  %1638 = vrot.lane.b32.xlu0 %v119, 96
  %v1639 = vpop.permute.xlu0 %1638
  %1640 = vrot.lane.b32.xlu0 %v120, 96
  %v1641 = vpop.permute.xlu0 %1640
  %1642 = vrot.lane.b32.xlu0 %v121, 96
  %v1643 = vpop.permute.xlu0 %1642
  %1644 = vrot.lane.b32.xlu0 %v122, 96
  %v1645 = vpop.permute.xlu0 %1644
  %1646 = vrot.lane.b32.xlu0 %v123, 96
  %v1647 = vpop.permute.xlu0 %1646
  %1648 = vrot.lane.b32.xlu0 %v124, 96
  %v1649 = vpop.permute.xlu0 %1648
  %1650 = vrot.lane.b32.xlu0 %v125, 96
  %v1651 = vpop.permute.xlu0 %1650
  %1652 = vrot.lane.b32.xlu0 %v126, 96
  %v1653 = vpop.permute.xlu0 %1652
  %1654 = vrot.lane.b32.xlu0 %v127, 96
  %v1655 = vpop.permute.xlu0 %1654
  %1656 = vrot.lane.b32.xlu0 %v128, 96
  %v1657 = vpop.permute.xlu0 %1656
  %1658 = vrot.lane.b32.xlu0 %v129, 96
  %v1659 = vpop.permute.xlu0 %1658
  %1660 = vrot.lane.b32.xlu0 %v130, 96
  %v1661 = vpop.permute.xlu0 %1660
  %1662 = vrot.lane.b32.xlu0 %v131, 96
  %v1663 = vpop.permute.xlu0 %1662
  %1664 = vrot.lane.b32.xlu0 %v132, 96
  %v1665 = vpop.permute.xlu0 %1664
  %1666 = vrot.lane.b32.xlu0 %v133, 96
  %v1667 = vpop.permute.xlu0 %1666
  %1668 = vrot.lane.b32.xlu0 %v134, 96
  %v1669 = vpop.permute.xlu0 %1668
  %1670 = vrot.lane.b32.xlu0 %v135, 96
  %v1671 = vpop.permute.xlu0 %1670
  %1672 = vrot.lane.b32.xlu0 %v136, 96
  %v1673 = vpop.permute.xlu0 %1672
  %v1674 = vsel %vm295, %v1627, 0
  %v1676 = vsel %vm295, %v1629, 0
  %v1678 = vsel %vm295, %v1631, 0
  %v1680 = vsel %vm295, %v1633, 0
  %v1682 = vsel %vm295, %v1635, 0
  %v1684 = vsel %vm295, %v1637, 0
  %v1686 = vsel %vm295, %v1639, 0
  %v1688 = vsel %vm295, %v1641, 0
  %v1690 = vsel %vm295, %v1643, 0
  %v1692 = vsel %vm295, %v1645, 0
  %v1694 = vsel %vm295, %v1647, 0
  %v1696 = vsel %vm295, %v1649, 0
  %v1698 = vsel %vm295, %v1651, 0
  %v1700 = vsel %vm295, %v1653, 0
  %v1702 = vsel %vm295, %v1655, 0
  %v1704 = vsel %vm295, %v1657, 0
  %v1706 = vsel %vm295, %v1659, 0
  %v1708 = vsel %vm295, %v1661, 0
  %v1710 = vsel %vm295, %v1663, 0
  %v1712 = vsel %vm295, %v1665, 0
  %v1714 = vsel %vm295, %v1667, 0
  %v1716 = vsel %vm295, %v1669, 0
  %v1718 = vsel %vm295, %v1671, 0
  %v1720 = vsel %vm295, %v1673, 0
  %1722 = vmatprep.subr.mxu0 0.0
  %1723 = vmatpush1.msra.mxu0 %v1623
  %1724 = vmatprep.subr.mxu0 0.0
  %1725 = vmatpush1.msra.mxu0 0.0
  %1726 = vmatprep.subr.mxu0 0.0
  %1727 = vmatpush1.msra.mxu0 0.0
  %1728 = vmatprep.subr.mxu0 0.0
  %1729 = vmatpush1.msra.mxu0 0.0
  %1730 = vmatprep.subr.mxu0 0.0
  %1731 = vmatpush1.msra.mxu0 0.0
  %1732 = vmatprep.subr.mxu0 0.0
  %1733 = vmatpush1.msra.mxu0 0.0
  %1734 = vmatprep.subr.mxu0 0.0
  %1735 = vmatpush1.msra.mxu0 0.0
  %1736 = vmatprep.subr.mxu0 0.0
  %1737 = vmatpush1.msra.mxu0 0.0
  %1738 = vmatprep.subr.mxu0 0.0
  %1739 = vmatpush1.msra.mxu0 0.0
  %1740 = vmatprep.subr.mxu0 0.0
  %1741 = vmatpush1.msra.mxu0 0.0
  %1742 = vmatprep.subr.mxu0 0.0
  %1743 = vmatpush1.msra.mxu0 0.0
  %1744 = vmatprep.subr.mxu0 0.0
  %1745 = vmatpush1.msra.mxu0 0.0
  %1746 = vmatprep.subr.mxu0 0.0
  %1747 = vmatpush1.msra.mxu0 0.0
  %1748 = vmatprep.subr.mxu0 0.0
  %1749 = vmatpush1.msra.mxu0 0.0
  %1750 = vmatprep.subr.mxu0 0.0
  %1751 = vmatpush1.msra.mxu0 0.0
  %1752 = vmatprep.subr.mxu0 0.0
  %1753 = vmatpush1.msra.mxu0 0.0
  %1754 = vmatprep.subr.mxu0 0.0
  %1755 = vmatpush1.msra.mxu0 0.0
  %1756 = vmatprep.subr.mxu0 0.0
  %1757 = vmatpush1.msra.mxu0 0.0
  %1758 = vmatprep.subr.mxu0 0.0
  %1759 = vmatpush1.msra.mxu0 0.0
  %1760 = vmatprep.subr.mxu0 0.0
  %1761 = vmatpush1.msra.mxu0 0.0
  %1762 = vmatprep.subr.mxu0 0.0
  %1763 = vmatpush1.msra.mxu0 0.0
  %1764 = vmatprep.subr.mxu0 0.0
  %1765 = vmatpush1.msra.mxu0 0.0
  %1766 = vmatprep.subr.mxu0 0.0
  %1767 = vmatpush1.msra.mxu0 0.0
  %1768 = vmatprep.subr.mxu0 0.0
  %1769 = vmatpush1.msra.mxu0 0.0
  %1770 = vmatprep.subr.mxu0 0.0
  %1771 = vmatpush1.msra.mxu0 0.0
  %1772 = vmatprep.subr.mxu0 0.0
  %1773 = vmatpush1.msra.mxu0 0.0
  %1774 = vmatprep.subr.mxu0 0.0
  %1775 = vmatpush1.msra.mxu0 0.0
  %1776 = vmatprep.subr.mxu0 0.0
  %1777 = vmatpush1.msra.mxu0 0.0
  %1778 = vmatprep.subr.mxu0 0.0
  %1779 = vmatpush1.msra.mxu0 0.0
  %1780 = vmatprep.subr.mxu0 0.0
  %1781 = vmatpush1.msra.mxu0 0.0
  %1782 = vmatprep.subr.mxu0 0.0
  %1783 = vmatpush1.msra.mxu0 0.0
  %1784 = vmatprep.subr.mxu0 0.0
  %1785 = vmatpush1.msra.mxu0 0.0
  %1786 = vmatprep.mubr.f32.mxu0 0.0
  %1787 = vmatmul.mubr.f32.gmra.mrb[0].mxu0 %v1674
  %v1788 = vpop.f32.mrb[0].mxu0
  %v1789 = vadd.f32 0.0, %v1788
  %v1790 = vpop.f32.mrb[0].mxu0
  %1791 = vmatprep.mubr.f32.mxu0 0.0
  %1792 = vmatmul.mubr.f32.gmra.mrb[0].mxu0 %v1676
  %v1793 = vpop.f32.mrb[0].mxu0
  %v1794 = vadd.f32 0.0, %v1793
  %v1795 = vpop.f32.mrb[0].mxu0
  %1796 = vmatprep.mubr.f32.mxu0 0.0
  %1797 = vmatmul.mubr.f32.gmra.mrb[0].mxu0 %v1678
  %v1798 = vpop.f32.mrb[0].mxu0
  %v1799 = vadd.f32 0.0, %v1798
  %v1800 = vpop.f32.mrb[0].mxu0
  %1801 = vmatprep.mubr.f32.mxu0 0.0
  %1802 = vmatmul.mubr.f32.gmra.mrb[0].mxu0 %v1680
  %v1803 = vpop.f32.mrb[0].mxu0
  %v1804 = vadd.f32 0.0, %v1803
  %v1805 = vpop.f32.mrb[0].mxu0
  %1806 = vmatprep.mubr.f32.mxu0 0.0
  %1807 = vmatmul.mubr.f32.gmra.mrb[0].mxu0 %v1682
  %v1808 = vpop.f32.mrb[0].mxu0
  %v1809 = vadd.f32 0.0, %v1808
  %v1810 = vpop.f32.mrb[0].mxu0
  %1811 = vmatprep.mubr.f32.mxu0 0.0
  %1812 = vmatmul.mubr.f32.gmra.mrb[0].mxu0 %v1684
  %v1813 = vpop.f32.mrb[0].mxu0
  %v1814 = vadd.f32 0.0, %v1813
  %v1815 = vpop.f32.mrb[0].mxu0
  %1816 = vmatprep.mubr.f32.mxu0 0.0
  %1817 = vmatmul.mubr.f32.gmra.mrb[0].mxu0 %v1686
  %v1818 = vpop.f32.mrb[0].mxu0
  %v1819 = vadd.f32 0.0, %v1818
  %v1820 = vpop.f32.mrb[0].mxu0
  %1821 = vmatprep.mubr.f32.mxu0 0.0
  %1822 = vmatmul.mubr.f32.gmra.mrb[0].mxu0 %v1688
  %v1823 = vpop.f32.mrb[0].mxu0
  %v1824 = vadd.f32 0.0, %v1823
  %v1825 = vpop.f32.mrb[0].mxu0
  %1826 = vmatprep.mubr.f32.mxu0 0.0
  %1827 = vmatmul.mubr.f32.gmra.mrb[0].mxu0 %v1690
  %v1828 = vpop.f32.mrb[0].mxu0
  %v1829 = vadd.f32 0.0, %v1828
  %v1830 = vpop.f32.mrb[0].mxu0
  %1831 = vmatprep.mubr.f32.mxu0 0.0
  %1832 = vmatmul.mubr.f32.gmra.mrb[0].mxu0 %v1692
  %v1833 = vpop.f32.mrb[0].mxu0
  %v1834 = vadd.f32 0.0, %v1833
  %v1835 = vpop.f32.mrb[0].mxu0
  %1836 = vmatprep.mubr.f32.mxu0 0.0
  %1837 = vmatmul.mubr.f32.gmra.mrb[0].mxu0 %v1694
  %v1838 = vpop.f32.mrb[0].mxu0
  %v1839 = vadd.f32 0.0, %v1838
  %v1840 = vpop.f32.mrb[0].mxu0
  %1841 = vmatprep.mubr.f32.mxu0 0.0
  %1842 = vmatmul.mubr.f32.gmra.mrb[0].mxu0 %v1696
  %v1843 = vpop.f32.mrb[0].mxu0
  %v1844 = vadd.f32 0.0, %v1843
  %v1845 = vpop.f32.mrb[0].mxu0
  %1846 = vmatprep.mubr.f32.mxu0 0.0
  %1847 = vmatmul.mubr.f32.gmra.mrb[0].mxu0 %v1698
  %v1848 = vpop.f32.mrb[0].mxu0
  %v1849 = vadd.f32 0.0, %v1848
  %v1850 = vpop.f32.mrb[0].mxu0
  %1851 = vmatprep.mubr.f32.mxu0 0.0
  %1852 = vmatmul.mubr.f32.gmra.mrb[0].mxu0 %v1700
  %v1853 = vpop.f32.mrb[0].mxu0
  %v1854 = vadd.f32 0.0, %v1853
  %v1855 = vpop.f32.mrb[0].mxu0
  %1856 = vmatprep.mubr.f32.mxu0 0.0
  %1857 = vmatmul.mubr.f32.gmra.mrb[0].mxu0 %v1702
  %v1858 = vpop.f32.mrb[0].mxu0
  %v1859 = vadd.f32 0.0, %v1858
  %v1860 = vpop.f32.mrb[0].mxu0
  %1861 = vmatprep.mubr.f32.mxu0 0.0
  %1862 = vmatmul.mubr.f32.gmra.mrb[0].mxu0 %v1704
  %v1863 = vpop.f32.mrb[0].mxu0
  %v1864 = vadd.f32 0.0, %v1863
  %v1865 = vpop.f32.mrb[0].mxu0
  %1866 = vmatprep.mubr.f32.mxu0 0.0
  %1867 = vmatmul.mubr.f32.gmra.mrb[0].mxu0 %v1706
  %v1868 = vpop.f32.mrb[0].mxu0
  %v1869 = vadd.f32 0.0, %v1868
  %v1870 = vpop.f32.mrb[0].mxu0
  %1871 = vmatprep.mubr.f32.mxu0 0.0
  %1872 = vmatmul.mubr.f32.gmra.mrb[0].mxu0 %v1708
  %v1873 = vpop.f32.mrb[0].mxu0
  %v1874 = vadd.f32 0.0, %v1873
  %v1875 = vpop.f32.mrb[0].mxu0
  %1876 = vmatprep.mubr.f32.mxu0 0.0
  %1877 = vmatmul.mubr.f32.gmra.mrb[0].mxu0 %v1710
  %v1878 = vpop.f32.mrb[0].mxu0
  %v1879 = vadd.f32 0.0, %v1878
  %v1880 = vpop.f32.mrb[0].mxu0
  %1881 = vmatprep.mubr.f32.mxu0 0.0
  %1882 = vmatmul.mubr.f32.gmra.mrb[0].mxu0 %v1712
  %v1883 = vpop.f32.mrb[0].mxu0
  %v1884 = vadd.f32 0.0, %v1883
  %v1885 = vpop.f32.mrb[0].mxu0
  %1886 = vmatprep.mubr.f32.mxu0 0.0
  %1887 = vmatmul.mubr.f32.gmra.mrb[0].mxu0 %v1714
  %v1888 = vpop.f32.mrb[0].mxu0
  %v1889 = vadd.f32 0.0, %v1888
  %v1890 = vpop.f32.mrb[0].mxu0
  %1891 = vmatprep.mubr.f32.mxu0 0.0
  %1892 = vmatmul.mubr.f32.gmra.mrb[0].mxu0 %v1716
  %v1893 = vpop.f32.mrb[0].mxu0
  %v1894 = vadd.f32 0.0, %v1893
  %v1895 = vpop.f32.mrb[0].mxu0
  %1896 = vmatprep.mubr.f32.mxu0 0.0
  %1897 = vmatmul.mubr.f32.gmra.mrb[0].mxu0 %v1718
  %v1898 = vpop.f32.mrb[0].mxu0
  %v1899 = vadd.f32 0.0, %v1898
  %v1900 = vpop.f32.mrb[0].mxu0
  %1901 = vmatprep.mubr.f32.mxu0 0.0
  %1902 = vmatmul.mubr.f32.gmra.mrb[0].mxu0 %v1720
  %v1903 = vpop.f32.mrb[0].mxu0
  %v1904 = vadd.f32 0.0, %v1903
  %v1905 = vpop.f32.mrb[0].mxu0
  %1906 = vdwg.mxu0
  %v1907 = vadd.f32 %v1512, %v1789
  %v1908 = vadd.f32 %v1513, %v1794
  %v1909 = vadd.f32 %v1514, %v1799
  %v1910 = vadd.f32 %v1515, %v1804
  %v1911 = vadd.f32 %v1516, %v1809
  %v1912 = vadd.f32 %v1517, %v1814
  %v1913 = vadd.f32 %v1518, %v1819
  %v1914 = vadd.f32 %v1519, %v1824
  %v1915 = vadd.f32 %v1520, %v1829
  %v1916 = vadd.f32 %v1521, %v1834
  %v1917 = vadd.f32 %v1522, %v1839
  %v1918 = vadd.f32 %v1523, %v1844
  %v1919 = vadd.f32 %v1524, %v1849
  %v1920 = vadd.f32 %v1525, %v1854
  %v1921 = vadd.f32 %v1526, %v1859
  %v1922 = vadd.f32 %v1527, %v1864
  %v1923 = vadd.f32 %v1528, %v1869
  %v1924 = vadd.f32 %v1529, %v1874
  %v1925 = vadd.f32 %v1530, %v1879
  %v1926 = vadd.f32 %v1531, %v1884
  %v1927 = vadd.f32 %v1532, %v1889
  %v1928 = vadd.f32 %v1533, %v1894
  %v1929 = vadd.f32 %v1534, %v1899
  %v1930 = vadd.f32 %v1535, %v1904
  %1931 = vrot.lane.b32.xlu0 %v1153, 96
  %v1932 = vpop.permute.xlu0 %1931
  %1933 = vrot.lane.b32.xlu0 %v1154, 96
  %v1934 = vpop.permute.xlu0 %1933
  %1935 = vrot.lane.b32.xlu0 %v1155, 96
  %v1936 = vpop.permute.xlu0 %1935
  %1937 = vrot.lane.b32.xlu0 %v1156, 96
  %v1938 = vpop.permute.xlu0 %1937
  %1939 = vrot.lane.b32.xlu0 %v1157, 96
  %v1940 = vpop.permute.xlu0 %1939
  %v1945 = vsel %vm40, %v1940, 0
  %1947 = vmatprep.subr.mxu0 0.0
  %1948 = vmatpush1.msra.mxu0 %v1932
  %1949 = vmatprep.subr.mxu0 0.0
  %1950 = vmatpush1.msra.mxu0 %v1934
  %1951 = vmatprep.subr.mxu0 0.0
  %1952 = vmatpush1.msra.mxu0 %v1936
  %1953 = vmatprep.subr.mxu0 0.0
  %1954 = vmatpush1.msra.mxu0 %v1938
  %1955 = vmatprep.subr.mxu0 0.0
  %1956 = vmatpush1.msra.mxu0 %v1945
  %1957 = vmatprep.subr.mxu0 0.0
  %1958 = vmatpush1.msra.mxu0 0.0
  %1959 = vmatprep.subr.mxu0 0.0
  %1960 = vmatpush1.msra.mxu0 0.0
  %1961 = vmatprep.subr.mxu0 0.0
  %1962 = vmatpush1.msra.mxu0 0.0
  %1963 = vmatprep.subr.mxu0 0.0
  %1964 = vmatpush1.msra.mxu0 0.0
  %1965 = vmatprep.subr.mxu0 0.0
  %1966 = vmatpush1.msra.mxu0 0.0
  %1967 = vmatprep.subr.mxu0 0.0
  %1968 = vmatpush1.msra.mxu0 0.0
  %1969 = vmatprep.subr.mxu0 0.0
  %1970 = vmatpush1.msra.mxu0 0.0
  %1971 = vmatprep.subr.mxu0 0.0
  %1972 = vmatpush1.msra.mxu0 0.0
  %1973 = vmatprep.subr.mxu0 0.0
  %1974 = vmatpush1.msra.mxu0 0.0
  %1975 = vmatprep.subr.mxu0 0.0
  %1976 = vmatpush1.msra.mxu0 0.0
  %1977 = vmatprep.subr.mxu0 0.0
  %1978 = vmatpush1.msra.mxu0 0.0
  %1979 = vmatprep.subr.mxu0 0.0
  %1980 = vmatpush1.msra.mxu0 0.0
  %1981 = vmatprep.subr.mxu0 0.0
  %1982 = vmatpush1.msra.mxu0 0.0
  %1983 = vmatprep.subr.mxu0 0.0
  %1984 = vmatpush1.msra.mxu0 0.0
  %1985 = vmatprep.subr.mxu0 0.0
  %1986 = vmatpush1.msra.mxu0 0.0
  %1987 = vmatprep.subr.mxu0 0.0
  %1988 = vmatpush1.msra.mxu0 0.0
  %1989 = vmatprep.subr.mxu0 0.0
  %1990 = vmatpush1.msra.mxu0 0.0
  %1991 = vmatprep.subr.mxu0 0.0
  %1992 = vmatpush1.msra.mxu0 0.0
  %1993 = vmatprep.subr.mxu0 0.0
  %1994 = vmatpush1.msra.mxu0 0.0
  %1995 = vmatprep.subr.mxu0 0.0
  %1996 = vmatpush1.msra.mxu0 0.0
  %1997 = vmatprep.subr.mxu0 0.0
  %1998 = vmatpush1.msra.mxu0 0.0
  %1999 = vmatprep.subr.mxu0 0.0
  %2000 = vmatpush1.msra.mxu0 0.0
  %2001 = vmatprep.subr.mxu0 0.0
  %2002 = vmatpush1.msra.mxu0 0.0
  %2003 = vmatprep.subr.mxu0 0.0
  %2004 = vmatpush1.msra.mxu0 0.0
  %2005 = vmatprep.subr.mxu0 0.0
  %2006 = vmatpush1.msra.mxu0 0.0
  %2007 = vmatprep.subr.mxu0 0.0
  %2008 = vmatpush1.msra.mxu0 0.0
  %2009 = vmatprep.subr.mxu0 0.0
  %2010 = vmatpush1.msra.mxu0 0.0
  %2011 = vmatprep.mubr.f32.mxu0 0.0
  %2012 = vmatmul.mubr.f32.gmra.mrb[0].mxu0 %v38
  %v2013 = vpop.f32.mrb[0].mxu0
  %v2014 = vadd.f32 0.0, %v2013
  %v2015 = vpop.f32.mrb[0].mxu0
  %2016 = vdwg.mxu0
  %2017 = vrot.lane.b32.xlu0 %v113, 88
  %v2018 = vpop.permute.xlu0 %2017
  %2019 = vrot.lane.b32.xlu0 %v114, 88
  %v2020 = vpop.permute.xlu0 %2019
  %2021 = vrot.lane.b32.xlu0 %v115, 88
  %v2022 = vpop.permute.xlu0 %2021
  %2023 = vrot.lane.b32.xlu0 %v116, 88
  %v2024 = vpop.permute.xlu0 %2023
  %2025 = vrot.lane.b32.xlu0 %v117, 88
  %v2026 = vpop.permute.xlu0 %2025
  %2027 = vrot.lane.b32.xlu0 %v118, 88
  %v2028 = vpop.permute.xlu0 %2027
  %2029 = vrot.lane.b32.xlu0 %v119, 88
  %v2030 = vpop.permute.xlu0 %2029
  %2031 = vrot.lane.b32.xlu0 %v120, 88
  %v2032 = vpop.permute.xlu0 %2031
  %2033 = vrot.lane.b32.xlu0 %v121, 88
  %v2034 = vpop.permute.xlu0 %2033
  %2035 = vrot.lane.b32.xlu0 %v122, 88
  %v2036 = vpop.permute.xlu0 %2035
  %2037 = vrot.lane.b32.xlu0 %v123, 88
  %v2038 = vpop.permute.xlu0 %2037
  %2039 = vrot.lane.b32.xlu0 %v124, 88
  %v2040 = vpop.permute.xlu0 %2039
  %2041 = vrot.lane.b32.xlu0 %v125, 88
  %v2042 = vpop.permute.xlu0 %2041
  %2043 = vrot.lane.b32.xlu0 %v126, 88
  %v2044 = vpop.permute.xlu0 %2043
  %2045 = vrot.lane.b32.xlu0 %v127, 88
  %v2046 = vpop.permute.xlu0 %2045
  %2047 = vrot.lane.b32.xlu0 %v128, 88
  %v2048 = vpop.permute.xlu0 %2047
  %2049 = vrot.lane.b32.xlu0 %v129, 88
  %v2050 = vpop.permute.xlu0 %2049
  %2051 = vrot.lane.b32.xlu0 %v130, 88
  %v2052 = vpop.permute.xlu0 %2051
  %2053 = vrot.lane.b32.xlu0 %v131, 88
  %v2054 = vpop.permute.xlu0 %2053
  %2055 = vrot.lane.b32.xlu0 %v132, 88
  %v2056 = vpop.permute.xlu0 %2055
  %2057 = vrot.lane.b32.xlu0 %v133, 88
  %v2058 = vpop.permute.xlu0 %2057
  %2059 = vrot.lane.b32.xlu0 %v134, 88
  %v2060 = vpop.permute.xlu0 %2059
  %2061 = vrot.lane.b32.xlu0 %v135, 88
  %v2062 = vpop.permute.xlu0 %2061
  %2063 = vrot.lane.b32.xlu0 %v136, 88
  %v2064 = vpop.permute.xlu0 %2063
  %v2065 = vsel %vm295, %v2018, 0
  %v2067 = vsel %vm295, %v2020, 0
  %v2069 = vsel %vm295, %v2022, 0
  %v2071 = vsel %vm295, %v2024, 0
  %v2073 = vsel %vm295, %v2026, 0
  %v2075 = vsel %vm295, %v2028, 0
  %v2077 = vsel %vm295, %v2030, 0
  %v2079 = vsel %vm295, %v2032, 0
  %v2081 = vsel %vm295, %v2034, 0
  %v2083 = vsel %vm295, %v2036, 0
  %v2085 = vsel %vm295, %v2038, 0
  %v2087 = vsel %vm295, %v2040, 0
  %v2089 = vsel %vm295, %v2042, 0
  %v2091 = vsel %vm295, %v2044, 0
  %v2093 = vsel %vm295, %v2046, 0
  %v2095 = vsel %vm295, %v2048, 0
  %v2097 = vsel %vm295, %v2050, 0
  %v2099 = vsel %vm295, %v2052, 0
  %v2101 = vsel %vm295, %v2054, 0
  %v2103 = vsel %vm295, %v2056, 0
  %v2105 = vsel %vm295, %v2058, 0
  %v2107 = vsel %vm295, %v2060, 0
  %v2109 = vsel %vm295, %v2062, 0
  %v2111 = vsel %vm295, %v2064, 0
  %2113 = vmatprep.subr.mxu0 0.0
  %2114 = vmatpush1.msra.mxu0 %v2014
  %2115 = vmatprep.subr.mxu0 0.0
  %2116 = vmatpush1.msra.mxu0 0.0
  %2117 = vmatprep.subr.mxu0 0.0
  %2118 = vmatpush1.msra.mxu0 0.0
  %2119 = vmatprep.subr.mxu0 0.0
  %2120 = vmatpush1.msra.mxu0 0.0
  %2121 = vmatprep.subr.mxu0 0.0
  %2122 = vmatpush1.msra.mxu0 0.0
  %2123 = vmatprep.subr.mxu0 0.0
  %2124 = vmatpush1.msra.mxu0 0.0
  %2125 = vmatprep.subr.mxu0 0.0
  %2126 = vmatpush1.msra.mxu0 0.0
  %2127 = vmatprep.subr.mxu0 0.0
  %2128 = vmatpush1.msra.mxu0 0.0
  %2129 = vmatprep.subr.mxu0 0.0
  %2130 = vmatpush1.msra.mxu0 0.0
  %2131 = vmatprep.subr.mxu0 0.0
  %2132 = vmatpush1.msra.mxu0 0.0
  %2133 = vmatprep.subr.mxu0 0.0
  %2134 = vmatpush1.msra.mxu0 0.0
  %2135 = vmatprep.subr.mxu0 0.0
  %2136 = vmatpush1.msra.mxu0 0.0
  %2137 = vmatprep.subr.mxu0 0.0
  %2138 = vmatpush1.msra.mxu0 0.0
  %2139 = vmatprep.subr.mxu0 0.0
  %2140 = vmatpush1.msra.mxu0 0.0
  %2141 = vmatprep.subr.mxu0 0.0
  %2142 = vmatpush1.msra.mxu0 0.0
  %2143 = vmatprep.subr.mxu0 0.0
  %2144 = vmatpush1.msra.mxu0 0.0
  %2145 = vmatprep.subr.mxu0 0.0
  %2146 = vmatpush1.msra.mxu0 0.0
  %2147 = vmatprep.subr.mxu0 0.0
  %2148 = vmatpush1.msra.mxu0 0.0
  %2149 = vmatprep.subr.mxu0 0.0
  %2150 = vmatpush1.msra.mxu0 0.0
  %2151 = vmatprep.subr.mxu0 0.0
  %2152 = vmatpush1.msra.mxu0 0.0
  %2153 = vmatprep.subr.mxu0 0.0
  %2154 = vmatpush1.msra.mxu0 0.0
  %2155 = vmatprep.subr.mxu0 0.0
  %2156 = vmatpush1.msra.mxu0 0.0
  %2157 = vmatprep.subr.mxu0 0.0
  %2158 = vmatpush1.msra.mxu0 0.0
  %2159 = vmatprep.subr.mxu0 0.0
  %2160 = vmatpush1.msra.mxu0 0.0
  %2161 = vmatprep.subr.mxu0 0.0
  %2162 = vmatpush1.msra.mxu0 0.0
  %2163 = vmatprep.subr.mxu0 0.0
  %2164 = vmatpush1.msra.mxu0 0.0
  %2165 = vmatprep.subr.mxu0 0.0
  %2166 = vmatpush1.msra.mxu0 0.0
  %2167 = vmatprep.subr.mxu0 0.0
  %2168 = vmatpush1.msra.mxu0 0.0
  %2169 = vmatprep.subr.mxu0 0.0
  %2170 = vmatpush1.msra.mxu0 0.0
  %2171 = vmatprep.subr.mxu0 0.0
  %2172 = vmatpush1.msra.mxu0 0.0
  %2173 = vmatprep.subr.mxu0 0.0
  %2174 = vmatpush1.msra.mxu0 0.0
  %2175 = vmatprep.subr.mxu0 0.0
  %2176 = vmatpush1.msra.mxu0 0.0
  %2177 = vmatprep.mubr.f32.mxu0 0.0
  %2178 = vmatmul.mubr.f32.gmra.mrb[0].mxu0 %v2065
  %v2179 = vpop.f32.mrb[0].mxu0
  %v2180 = vadd.f32 0.0, %v2179
  %v2181 = vpop.f32.mrb[0].mxu0
  %2182 = vmatprep.mubr.f32.mxu0 0.0
  %2183 = vmatmul.mubr.f32.gmra.mrb[0].mxu0 %v2067
  %v2184 = vpop.f32.mrb[0].mxu0
  %v2185 = vadd.f32 0.0, %v2184
  %v2186 = vpop.f32.mrb[0].mxu0
  %2187 = vmatprep.mubr.f32.mxu0 0.0
  %2188 = vmatmul.mubr.f32.gmra.mrb[0].mxu0 %v2069
  %v2189 = vpop.f32.mrb[0].mxu0
  %v2190 = vadd.f32 0.0, %v2189
  %v2191 = vpop.f32.mrb[0].mxu0
  %2192 = vmatprep.mubr.f32.mxu0 0.0
  %2193 = vmatmul.mubr.f32.gmra.mrb[0].mxu0 %v2071
  %v2194 = vpop.f32.mrb[0].mxu0
  %v2195 = vadd.f32 0.0, %v2194
  %v2196 = vpop.f32.mrb[0].mxu0
  %2197 = vmatprep.mubr.f32.mxu0 0.0
  %2198 = vmatmul.mubr.f32.gmra.mrb[0].mxu0 %v2073
  %v2199 = vpop.f32.mrb[0].mxu0
  %v2200 = vadd.f32 0.0, %v2199
  %v2201 = vpop.f32.mrb[0].mxu0
  %2202 = vmatprep.mubr.f32.mxu0 0.0
  %2203 = vmatmul.mubr.f32.gmra.mrb[0].mxu0 %v2075
  %v2204 = vpop.f32.mrb[0].mxu0
  %v2205 = vadd.f32 0.0, %v2204
  %v2206 = vpop.f32.mrb[0].mxu0
  %2207 = vmatprep.mubr.f32.mxu0 0.0
  %2208 = vmatmul.mubr.f32.gmra.mrb[0].mxu0 %v2077
  %v2209 = vpop.f32.mrb[0].mxu0
  %v2210 = vadd.f32 0.0, %v2209
  %v2211 = vpop.f32.mrb[0].mxu0
  %2212 = vmatprep.mubr.f32.mxu0 0.0
  %2213 = vmatmul.mubr.f32.gmra.mrb[0].mxu0 %v2079
  %v2214 = vpop.f32.mrb[0].mxu0
  %v2215 = vadd.f32 0.0, %v2214
  %v2216 = vpop.f32.mrb[0].mxu0
  %2217 = vmatprep.mubr.f32.mxu0 0.0
  %2218 = vmatmul.mubr.f32.gmra.mrb[0].mxu0 %v2081
  %v2219 = vpop.f32.mrb[0].mxu0
  %v2220 = vadd.f32 0.0, %v2219
  %v2221 = vpop.f32.mrb[0].mxu0
  %2222 = vmatprep.mubr.f32.mxu0 0.0
  %2223 = vmatmul.mubr.f32.gmra.mrb[0].mxu0 %v2083
  %v2224 = vpop.f32.mrb[0].mxu0
  %v2225 = vadd.f32 0.0, %v2224
  %v2226 = vpop.f32.mrb[0].mxu0
  %2227 = vmatprep.mubr.f32.mxu0 0.0
  %2228 = vmatmul.mubr.f32.gmra.mrb[0].mxu0 %v2085
  %v2229 = vpop.f32.mrb[0].mxu0
  %v2230 = vadd.f32 0.0, %v2229
  %v2231 = vpop.f32.mrb[0].mxu0
  %2232 = vmatprep.mubr.f32.mxu0 0.0
  %2233 = vmatmul.mubr.f32.gmra.mrb[0].mxu0 %v2087
  %v2234 = vpop.f32.mrb[0].mxu0
  %v2235 = vadd.f32 0.0, %v2234
  %v2236 = vpop.f32.mrb[0].mxu0
  %2237 = vmatprep.mubr.f32.mxu0 0.0
  %2238 = vmatmul.mubr.f32.gmra.mrb[0].mxu0 %v2089
  %v2239 = vpop.f32.mrb[0].mxu0
  %v2240 = vadd.f32 0.0, %v2239
  %v2241 = vpop.f32.mrb[0].mxu0
  %2242 = vmatprep.mubr.f32.mxu0 0.0
  %2243 = vmatmul.mubr.f32.gmra.mrb[0].mxu0 %v2091
  %v2244 = vpop.f32.mrb[0].mxu0
  %v2245 = vadd.f32 0.0, %v2244
  %v2246 = vpop.f32.mrb[0].mxu0
  %2247 = vmatprep.mubr.f32.mxu0 0.0
  %2248 = vmatmul.mubr.f32.gmra.mrb[0].mxu0 %v2093
  %v2249 = vpop.f32.mrb[0].mxu0
  %v2250 = vadd.f32 0.0, %v2249
  %v2251 = vpop.f32.mrb[0].mxu0
  %2252 = vmatprep.mubr.f32.mxu0 0.0
  %2253 = vmatmul.mubr.f32.gmra.mrb[0].mxu0 %v2095
  %v2254 = vpop.f32.mrb[0].mxu0
  %v2255 = vadd.f32 0.0, %v2254
  %v2256 = vpop.f32.mrb[0].mxu0
  %2257 = vmatprep.mubr.f32.mxu0 0.0
  %2258 = vmatmul.mubr.f32.gmra.mrb[0].mxu0 %v2097
  %v2259 = vpop.f32.mrb[0].mxu0
  %v2260 = vadd.f32 0.0, %v2259
  %v2261 = vpop.f32.mrb[0].mxu0
  %2262 = vmatprep.mubr.f32.mxu0 0.0
  %2263 = vmatmul.mubr.f32.gmra.mrb[0].mxu0 %v2099
  %v2264 = vpop.f32.mrb[0].mxu0
  %v2265 = vadd.f32 0.0, %v2264
  %v2266 = vpop.f32.mrb[0].mxu0
  %2267 = vmatprep.mubr.f32.mxu0 0.0
  %2268 = vmatmul.mubr.f32.gmra.mrb[0].mxu0 %v2101
  %v2269 = vpop.f32.mrb[0].mxu0
  %v2270 = vadd.f32 0.0, %v2269
  %v2271 = vpop.f32.mrb[0].mxu0
  %2272 = vmatprep.mubr.f32.mxu0 0.0
  %2273 = vmatmul.mubr.f32.gmra.mrb[0].mxu0 %v2103
  %v2274 = vpop.f32.mrb[0].mxu0
  %v2275 = vadd.f32 0.0, %v2274
  %v2276 = vpop.f32.mrb[0].mxu0
  %2277 = vmatprep.mubr.f32.mxu0 0.0
  %2278 = vmatmul.mubr.f32.gmra.mrb[0].mxu0 %v2105
  %v2279 = vpop.f32.mrb[0].mxu0
  %v2280 = vadd.f32 0.0, %v2279
  %v2281 = vpop.f32.mrb[0].mxu0
  %2282 = vmatprep.mubr.f32.mxu0 0.0
  %2283 = vmatmul.mubr.f32.gmra.mrb[0].mxu0 %v2107
  %v2284 = vpop.f32.mrb[0].mxu0
  %v2285 = vadd.f32 0.0, %v2284
  %v2286 = vpop.f32.mrb[0].mxu0
  %2287 = vmatprep.mubr.f32.mxu0 0.0
  %2288 = vmatmul.mubr.f32.gmra.mrb[0].mxu0 %v2109
  %v2289 = vpop.f32.mrb[0].mxu0
  %v2290 = vadd.f32 0.0, %v2289
  %v2291 = vpop.f32.mrb[0].mxu0
  %2292 = vmatprep.mubr.f32.mxu0 0.0
  %2293 = vmatmul.mubr.f32.gmra.mrb[0].mxu0 %v2111
  %v2294 = vpop.f32.mrb[0].mxu0
  %v2295 = vadd.f32 0.0, %v2294
  %v2296 = vpop.f32.mrb[0].mxu0
  %2297 = vdwg.mxu0
  %v2298 = vadd.f32 %v1907, %v2180
  %v2299 = vadd.f32 %v1908, %v2185
  %v2300 = vadd.f32 %v1909, %v2190
  %v2301 = vadd.f32 %v1910, %v2195
  %v2302 = vadd.f32 %v1911, %v2200
  %v2303 = vadd.f32 %v1912, %v2205
  %v2304 = vadd.f32 %v1913, %v2210
  %v2305 = vadd.f32 %v1914, %v2215
  %v2306 = vadd.f32 %v1915, %v2220
  %v2307 = vadd.f32 %v1916, %v2225
  %v2308 = vadd.f32 %v1917, %v2230
  %v2309 = vadd.f32 %v1918, %v2235
  %v2310 = vadd.f32 %v1919, %v2240
  %v2311 = vadd.f32 %v1920, %v2245
  %v2312 = vadd.f32 %v1921, %v2250
  %v2313 = vadd.f32 %v1922, %v2255
  %v2314 = vadd.f32 %v1923, %v2260
  %v2315 = vadd.f32 %v1924, %v2265
  %v2316 = vadd.f32 %v1925, %v2270
  %v2317 = vadd.f32 %v1926, %v2275
  %v2318 = vadd.f32 %v1927, %v2280
  %v2319 = vadd.f32 %v1928, %v2285
  %v2320 = vadd.f32 %v1929, %v2290
  %v2321 = vadd.f32 %v1930, %v2295
  %2322 = vrot.lane.b32.xlu0 %v1153, 80
  %v2323 = vpop.permute.xlu0 %2322
  %2324 = vrot.lane.b32.xlu0 %v1154, 80
  %v2325 = vpop.permute.xlu0 %2324
  %2326 = vrot.lane.b32.xlu0 %v1155, 80
  %v2327 = vpop.permute.xlu0 %2326
  %2328 = vrot.lane.b32.xlu0 %v1156, 80
  %v2329 = vpop.permute.xlu0 %2328
  %2330 = vrot.lane.b32.xlu0 %v1157, 80
  %v2331 = vpop.permute.xlu0 %2330
  %v2336 = vsel %vm40, %v2331, 0
  %2338 = vmatprep.subr.mxu0 0.0
  %2339 = vmatpush1.msra.mxu0 %v2323
  %2340 = vmatprep.subr.mxu0 0.0
  %2341 = vmatpush1.msra.mxu0 %v2325
  %2342 = vmatprep.subr.mxu0 0.0
  %2343 = vmatpush1.msra.mxu0 %v2327
  %2344 = vmatprep.subr.mxu0 0.0
  %2345 = vmatpush1.msra.mxu0 %v2329
  %2346 = vmatprep.subr.mxu0 0.0
  %2347 = vmatpush1.msra.mxu0 %v2336
  %2348 = vmatprep.subr.mxu0 0.0
  %2349 = vmatpush1.msra.mxu0 0.0
  %2350 = vmatprep.subr.mxu0 0.0
  %2351 = vmatpush1.msra.mxu0 0.0
  %2352 = vmatprep.subr.mxu0 0.0
  %2353 = vmatpush1.msra.mxu0 0.0
  %2354 = vmatprep.subr.mxu0 0.0
  %2355 = vmatpush1.msra.mxu0 0.0
  %2356 = vmatprep.subr.mxu0 0.0
  %2357 = vmatpush1.msra.mxu0 0.0
  %2358 = vmatprep.subr.mxu0 0.0
  %2359 = vmatpush1.msra.mxu0 0.0
  %2360 = vmatprep.subr.mxu0 0.0
  %2361 = vmatpush1.msra.mxu0 0.0
  %2362 = vmatprep.subr.mxu0 0.0
  %2363 = vmatpush1.msra.mxu0 0.0
  %2364 = vmatprep.subr.mxu0 0.0
  %2365 = vmatpush1.msra.mxu0 0.0
  %2366 = vmatprep.subr.mxu0 0.0
  %2367 = vmatpush1.msra.mxu0 0.0
  %2368 = vmatprep.subr.mxu0 0.0
  %2369 = vmatpush1.msra.mxu0 0.0
  %2370 = vmatprep.subr.mxu0 0.0
  %2371 = vmatpush1.msra.mxu0 0.0
  %2372 = vmatprep.subr.mxu0 0.0
  %2373 = vmatpush1.msra.mxu0 0.0
  %2374 = vmatprep.subr.mxu0 0.0
  %2375 = vmatpush1.msra.mxu0 0.0
  %2376 = vmatprep.subr.mxu0 0.0
  %2377 = vmatpush1.msra.mxu0 0.0
  %2378 = vmatprep.subr.mxu0 0.0
  %2379 = vmatpush1.msra.mxu0 0.0
  %2380 = vmatprep.subr.mxu0 0.0
  %2381 = vmatpush1.msra.mxu0 0.0
  %2382 = vmatprep.subr.mxu0 0.0
  %2383 = vmatpush1.msra.mxu0 0.0
  %2384 = vmatprep.subr.mxu0 0.0
  %2385 = vmatpush1.msra.mxu0 0.0
  %2386 = vmatprep.subr.mxu0 0.0
  %2387 = vmatpush1.msra.mxu0 0.0
  %2388 = vmatprep.subr.mxu0 0.0
  %2389 = vmatpush1.msra.mxu0 0.0
  %2390 = vmatprep.subr.mxu0 0.0
  %2391 = vmatpush1.msra.mxu0 0.0
  %2392 = vmatprep.subr.mxu0 0.0
  %2393 = vmatpush1.msra.mxu0 0.0
  %2394 = vmatprep.subr.mxu0 0.0
  %2395 = vmatpush1.msra.mxu0 0.0
  %2396 = vmatprep.subr.mxu0 0.0
  %2397 = vmatpush1.msra.mxu0 0.0
  %2398 = vmatprep.subr.mxu0 0.0
  %2399 = vmatpush1.msra.mxu0 0.0
  %2400 = vmatprep.subr.mxu0 0.0
  %2401 = vmatpush1.msra.mxu0 0.0
  %2402 = vmatprep.mubr.f32.mxu0 0.0
  %2403 = vmatmul.mubr.f32.gmra.mrb[0].mxu0 %v38
  %v2404 = vpop.f32.mrb[0].mxu0
  %v2405 = vadd.f32 0.0, %v2404
  %v2406 = vpop.f32.mrb[0].mxu0
  %2407 = vdwg.mxu0
  %2408 = vrot.lane.b32.xlu0 %v113, 80
  %v2409 = vpop.permute.xlu0 %2408
  %2410 = vrot.lane.b32.xlu0 %v114, 80
  %v2411 = vpop.permute.xlu0 %2410
  %2412 = vrot.lane.b32.xlu0 %v115, 80
  %v2413 = vpop.permute.xlu0 %2412
  %2414 = vrot.lane.b32.xlu0 %v116, 80
  %v2415 = vpop.permute.xlu0 %2414
  %2416 = vrot.lane.b32.xlu0 %v117, 80
  %v2417 = vpop.permute.xlu0 %2416
  %2418 = vrot.lane.b32.xlu0 %v118, 80
  %v2419 = vpop.permute.xlu0 %2418
  %2420 = vrot.lane.b32.xlu0 %v119, 80
  %v2421 = vpop.permute.xlu0 %2420
  %2422 = vrot.lane.b32.xlu0 %v120, 80
  %v2423 = vpop.permute.xlu0 %2422
  %2424 = vrot.lane.b32.xlu0 %v121, 80
  %v2425 = vpop.permute.xlu0 %2424
  %2426 = vrot.lane.b32.xlu0 %v122, 80
  %v2427 = vpop.permute.xlu0 %2426
  %2428 = vrot.lane.b32.xlu0 %v123, 80
  %v2429 = vpop.permute.xlu0 %2428
  %2430 = vrot.lane.b32.xlu0 %v124, 80
  %v2431 = vpop.permute.xlu0 %2430
  %2432 = vrot.lane.b32.xlu0 %v125, 80
  %v2433 = vpop.permute.xlu0 %2432
  %2434 = vrot.lane.b32.xlu0 %v126, 80
  %v2435 = vpop.permute.xlu0 %2434
  %2436 = vrot.lane.b32.xlu0 %v127, 80
  %v2437 = vpop.permute.xlu0 %2436
  %2438 = vrot.lane.b32.xlu0 %v128, 80
  %v2439 = vpop.permute.xlu0 %2438
  %2440 = vrot.lane.b32.xlu0 %v129, 80
  %v2441 = vpop.permute.xlu0 %2440
  %2442 = vrot.lane.b32.xlu0 %v130, 80
  %v2443 = vpop.permute.xlu0 %2442
  %2444 = vrot.lane.b32.xlu0 %v131, 80
  %v2445 = vpop.permute.xlu0 %2444
  %2446 = vrot.lane.b32.xlu0 %v132, 80
  %v2447 = vpop.permute.xlu0 %2446
  %2448 = vrot.lane.b32.xlu0 %v133, 80
  %v2449 = vpop.permute.xlu0 %2448
  %2450 = vrot.lane.b32.xlu0 %v134, 80
  %v2451 = vpop.permute.xlu0 %2450
  %2452 = vrot.lane.b32.xlu0 %v135, 80
  %v2453 = vpop.permute.xlu0 %2452
  %2454 = vrot.lane.b32.xlu0 %v136, 80
  %v2455 = vpop.permute.xlu0 %2454
  %v2456 = vsel %vm295, %v2409, 0
  %v2458 = vsel %vm295, %v2411, 0
  %v2460 = vsel %vm295, %v2413, 0
  %v2462 = vsel %vm295, %v2415, 0
  %v2464 = vsel %vm295, %v2417, 0
  %v2466 = vsel %vm295, %v2419, 0
  %v2468 = vsel %vm295, %v2421, 0
  %v2470 = vsel %vm295, %v2423, 0
  %v2472 = vsel %vm295, %v2425, 0
  %v2474 = vsel %vm295, %v2427, 0
  %v2476 = vsel %vm295, %v2429, 0
  %v2478 = vsel %vm295, %v2431, 0
  %v2480 = vsel %vm295, %v2433, 0
  %v2482 = vsel %vm295, %v2435, 0
  %v2484 = vsel %vm295, %v2437, 0
  %v2486 = vsel %vm295, %v2439, 0
  %v2488 = vsel %vm295, %v2441, 0
  %v2490 = vsel %vm295, %v2443, 0
  %v2492 = vsel %vm295, %v2445, 0
  %v2494 = vsel %vm295, %v2447, 0
  %v2496 = vsel %vm295, %v2449, 0
  %v2498 = vsel %vm295, %v2451, 0
  %v2500 = vsel %vm295, %v2453, 0
  %v2502 = vsel %vm295, %v2455, 0
  %2504 = vmatprep.subr.mxu0 0.0
  %2505 = vmatpush1.msra.mxu0 %v2405
  %2506 = vmatprep.subr.mxu0 0.0
  %2507 = vmatpush1.msra.mxu0 0.0
  %2508 = vmatprep.subr.mxu0 0.0
  %2509 = vmatpush1.msra.mxu0 0.0
  %2510 = vmatprep.subr.mxu0 0.0
  %2511 = vmatpush1.msra.mxu0 0.0
  %2512 = vmatprep.subr.mxu0 0.0
  %2513 = vmatpush1.msra.mxu0 0.0
  %2514 = vmatprep.subr.mxu0 0.0
  %2515 = vmatpush1.msra.mxu0 0.0
  %2516 = vmatprep.subr.mxu0 0.0
  %2517 = vmatpush1.msra.mxu0 0.0
  %2518 = vmatprep.subr.mxu0 0.0
  %2519 = vmatpush1.msra.mxu0 0.0
  %2520 = vmatprep.subr.mxu0 0.0
  %2521 = vmatpush1.msra.mxu0 0.0
  %2522 = vmatprep.subr.mxu0 0.0
  %2523 = vmatpush1.msra.mxu0 0.0
  %2524 = vmatprep.subr.mxu0 0.0
  %2525 = vmatpush1.msra.mxu0 0.0
  %2526 = vmatprep.subr.mxu0 0.0
  %2527 = vmatpush1.msra.mxu0 0.0
  %2528 = vmatprep.subr.mxu0 0.0
  %2529 = vmatpush1.msra.mxu0 0.0
  %2530 = vmatprep.subr.mxu0 0.0
  %2531 = vmatpush1.msra.mxu0 0.0
  %2532 = vmatprep.subr.mxu0 0.0
  %2533 = vmatpush1.msra.mxu0 0.0
  %2534 = vmatprep.subr.mxu0 0.0
  %2535 = vmatpush1.msra.mxu0 0.0
  %2536 = vmatprep.subr.mxu0 0.0
  %2537 = vmatpush1.msra.mxu0 0.0
  %2538 = vmatprep.subr.mxu0 0.0
  %2539 = vmatpush1.msra.mxu0 0.0
  %2540 = vmatprep.subr.mxu0 0.0
  %2541 = vmatpush1.msra.mxu0 0.0
  %2542 = vmatprep.subr.mxu0 0.0
  %2543 = vmatpush1.msra.mxu0 0.0
  %2544 = vmatprep.subr.mxu0 0.0
  %2545 = vmatpush1.msra.mxu0 0.0
  %2546 = vmatprep.subr.mxu0 0.0
  %2547 = vmatpush1.msra.mxu0 0.0
  %2548 = vmatprep.subr.mxu0 0.0
  %2549 = vmatpush1.msra.mxu0 0.0
  %2550 = vmatprep.subr.mxu0 0.0
  %2551 = vmatpush1.msra.mxu0 0.0
  %2552 = vmatprep.subr.mxu0 0.0
  %2553 = vmatpush1.msra.mxu0 0.0
  %2554 = vmatprep.subr.mxu0 0.0
  %2555 = vmatpush1.msra.mxu0 0.0
  %2556 = vmatprep.subr.mxu0 0.0
  %2557 = vmatpush1.msra.mxu0 0.0
  %2558 = vmatprep.subr.mxu0 0.0
  %2559 = vmatpush1.msra.mxu0 0.0
  %2560 = vmatprep.subr.mxu0 0.0
  %2561 = vmatpush1.msra.mxu0 0.0
  %2562 = vmatprep.subr.mxu0 0.0
  %2563 = vmatpush1.msra.mxu0 0.0
  %2564 = vmatprep.subr.mxu0 0.0
  %2565 = vmatpush1.msra.mxu0 0.0
  %2566 = vmatprep.subr.mxu0 0.0
  %2567 = vmatpush1.msra.mxu0 0.0
  %2568 = vmatprep.mubr.f32.mxu0 0.0
  %2569 = vmatmul.mubr.f32.gmra.mrb[0].mxu0 %v2456
  %v2570 = vpop.f32.mrb[0].mxu0
  %v2571 = vadd.f32 0.0, %v2570
  %v2572 = vpop.f32.mrb[0].mxu0
  %2573 = vmatprep.mubr.f32.mxu0 0.0
  %2574 = vmatmul.mubr.f32.gmra.mrb[0].mxu0 %v2458
  %v2575 = vpop.f32.mrb[0].mxu0
  %v2576 = vadd.f32 0.0, %v2575
  %v2577 = vpop.f32.mrb[0].mxu0
  %2578 = vmatprep.mubr.f32.mxu0 0.0
  %2579 = vmatmul.mubr.f32.gmra.mrb[0].mxu0 %v2460
  %v2580 = vpop.f32.mrb[0].mxu0
  %v2581 = vadd.f32 0.0, %v2580
  %v2582 = vpop.f32.mrb[0].mxu0
  %2583 = vmatprep.mubr.f32.mxu0 0.0
  %2584 = vmatmul.mubr.f32.gmra.mrb[0].mxu0 %v2462
  %v2585 = vpop.f32.mrb[0].mxu0
  %v2586 = vadd.f32 0.0, %v2585
  %v2587 = vpop.f32.mrb[0].mxu0
  %2588 = vmatprep.mubr.f32.mxu0 0.0
  %2589 = vmatmul.mubr.f32.gmra.mrb[0].mxu0 %v2464
  %v2590 = vpop.f32.mrb[0].mxu0
  %v2591 = vadd.f32 0.0, %v2590
  %v2592 = vpop.f32.mrb[0].mxu0
  %2593 = vmatprep.mubr.f32.mxu0 0.0
  %2594 = vmatmul.mubr.f32.gmra.mrb[0].mxu0 %v2466
  %v2595 = vpop.f32.mrb[0].mxu0
  %v2596 = vadd.f32 0.0, %v2595
  %v2597 = vpop.f32.mrb[0].mxu0
  %2598 = vmatprep.mubr.f32.mxu0 0.0
  %2599 = vmatmul.mubr.f32.gmra.mrb[0].mxu0 %v2468
  %v2600 = vpop.f32.mrb[0].mxu0
  %v2601 = vadd.f32 0.0, %v2600
  %v2602 = vpop.f32.mrb[0].mxu0
  %2603 = vmatprep.mubr.f32.mxu0 0.0
  %2604 = vmatmul.mubr.f32.gmra.mrb[0].mxu0 %v2470
  %v2605 = vpop.f32.mrb[0].mxu0
  %v2606 = vadd.f32 0.0, %v2605
  %v2607 = vpop.f32.mrb[0].mxu0
  %2608 = vmatprep.mubr.f32.mxu0 0.0
  %2609 = vmatmul.mubr.f32.gmra.mrb[0].mxu0 %v2472
  %v2610 = vpop.f32.mrb[0].mxu0
  %v2611 = vadd.f32 0.0, %v2610
  %v2612 = vpop.f32.mrb[0].mxu0
  %2613 = vmatprep.mubr.f32.mxu0 0.0
  %2614 = vmatmul.mubr.f32.gmra.mrb[0].mxu0 %v2474
  %v2615 = vpop.f32.mrb[0].mxu0
  %v2616 = vadd.f32 0.0, %v2615
  %v2617 = vpop.f32.mrb[0].mxu0
  %2618 = vmatprep.mubr.f32.mxu0 0.0
  %2619 = vmatmul.mubr.f32.gmra.mrb[0].mxu0 %v2476
  %v2620 = vpop.f32.mrb[0].mxu0
  %v2621 = vadd.f32 0.0, %v2620
  %v2622 = vpop.f32.mrb[0].mxu0
  %2623 = vmatprep.mubr.f32.mxu0 0.0
  %2624 = vmatmul.mubr.f32.gmra.mrb[0].mxu0 %v2478
  %v2625 = vpop.f32.mrb[0].mxu0
  %v2626 = vadd.f32 0.0, %v2625
  %v2627 = vpop.f32.mrb[0].mxu0
  %2628 = vmatprep.mubr.f32.mxu0 0.0
  %2629 = vmatmul.mubr.f32.gmra.mrb[0].mxu0 %v2480
  %v2630 = vpop.f32.mrb[0].mxu0
  %v2631 = vadd.f32 0.0, %v2630
  %v2632 = vpop.f32.mrb[0].mxu0
  %2633 = vmatprep.mubr.f32.mxu0 0.0
  %2634 = vmatmul.mubr.f32.gmra.mrb[0].mxu0 %v2482
  %v2635 = vpop.f32.mrb[0].mxu0
  %v2636 = vadd.f32 0.0, %v2635
  %v2637 = vpop.f32.mrb[0].mxu0
  %2638 = vmatprep.mubr.f32.mxu0 0.0
  %2639 = vmatmul.mubr.f32.gmra.mrb[0].mxu0 %v2484
  %v2640 = vpop.f32.mrb[0].mxu0
  %v2641 = vadd.f32 0.0, %v2640
  %v2642 = vpop.f32.mrb[0].mxu0
  %2643 = vmatprep.mubr.f32.mxu0 0.0
  %2644 = vmatmul.mubr.f32.gmra.mrb[0].mxu0 %v2486
  %v2645 = vpop.f32.mrb[0].mxu0
  %v2646 = vadd.f32 0.0, %v2645
  %v2647 = vpop.f32.mrb[0].mxu0
  %2648 = vmatprep.mubr.f32.mxu0 0.0
  %2649 = vmatmul.mubr.f32.gmra.mrb[0].mxu0 %v2488
  %v2650 = vpop.f32.mrb[0].mxu0
  %v2651 = vadd.f32 0.0, %v2650
  %v2652 = vpop.f32.mrb[0].mxu0
  %2653 = vmatprep.mubr.f32.mxu0 0.0
  %2654 = vmatmul.mubr.f32.gmra.mrb[0].mxu0 %v2490
  %v2655 = vpop.f32.mrb[0].mxu0
  %v2656 = vadd.f32 0.0, %v2655
  %v2657 = vpop.f32.mrb[0].mxu0
  %2658 = vmatprep.mubr.f32.mxu0 0.0
  %2659 = vmatmul.mubr.f32.gmra.mrb[0].mxu0 %v2492
  %v2660 = vpop.f32.mrb[0].mxu0
  %v2661 = vadd.f32 0.0, %v2660
  %v2662 = vpop.f32.mrb[0].mxu0
  %2663 = vmatprep.mubr.f32.mxu0 0.0
  %2664 = vmatmul.mubr.f32.gmra.mrb[0].mxu0 %v2494
  %v2665 = vpop.f32.mrb[0].mxu0
  %v2666 = vadd.f32 0.0, %v2665
  %v2667 = vpop.f32.mrb[0].mxu0
  %2668 = vmatprep.mubr.f32.mxu0 0.0
  %2669 = vmatmul.mubr.f32.gmra.mrb[0].mxu0 %v2496
  %v2670 = vpop.f32.mrb[0].mxu0
  %v2671 = vadd.f32 0.0, %v2670
  %v2672 = vpop.f32.mrb[0].mxu0
  %2673 = vmatprep.mubr.f32.mxu0 0.0
  %2674 = vmatmul.mubr.f32.gmra.mrb[0].mxu0 %v2498
  %v2675 = vpop.f32.mrb[0].mxu0
  %v2676 = vadd.f32 0.0, %v2675
  %v2677 = vpop.f32.mrb[0].mxu0
  %2678 = vmatprep.mubr.f32.mxu0 0.0
  %2679 = vmatmul.mubr.f32.gmra.mrb[0].mxu0 %v2500
  %v2680 = vpop.f32.mrb[0].mxu0
  %v2681 = vadd.f32 0.0, %v2680
  %v2682 = vpop.f32.mrb[0].mxu0
  %2683 = vmatprep.mubr.f32.mxu0 0.0
  %2684 = vmatmul.mubr.f32.gmra.mrb[0].mxu0 %v2502
  %v2685 = vpop.f32.mrb[0].mxu0
  %v2686 = vadd.f32 0.0, %v2685
  %v2687 = vpop.f32.mrb[0].mxu0
  %2688 = vdwg.mxu0
  %v2689 = vadd.f32 %v2298, %v2571
  %v2690 = vadd.f32 %v2299, %v2576
  %v2691 = vadd.f32 %v2300, %v2581
  %v2692 = vadd.f32 %v2301, %v2586
  %v2693 = vadd.f32 %v2302, %v2591
  %v2694 = vadd.f32 %v2303, %v2596
  %v2695 = vadd.f32 %v2304, %v2601
  %v2696 = vadd.f32 %v2305, %v2606
  %v2697 = vadd.f32 %v2306, %v2611
  %v2698 = vadd.f32 %v2307, %v2616
  %v2699 = vadd.f32 %v2308, %v2621
  %v2700 = vadd.f32 %v2309, %v2626
  %v2701 = vadd.f32 %v2310, %v2631
  %v2702 = vadd.f32 %v2311, %v2636
  %v2703 = vadd.f32 %v2312, %v2641
  %v2704 = vadd.f32 %v2313, %v2646
  %v2705 = vadd.f32 %v2314, %v2651
  %v2706 = vadd.f32 %v2315, %v2656
  %v2707 = vadd.f32 %v2316, %v2661
  %v2708 = vadd.f32 %v2317, %v2666
  %v2709 = vadd.f32 %v2318, %v2671
  %v2710 = vadd.f32 %v2319, %v2676
  %v2711 = vadd.f32 %v2320, %v2681
  %v2712 = vadd.f32 %v2321, %v2686
  %2713 = vrot.lane.b32.xlu0 %v1153, 64
  %v2714 = vpop.permute.xlu0 %2713
  %2715 = vrot.lane.b32.xlu0 %v1154, 64
  %v2716 = vpop.permute.xlu0 %2715
  %2717 = vrot.lane.b32.xlu0 %v1155, 64
  %v2718 = vpop.permute.xlu0 %2717
  %2719 = vrot.lane.b32.xlu0 %v1156, 64
  %v2720 = vpop.permute.xlu0 %2719
  %2721 = vrot.lane.b32.xlu0 %v1157, 64
  %v2722 = vpop.permute.xlu0 %2721
  %v2727 = vsel %vm40, %v2722, 0
  %2729 = vmatprep.subr.mxu0 0.0
  %2730 = vmatpush1.msra.mxu0 %v2714
  %2731 = vmatprep.subr.mxu0 0.0
  %2732 = vmatpush1.msra.mxu0 %v2716
  %2733 = vmatprep.subr.mxu0 0.0
  %2734 = vmatpush1.msra.mxu0 %v2718
  %2735 = vmatprep.subr.mxu0 0.0
  %2736 = vmatpush1.msra.mxu0 %v2720
  %2737 = vmatprep.subr.mxu0 0.0
  %2738 = vmatpush1.msra.mxu0 %v2727
  %2739 = vmatprep.subr.mxu0 0.0
  %2740 = vmatpush1.msra.mxu0 0.0
  %2741 = vmatprep.subr.mxu0 0.0
  %2742 = vmatpush1.msra.mxu0 0.0
  %2743 = vmatprep.subr.mxu0 0.0
  %2744 = vmatpush1.msra.mxu0 0.0
  %2745 = vmatprep.subr.mxu0 0.0
  %2746 = vmatpush1.msra.mxu0 0.0
  %2747 = vmatprep.subr.mxu0 0.0
  %2748 = vmatpush1.msra.mxu0 0.0
  %2749 = vmatprep.subr.mxu0 0.0
  %2750 = vmatpush1.msra.mxu0 0.0
  %2751 = vmatprep.subr.mxu0 0.0
  %2752 = vmatpush1.msra.mxu0 0.0
  %2753 = vmatprep.subr.mxu0 0.0
  %2754 = vmatpush1.msra.mxu0 0.0
  %2755 = vmatprep.subr.mxu0 0.0
  %2756 = vmatpush1.msra.mxu0 0.0
  %2757 = vmatprep.subr.mxu0 0.0
  %2758 = vmatpush1.msra.mxu0 0.0
  %2759 = vmatprep.subr.mxu0 0.0
  %2760 = vmatpush1.msra.mxu0 0.0
  %2761 = vmatprep.subr.mxu0 0.0
  %2762 = vmatpush1.msra.mxu0 0.0
  %2763 = vmatprep.subr.mxu0 0.0
  %2764 = vmatpush1.msra.mxu0 0.0
  %2765 = vmatprep.subr.mxu0 0.0
  %2766 = vmatpush1.msra.mxu0 0.0
  %2767 = vmatprep.subr.mxu0 0.0
  %2768 = vmatpush1.msra.mxu0 0.0
  %2769 = vmatprep.subr.mxu0 0.0
  %2770 = vmatpush1.msra.mxu0 0.0
  %2771 = vmatprep.subr.mxu0 0.0
  %2772 = vmatpush1.msra.mxu0 0.0
  %2773 = vmatprep.subr.mxu0 0.0
  %2774 = vmatpush1.msra.mxu0 0.0
  %2775 = vmatprep.subr.mxu0 0.0
  %2776 = vmatpush1.msra.mxu0 0.0
  %2777 = vmatprep.subr.mxu0 0.0
  %2778 = vmatpush1.msra.mxu0 0.0
  %2779 = vmatprep.subr.mxu0 0.0
  %2780 = vmatpush1.msra.mxu0 0.0
  %2781 = vmatprep.subr.mxu0 0.0
  %2782 = vmatpush1.msra.mxu0 0.0
  %2783 = vmatprep.subr.mxu0 0.0
  %2784 = vmatpush1.msra.mxu0 0.0
  %2785 = vmatprep.subr.mxu0 0.0
  %2786 = vmatpush1.msra.mxu0 0.0
  %2787 = vmatprep.subr.mxu0 0.0
  %2788 = vmatpush1.msra.mxu0 0.0
  %2789 = vmatprep.subr.mxu0 0.0
  %2790 = vmatpush1.msra.mxu0 0.0
  %2791 = vmatprep.subr.mxu0 0.0
  %2792 = vmatpush1.msra.mxu0 0.0
  %2793 = vmatprep.mubr.f32.mxu0 0.0
  %2794 = vmatmul.mubr.f32.gmra.mrb[0].mxu0 %v38
  %v2795 = vpop.f32.mrb[0].mxu0
  %v2796 = vadd.f32 0.0, %v2795
  %v2797 = vpop.f32.mrb[0].mxu0
  %2798 = vdwg.mxu0
  %2799 = vrot.lane.b32.xlu0 %v113, 72
  %v2800 = vpop.permute.xlu0 %2799
  %2801 = vrot.lane.b32.xlu0 %v114, 72
  %v2802 = vpop.permute.xlu0 %2801
  %2803 = vrot.lane.b32.xlu0 %v115, 72
  %v2804 = vpop.permute.xlu0 %2803
  %2805 = vrot.lane.b32.xlu0 %v116, 72
  %v2806 = vpop.permute.xlu0 %2805
  %2807 = vrot.lane.b32.xlu0 %v117, 72
  %v2808 = vpop.permute.xlu0 %2807
  %2809 = vrot.lane.b32.xlu0 %v118, 72
  %v2810 = vpop.permute.xlu0 %2809
  %2811 = vrot.lane.b32.xlu0 %v119, 72
  %v2812 = vpop.permute.xlu0 %2811
  %2813 = vrot.lane.b32.xlu0 %v120, 72
  %v2814 = vpop.permute.xlu0 %2813
  %2815 = vrot.lane.b32.xlu0 %v121, 72
  %v2816 = vpop.permute.xlu0 %2815
  %2817 = vrot.lane.b32.xlu0 %v122, 72
  %v2818 = vpop.permute.xlu0 %2817
  %2819 = vrot.lane.b32.xlu0 %v123, 72
  %v2820 = vpop.permute.xlu0 %2819
  %2821 = vrot.lane.b32.xlu0 %v124, 72
  %v2822 = vpop.permute.xlu0 %2821
  %2823 = vrot.lane.b32.xlu0 %v125, 72
  %v2824 = vpop.permute.xlu0 %2823
  %2825 = vrot.lane.b32.xlu0 %v126, 72
  %v2826 = vpop.permute.xlu0 %2825
  %2827 = vrot.lane.b32.xlu0 %v127, 72
  %v2828 = vpop.permute.xlu0 %2827
  %2829 = vrot.lane.b32.xlu0 %v128, 72
  %v2830 = vpop.permute.xlu0 %2829
  %2831 = vrot.lane.b32.xlu0 %v129, 72
  %v2832 = vpop.permute.xlu0 %2831
  %2833 = vrot.lane.b32.xlu0 %v130, 72
  %v2834 = vpop.permute.xlu0 %2833
  %2835 = vrot.lane.b32.xlu0 %v131, 72
  %v2836 = vpop.permute.xlu0 %2835
  %2837 = vrot.lane.b32.xlu0 %v132, 72
  %v2838 = vpop.permute.xlu0 %2837
  %2839 = vrot.lane.b32.xlu0 %v133, 72
  %v2840 = vpop.permute.xlu0 %2839
  %2841 = vrot.lane.b32.xlu0 %v134, 72
  %v2842 = vpop.permute.xlu0 %2841
  %2843 = vrot.lane.b32.xlu0 %v135, 72
  %v2844 = vpop.permute.xlu0 %2843
  %2845 = vrot.lane.b32.xlu0 %v136, 72
  %v2846 = vpop.permute.xlu0 %2845
  %v2847 = vsel %vm295, %v2800, 0
  %v2849 = vsel %vm295, %v2802, 0
  %v2851 = vsel %vm295, %v2804, 0
  %v2853 = vsel %vm295, %v2806, 0
  %v2855 = vsel %vm295, %v2808, 0
  %v2857 = vsel %vm295, %v2810, 0
  %v2859 = vsel %vm295, %v2812, 0
  %v2861 = vsel %vm295, %v2814, 0
  %v2863 = vsel %vm295, %v2816, 0
  %v2865 = vsel %vm295, %v2818, 0
  %v2867 = vsel %vm295, %v2820, 0
  %v2869 = vsel %vm295, %v2822, 0
  %v2871 = vsel %vm295, %v2824, 0
  %v2873 = vsel %vm295, %v2826, 0
  %v2875 = vsel %vm295, %v2828, 0
  %v2877 = vsel %vm295, %v2830, 0
  %v2879 = vsel %vm295, %v2832, 0
  %v2881 = vsel %vm295, %v2834, 0
  %v2883 = vsel %vm295, %v2836, 0
  %v2885 = vsel %vm295, %v2838, 0
  %v2887 = vsel %vm295, %v2840, 0
  %v2889 = vsel %vm295, %v2842, 0
  %v2891 = vsel %vm295, %v2844, 0
  %v2893 = vsel %vm295, %v2846, 0
  %2895 = vmatprep.subr.mxu0 0.0
  %2896 = vmatpush1.msra.mxu0 %v2796
  %2897 = vmatprep.subr.mxu0 0.0
  %2898 = vmatpush1.msra.mxu0 0.0
  %2899 = vmatprep.subr.mxu0 0.0
  %2900 = vmatpush1.msra.mxu0 0.0
  %2901 = vmatprep.subr.mxu0 0.0
  %2902 = vmatpush1.msra.mxu0 0.0
  %2903 = vmatprep.subr.mxu0 0.0
  %2904 = vmatpush1.msra.mxu0 0.0
  %2905 = vmatprep.subr.mxu0 0.0
  %2906 = vmatpush1.msra.mxu0 0.0
  %2907 = vmatprep.subr.mxu0 0.0
  %2908 = vmatpush1.msra.mxu0 0.0
  %2909 = vmatprep.subr.mxu0 0.0
  %2910 = vmatpush1.msra.mxu0 0.0
  %2911 = vmatprep.subr.mxu0 0.0
  %2912 = vmatpush1.msra.mxu0 0.0
  %2913 = vmatprep.subr.mxu0 0.0
  %2914 = vmatpush1.msra.mxu0 0.0
  %2915 = vmatprep.subr.mxu0 0.0
  %2916 = vmatpush1.msra.mxu0 0.0
  %2917 = vmatprep.subr.mxu0 0.0
  %2918 = vmatpush1.msra.mxu0 0.0
  %2919 = vmatprep.subr.mxu0 0.0
  %2920 = vmatpush1.msra.mxu0 0.0
  %2921 = vmatprep.subr.mxu0 0.0
  %2922 = vmatpush1.msra.mxu0 0.0
  %2923 = vmatprep.subr.mxu0 0.0
  %2924 = vmatpush1.msra.mxu0 0.0
  %2925 = vmatprep.subr.mxu0 0.0
  %2926 = vmatpush1.msra.mxu0 0.0
  %2927 = vmatprep.subr.mxu0 0.0
  %2928 = vmatpush1.msra.mxu0 0.0
  %2929 = vmatprep.subr.mxu0 0.0
  %2930 = vmatpush1.msra.mxu0 0.0
  %2931 = vmatprep.subr.mxu0 0.0
  %2932 = vmatpush1.msra.mxu0 0.0
  %2933 = vmatprep.subr.mxu0 0.0
  %2934 = vmatpush1.msra.mxu0 0.0
  %2935 = vmatprep.subr.mxu0 0.0
  %2936 = vmatpush1.msra.mxu0 0.0
  %2937 = vmatprep.subr.mxu0 0.0
  %2938 = vmatpush1.msra.mxu0 0.0
  %2939 = vmatprep.subr.mxu0 0.0
  %2940 = vmatpush1.msra.mxu0 0.0
  %2941 = vmatprep.subr.mxu0 0.0
  %2942 = vmatpush1.msra.mxu0 0.0
  %2943 = vmatprep.subr.mxu0 0.0
  %2944 = vmatpush1.msra.mxu0 0.0
  %2945 = vmatprep.subr.mxu0 0.0
  %2946 = vmatpush1.msra.mxu0 0.0
  %2947 = vmatprep.subr.mxu0 0.0
  %2948 = vmatpush1.msra.mxu0 0.0
  %2949 = vmatprep.subr.mxu0 0.0
  %2950 = vmatpush1.msra.mxu0 0.0
  %2951 = vmatprep.subr.mxu0 0.0
  %2952 = vmatpush1.msra.mxu0 0.0
  %2953 = vmatprep.subr.mxu0 0.0
  %2954 = vmatpush1.msra.mxu0 0.0
  %2955 = vmatprep.subr.mxu0 0.0
  %2956 = vmatpush1.msra.mxu0 0.0
  %2957 = vmatprep.subr.mxu0 0.0
  %2958 = vmatpush1.msra.mxu0 0.0
  %2959 = vmatprep.mubr.f32.mxu0 0.0
  %2960 = vmatmul.mubr.f32.gmra.mrb[0].mxu0 %v2847
  %v2961 = vpop.f32.mrb[0].mxu0
  %v2962 = vadd.f32 0.0, %v2961
  %v2963 = vpop.f32.mrb[0].mxu0
  %2964 = vmatprep.mubr.f32.mxu0 0.0
  %2965 = vmatmul.mubr.f32.gmra.mrb[0].mxu0 %v2849
  %v2966 = vpop.f32.mrb[0].mxu0
  %v2967 = vadd.f32 0.0, %v2966
  %v2968 = vpop.f32.mrb[0].mxu0
  %2969 = vmatprep.mubr.f32.mxu0 0.0
  %2970 = vmatmul.mubr.f32.gmra.mrb[0].mxu0 %v2851
  %v2971 = vpop.f32.mrb[0].mxu0
  %v2972 = vadd.f32 0.0, %v2971
  %v2973 = vpop.f32.mrb[0].mxu0
  %2974 = vmatprep.mubr.f32.mxu0 0.0
  %2975 = vmatmul.mubr.f32.gmra.mrb[0].mxu0 %v2853
  %v2976 = vpop.f32.mrb[0].mxu0
  %v2977 = vadd.f32 0.0, %v2976
  %v2978 = vpop.f32.mrb[0].mxu0
  %2979 = vmatprep.mubr.f32.mxu0 0.0
  %2980 = vmatmul.mubr.f32.gmra.mrb[0].mxu0 %v2855
  %v2981 = vpop.f32.mrb[0].mxu0
  %v2982 = vadd.f32 0.0, %v2981
  %v2983 = vpop.f32.mrb[0].mxu0
  %2984 = vmatprep.mubr.f32.mxu0 0.0
  %2985 = vmatmul.mubr.f32.gmra.mrb[0].mxu0 %v2857
  %v2986 = vpop.f32.mrb[0].mxu0
  %v2987 = vadd.f32 0.0, %v2986
  %v2988 = vpop.f32.mrb[0].mxu0
  %2989 = vmatprep.mubr.f32.mxu0 0.0
  %2990 = vmatmul.mubr.f32.gmra.mrb[0].mxu0 %v2859
  %v2991 = vpop.f32.mrb[0].mxu0
  %v2992 = vadd.f32 0.0, %v2991
  %v2993 = vpop.f32.mrb[0].mxu0
  %2994 = vmatprep.mubr.f32.mxu0 0.0
  %2995 = vmatmul.mubr.f32.gmra.mrb[0].mxu0 %v2861
  %v2996 = vpop.f32.mrb[0].mxu0
  %v2997 = vadd.f32 0.0, %v2996
  %v2998 = vpop.f32.mrb[0].mxu0
  %2999 = vmatprep.mubr.f32.mxu0 0.0
  %3000 = vmatmul.mubr.f32.gmra.mrb[0].mxu0 %v2863
  %v3001 = vpop.f32.mrb[0].mxu0
  %v3002 = vadd.f32 0.0, %v3001
  %v3003 = vpop.f32.mrb[0].mxu0
  %3004 = vmatprep.mubr.f32.mxu0 0.0
  %3005 = vmatmul.mubr.f32.gmra.mrb[0].mxu0 %v2865
  %v3006 = vpop.f32.mrb[0].mxu0
  %v3007 = vadd.f32 0.0, %v3006
  %v3008 = vpop.f32.mrb[0].mxu0
  %3009 = vmatprep.mubr.f32.mxu0 0.0
  %3010 = vmatmul.mubr.f32.gmra.mrb[0].mxu0 %v2867
  %v3011 = vpop.f32.mrb[0].mxu0
  %v3012 = vadd.f32 0.0, %v3011
  %v3013 = vpop.f32.mrb[0].mxu0
  %3014 = vmatprep.mubr.f32.mxu0 0.0
  %3015 = vmatmul.mubr.f32.gmra.mrb[0].mxu0 %v2869
  %v3016 = vpop.f32.mrb[0].mxu0
  %v3017 = vadd.f32 0.0, %v3016
  %v3018 = vpop.f32.mrb[0].mxu0
  %3019 = vmatprep.mubr.f32.mxu0 0.0
  %3020 = vmatmul.mubr.f32.gmra.mrb[0].mxu0 %v2871
  %v3021 = vpop.f32.mrb[0].mxu0
  %v3022 = vadd.f32 0.0, %v3021
  %v3023 = vpop.f32.mrb[0].mxu0
  %3024 = vmatprep.mubr.f32.mxu0 0.0
  %3025 = vmatmul.mubr.f32.gmra.mrb[0].mxu0 %v2873
  %v3026 = vpop.f32.mrb[0].mxu0
  %v3027 = vadd.f32 0.0, %v3026
  %v3028 = vpop.f32.mrb[0].mxu0
  %3029 = vmatprep.mubr.f32.mxu0 0.0
  %3030 = vmatmul.mubr.f32.gmra.mrb[0].mxu0 %v2875
  %v3031 = vpop.f32.mrb[0].mxu0
  %v3032 = vadd.f32 0.0, %v3031
  %v3033 = vpop.f32.mrb[0].mxu0
  %3034 = vmatprep.mubr.f32.mxu0 0.0
  %3035 = vmatmul.mubr.f32.gmra.mrb[0].mxu0 %v2877
  %v3036 = vpop.f32.mrb[0].mxu0
  %v3037 = vadd.f32 0.0, %v3036
  %v3038 = vpop.f32.mrb[0].mxu0
  %3039 = vmatprep.mubr.f32.mxu0 0.0
  %3040 = vmatmul.mubr.f32.gmra.mrb[0].mxu0 %v2879
  %v3041 = vpop.f32.mrb[0].mxu0
  %v3042 = vadd.f32 0.0, %v3041
  %v3043 = vpop.f32.mrb[0].mxu0
  %3044 = vmatprep.mubr.f32.mxu0 0.0
  %3045 = vmatmul.mubr.f32.gmra.mrb[0].mxu0 %v2881
  %v3046 = vpop.f32.mrb[0].mxu0
  %v3047 = vadd.f32 0.0, %v3046
  %v3048 = vpop.f32.mrb[0].mxu0
  %3049 = vmatprep.mubr.f32.mxu0 0.0
  %3050 = vmatmul.mubr.f32.gmra.mrb[0].mxu0 %v2883
  %v3051 = vpop.f32.mrb[0].mxu0
  %v3052 = vadd.f32 0.0, %v3051
  %v3053 = vpop.f32.mrb[0].mxu0
  %3054 = vmatprep.mubr.f32.mxu0 0.0
  %3055 = vmatmul.mubr.f32.gmra.mrb[0].mxu0 %v2885
  %v3056 = vpop.f32.mrb[0].mxu0
  %v3057 = vadd.f32 0.0, %v3056
  %v3058 = vpop.f32.mrb[0].mxu0
  %3059 = vmatprep.mubr.f32.mxu0 0.0
  %3060 = vmatmul.mubr.f32.gmra.mrb[0].mxu0 %v2887
  %v3061 = vpop.f32.mrb[0].mxu0
  %v3062 = vadd.f32 0.0, %v3061
  %v3063 = vpop.f32.mrb[0].mxu0
  %3064 = vmatprep.mubr.f32.mxu0 0.0
  %3065 = vmatmul.mubr.f32.gmra.mrb[0].mxu0 %v2889
  %v3066 = vpop.f32.mrb[0].mxu0
  %v3067 = vadd.f32 0.0, %v3066
  %v3068 = vpop.f32.mrb[0].mxu0
  %3069 = vmatprep.mubr.f32.mxu0 0.0
  %3070 = vmatmul.mubr.f32.gmra.mrb[0].mxu0 %v2891
  %v3071 = vpop.f32.mrb[0].mxu0
  %v3072 = vadd.f32 0.0, %v3071
  %v3073 = vpop.f32.mrb[0].mxu0
  %3074 = vmatprep.mubr.f32.mxu0 0.0
  %3075 = vmatmul.mubr.f32.gmra.mrb[0].mxu0 %v2893
  %v3076 = vpop.f32.mrb[0].mxu0
  %v3077 = vadd.f32 0.0, %v3076
  %v3078 = vpop.f32.mrb[0].mxu0
  %3079 = vdwg.mxu0
  %v3080 = vadd.f32 %v2689, %v2962
  %v3081 = vadd.f32 %v2690, %v2967
  %v3082 = vadd.f32 %v2691, %v2972
  %v3083 = vadd.f32 %v2692, %v2977
  %v3084 = vadd.f32 %v2693, %v2982
  %v3085 = vadd.f32 %v2694, %v2987
  %v3086 = vadd.f32 %v2695, %v2992
  %v3087 = vadd.f32 %v2696, %v2997
  %v3088 = vadd.f32 %v2697, %v3002
  %v3089 = vadd.f32 %v2698, %v3007
  %v3090 = vadd.f32 %v2699, %v3012
  %v3091 = vadd.f32 %v2700, %v3017
  %v3092 = vadd.f32 %v2701, %v3022
  %v3093 = vadd.f32 %v2702, %v3027
  %v3094 = vadd.f32 %v2703, %v3032
  %v3095 = vadd.f32 %v2704, %v3037
  %v3096 = vadd.f32 %v2705, %v3042
  %v3097 = vadd.f32 %v2706, %v3047
  %v3098 = vadd.f32 %v2707, %v3052
  %v3099 = vadd.f32 %v2708, %v3057
  %v3100 = vadd.f32 %v2709, %v3062
  %v3101 = vadd.f32 %v2710, %v3067
  %v3102 = vadd.f32 %v2711, %v3072
  %v3103 = vadd.f32 %v2712, %v3077
  %3104 = vrot.lane.b32.xlu0 %v1153, 48
  %v3105 = vpop.permute.xlu0 %3104
  %3106 = vrot.lane.b32.xlu0 %v1154, 48
  %v3107 = vpop.permute.xlu0 %3106
  %3108 = vrot.lane.b32.xlu0 %v1155, 48
  %v3109 = vpop.permute.xlu0 %3108
  %3110 = vrot.lane.b32.xlu0 %v1156, 48
  %v3111 = vpop.permute.xlu0 %3110
  %3112 = vrot.lane.b32.xlu0 %v1157, 48
  %v3113 = vpop.permute.xlu0 %3112
  %v3118 = vsel %vm40, %v3113, 0
  %3120 = vmatprep.subr.mxu0 0.0
  %3121 = vmatpush1.msra.mxu0 %v3105
  %3122 = vmatprep.subr.mxu0 0.0
  %3123 = vmatpush1.msra.mxu0 %v3107
  %3124 = vmatprep.subr.mxu0 0.0
  %3125 = vmatpush1.msra.mxu0 %v3109
  %3126 = vmatprep.subr.mxu0 0.0
  %3127 = vmatpush1.msra.mxu0 %v3111
  %3128 = vmatprep.subr.mxu0 0.0
  %3129 = vmatpush1.msra.mxu0 %v3118
  %3130 = vmatprep.subr.mxu0 0.0
  %3131 = vmatpush1.msra.mxu0 0.0
  %3132 = vmatprep.subr.mxu0 0.0
  %3133 = vmatpush1.msra.mxu0 0.0
  %3134 = vmatprep.subr.mxu0 0.0
  %3135 = vmatpush1.msra.mxu0 0.0
  %3136 = vmatprep.subr.mxu0 0.0
  %3137 = vmatpush1.msra.mxu0 0.0
  %3138 = vmatprep.subr.mxu0 0.0
  %3139 = vmatpush1.msra.mxu0 0.0
  %3140 = vmatprep.subr.mxu0 0.0
  %3141 = vmatpush1.msra.mxu0 0.0
  %3142 = vmatprep.subr.mxu0 0.0
  %3143 = vmatpush1.msra.mxu0 0.0
  %3144 = vmatprep.subr.mxu0 0.0
  %3145 = vmatpush1.msra.mxu0 0.0
  %3146 = vmatprep.subr.mxu0 0.0
  %3147 = vmatpush1.msra.mxu0 0.0
  %3148 = vmatprep.subr.mxu0 0.0
  %3149 = vmatpush1.msra.mxu0 0.0
  %3150 = vmatprep.subr.mxu0 0.0
  %3151 = vmatpush1.msra.mxu0 0.0
  %3152 = vmatprep.subr.mxu0 0.0
  %3153 = vmatpush1.msra.mxu0 0.0
  %3154 = vmatprep.subr.mxu0 0.0
  %3155 = vmatpush1.msra.mxu0 0.0
  %3156 = vmatprep.subr.mxu0 0.0
  %3157 = vmatpush1.msra.mxu0 0.0
  %3158 = vmatprep.subr.mxu0 0.0
  %3159 = vmatpush1.msra.mxu0 0.0
  %3160 = vmatprep.subr.mxu0 0.0
  %3161 = vmatpush1.msra.mxu0 0.0
  %3162 = vmatprep.subr.mxu0 0.0
  %3163 = vmatpush1.msra.mxu0 0.0
  %3164 = vmatprep.subr.mxu0 0.0
  %3165 = vmatpush1.msra.mxu0 0.0
  %3166 = vmatprep.subr.mxu0 0.0
  %3167 = vmatpush1.msra.mxu0 0.0
  %3168 = vmatprep.subr.mxu0 0.0
  %3169 = vmatpush1.msra.mxu0 0.0
  %3170 = vmatprep.subr.mxu0 0.0
  %3171 = vmatpush1.msra.mxu0 0.0
  %3172 = vmatprep.subr.mxu0 0.0
  %3173 = vmatpush1.msra.mxu0 0.0
  %3174 = vmatprep.subr.mxu0 0.0
  %3175 = vmatpush1.msra.mxu0 0.0
  %3176 = vmatprep.subr.mxu0 0.0
  %3177 = vmatpush1.msra.mxu0 0.0
  %3178 = vmatprep.subr.mxu0 0.0
  %3179 = vmatpush1.msra.mxu0 0.0
  %3180 = vmatprep.subr.mxu0 0.0
  %3181 = vmatpush1.msra.mxu0 0.0
  %3182 = vmatprep.subr.mxu0 0.0
  %3183 = vmatpush1.msra.mxu0 0.0
  %3184 = vmatprep.mubr.f32.mxu0 0.0
  %3185 = vmatmul.mubr.f32.gmra.mrb[0].mxu0 %v38
  %v3186 = vpop.f32.mrb[0].mxu0
  %v3187 = vadd.f32 0.0, %v3186
  %v3188 = vpop.f32.mrb[0].mxu0
  %3189 = vdwg.mxu0
  %3190 = vrot.lane.b32.xlu0 %v113, 64
  %v3191 = vpop.permute.xlu0 %3190
  %3192 = vrot.lane.b32.xlu0 %v114, 64
  %v3193 = vpop.permute.xlu0 %3192
  %3194 = vrot.lane.b32.xlu0 %v115, 64
  %v3195 = vpop.permute.xlu0 %3194
  %3196 = vrot.lane.b32.xlu0 %v116, 64
  %v3197 = vpop.permute.xlu0 %3196
  %3198 = vrot.lane.b32.xlu0 %v117, 64
  %v3199 = vpop.permute.xlu0 %3198
  %3200 = vrot.lane.b32.xlu0 %v118, 64
  %v3201 = vpop.permute.xlu0 %3200
  %3202 = vrot.lane.b32.xlu0 %v119, 64
  %v3203 = vpop.permute.xlu0 %3202
  %3204 = vrot.lane.b32.xlu0 %v120, 64
  %v3205 = vpop.permute.xlu0 %3204
  %3206 = vrot.lane.b32.xlu0 %v121, 64
  %v3207 = vpop.permute.xlu0 %3206
  %3208 = vrot.lane.b32.xlu0 %v122, 64
  %v3209 = vpop.permute.xlu0 %3208
  %3210 = vrot.lane.b32.xlu0 %v123, 64
  %v3211 = vpop.permute.xlu0 %3210
  %3212 = vrot.lane.b32.xlu0 %v124, 64
  %v3213 = vpop.permute.xlu0 %3212
  %3214 = vrot.lane.b32.xlu0 %v125, 64
  %v3215 = vpop.permute.xlu0 %3214
  %3216 = vrot.lane.b32.xlu0 %v126, 64
  %v3217 = vpop.permute.xlu0 %3216
  %3218 = vrot.lane.b32.xlu0 %v127, 64
  %v3219 = vpop.permute.xlu0 %3218
  %3220 = vrot.lane.b32.xlu0 %v128, 64
  %v3221 = vpop.permute.xlu0 %3220
  %3222 = vrot.lane.b32.xlu0 %v129, 64
  %v3223 = vpop.permute.xlu0 %3222
  %3224 = vrot.lane.b32.xlu0 %v130, 64
  %v3225 = vpop.permute.xlu0 %3224
  %3226 = vrot.lane.b32.xlu0 %v131, 64
  %v3227 = vpop.permute.xlu0 %3226
  %3228 = vrot.lane.b32.xlu0 %v132, 64
  %v3229 = vpop.permute.xlu0 %3228
  %3230 = vrot.lane.b32.xlu0 %v133, 64
  %v3231 = vpop.permute.xlu0 %3230
  %3232 = vrot.lane.b32.xlu0 %v134, 64
  %v3233 = vpop.permute.xlu0 %3232
  %3234 = vrot.lane.b32.xlu0 %v135, 64
  %v3235 = vpop.permute.xlu0 %3234
  %3236 = vrot.lane.b32.xlu0 %v136, 64
  %v3237 = vpop.permute.xlu0 %3236
  %v3238 = vsel %vm295, %v3191, 0
  %v3240 = vsel %vm295, %v3193, 0
  %v3242 = vsel %vm295, %v3195, 0
  %v3244 = vsel %vm295, %v3197, 0
  %v3246 = vsel %vm295, %v3199, 0
  %v3248 = vsel %vm295, %v3201, 0
  %v3250 = vsel %vm295, %v3203, 0
  %v3252 = vsel %vm295, %v3205, 0
  %v3254 = vsel %vm295, %v3207, 0
  %v3256 = vsel %vm295, %v3209, 0
  %v3258 = vsel %vm295, %v3211, 0
  %v3260 = vsel %vm295, %v3213, 0
  %v3262 = vsel %vm295, %v3215, 0
  %v3264 = vsel %vm295, %v3217, 0
  %v3266 = vsel %vm295, %v3219, 0
  %v3268 = vsel %vm295, %v3221, 0
  %v3270 = vsel %vm295, %v3223, 0
  %v3272 = vsel %vm295, %v3225, 0
  %v3274 = vsel %vm295, %v3227, 0
  %v3276 = vsel %vm295, %v3229, 0
  %v3278 = vsel %vm295, %v3231, 0
  %v3280 = vsel %vm295, %v3233, 0
  %v3282 = vsel %vm295, %v3235, 0
  %v3284 = vsel %vm295, %v3237, 0
  %3286 = vmatprep.subr.mxu0 0.0
  %3287 = vmatpush1.msra.mxu0 %v3187
  %3288 = vmatprep.subr.mxu0 0.0
  %3289 = vmatpush1.msra.mxu0 0.0
  %3290 = vmatprep.subr.mxu0 0.0
  %3291 = vmatpush1.msra.mxu0 0.0
  %3292 = vmatprep.subr.mxu0 0.0
  %3293 = vmatpush1.msra.mxu0 0.0
  %3294 = vmatprep.subr.mxu0 0.0
  %3295 = vmatpush1.msra.mxu0 0.0
  %3296 = vmatprep.subr.mxu0 0.0
  %3297 = vmatpush1.msra.mxu0 0.0
  %3298 = vmatprep.subr.mxu0 0.0
  %3299 = vmatpush1.msra.mxu0 0.0
  %3300 = vmatprep.subr.mxu0 0.0
  %3301 = vmatpush1.msra.mxu0 0.0
  %3302 = vmatprep.subr.mxu0 0.0
  %3303 = vmatpush1.msra.mxu0 0.0
  %3304 = vmatprep.subr.mxu0 0.0
  %3305 = vmatpush1.msra.mxu0 0.0
  %3306 = vmatprep.subr.mxu0 0.0
  %3307 = vmatpush1.msra.mxu0 0.0
  %3308 = vmatprep.subr.mxu0 0.0
  %3309 = vmatpush1.msra.mxu0 0.0
  %3310 = vmatprep.subr.mxu0 0.0
  %3311 = vmatpush1.msra.mxu0 0.0
  %3312 = vmatprep.subr.mxu0 0.0
  %3313 = vmatpush1.msra.mxu0 0.0
  %3314 = vmatprep.subr.mxu0 0.0
  %3315 = vmatpush1.msra.mxu0 0.0
  %3316 = vmatprep.subr.mxu0 0.0
  %3317 = vmatpush1.msra.mxu0 0.0
  %3318 = vmatprep.subr.mxu0 0.0
  %3319 = vmatpush1.msra.mxu0 0.0
  %3320 = vmatprep.subr.mxu0 0.0
  %3321 = vmatpush1.msra.mxu0 0.0
  %3322 = vmatprep.subr.mxu0 0.0
  %3323 = vmatpush1.msra.mxu0 0.0
  %3324 = vmatprep.subr.mxu0 0.0
  %3325 = vmatpush1.msra.mxu0 0.0
  %3326 = vmatprep.subr.mxu0 0.0
  %3327 = vmatpush1.msra.mxu0 0.0
  %3328 = vmatprep.subr.mxu0 0.0
  %3329 = vmatpush1.msra.mxu0 0.0
  %3330 = vmatprep.subr.mxu0 0.0
  %3331 = vmatpush1.msra.mxu0 0.0
  %3332 = vmatprep.subr.mxu0 0.0
  %3333 = vmatpush1.msra.mxu0 0.0
  %3334 = vmatprep.subr.mxu0 0.0
  %3335 = vmatpush1.msra.mxu0 0.0
  %3336 = vmatprep.subr.mxu0 0.0
  %3337 = vmatpush1.msra.mxu0 0.0
  %3338 = vmatprep.subr.mxu0 0.0
  %3339 = vmatpush1.msra.mxu0 0.0
  %3340 = vmatprep.subr.mxu0 0.0
  %3341 = vmatpush1.msra.mxu0 0.0
  %3342 = vmatprep.subr.mxu0 0.0
  %3343 = vmatpush1.msra.mxu0 0.0
  %3344 = vmatprep.subr.mxu0 0.0
  %3345 = vmatpush1.msra.mxu0 0.0
  %3346 = vmatprep.subr.mxu0 0.0
  %3347 = vmatpush1.msra.mxu0 0.0
  %3348 = vmatprep.subr.mxu0 0.0
  %3349 = vmatpush1.msra.mxu0 0.0
  %3350 = vmatprep.mubr.f32.mxu0 0.0
  %3351 = vmatmul.mubr.f32.gmra.mrb[0].mxu0 %v3238
  %v3352 = vpop.f32.mrb[0].mxu0
  %v3353 = vadd.f32 0.0, %v3352
  %v3354 = vpop.f32.mrb[0].mxu0
  %3355 = vmatprep.mubr.f32.mxu0 0.0
  %3356 = vmatmul.mubr.f32.gmra.mrb[0].mxu0 %v3240
  %v3357 = vpop.f32.mrb[0].mxu0
  %v3358 = vadd.f32 0.0, %v3357
  %v3359 = vpop.f32.mrb[0].mxu0
  %3360 = vmatprep.mubr.f32.mxu0 0.0
  %3361 = vmatmul.mubr.f32.gmra.mrb[0].mxu0 %v3242
  %v3362 = vpop.f32.mrb[0].mxu0
  %v3363 = vadd.f32 0.0, %v3362
  %v3364 = vpop.f32.mrb[0].mxu0
  %3365 = vmatprep.mubr.f32.mxu0 0.0
  %3366 = vmatmul.mubr.f32.gmra.mrb[0].mxu0 %v3244
  %v3367 = vpop.f32.mrb[0].mxu0
  %v3368 = vadd.f32 0.0, %v3367
  %v3369 = vpop.f32.mrb[0].mxu0
  %3370 = vmatprep.mubr.f32.mxu0 0.0
  %3371 = vmatmul.mubr.f32.gmra.mrb[0].mxu0 %v3246
  %v3372 = vpop.f32.mrb[0].mxu0
  %v3373 = vadd.f32 0.0, %v3372
  %v3374 = vpop.f32.mrb[0].mxu0
  %3375 = vmatprep.mubr.f32.mxu0 0.0
  %3376 = vmatmul.mubr.f32.gmra.mrb[0].mxu0 %v3248
  %v3377 = vpop.f32.mrb[0].mxu0
  %v3378 = vadd.f32 0.0, %v3377
  %v3379 = vpop.f32.mrb[0].mxu0
  %3380 = vmatprep.mubr.f32.mxu0 0.0
  %3381 = vmatmul.mubr.f32.gmra.mrb[0].mxu0 %v3250
  %v3382 = vpop.f32.mrb[0].mxu0
  %v3383 = vadd.f32 0.0, %v3382
  %v3384 = vpop.f32.mrb[0].mxu0
  %3385 = vmatprep.mubr.f32.mxu0 0.0
  %3386 = vmatmul.mubr.f32.gmra.mrb[0].mxu0 %v3252
  %v3387 = vpop.f32.mrb[0].mxu0
  %v3388 = vadd.f32 0.0, %v3387
  %v3389 = vpop.f32.mrb[0].mxu0
  %3390 = vmatprep.mubr.f32.mxu0 0.0
  %3391 = vmatmul.mubr.f32.gmra.mrb[0].mxu0 %v3254
  %v3392 = vpop.f32.mrb[0].mxu0
  %v3393 = vadd.f32 0.0, %v3392
  %v3394 = vpop.f32.mrb[0].mxu0
  %3395 = vmatprep.mubr.f32.mxu0 0.0
  %3396 = vmatmul.mubr.f32.gmra.mrb[0].mxu0 %v3256
  %v3397 = vpop.f32.mrb[0].mxu0
  %v3398 = vadd.f32 0.0, %v3397
  %v3399 = vpop.f32.mrb[0].mxu0
  %3400 = vmatprep.mubr.f32.mxu0 0.0
  %3401 = vmatmul.mubr.f32.gmra.mrb[0].mxu0 %v3258
  %v3402 = vpop.f32.mrb[0].mxu0
  %v3403 = vadd.f32 0.0, %v3402
  %v3404 = vpop.f32.mrb[0].mxu0
  %3405 = vmatprep.mubr.f32.mxu0 0.0
  %3406 = vmatmul.mubr.f32.gmra.mrb[0].mxu0 %v3260
  %v3407 = vpop.f32.mrb[0].mxu0
  %v3408 = vadd.f32 0.0, %v3407
  %v3409 = vpop.f32.mrb[0].mxu0
  %3410 = vmatprep.mubr.f32.mxu0 0.0
  %3411 = vmatmul.mubr.f32.gmra.mrb[0].mxu0 %v3262
  %v3412 = vpop.f32.mrb[0].mxu0
  %v3413 = vadd.f32 0.0, %v3412
  %v3414 = vpop.f32.mrb[0].mxu0
  %3415 = vmatprep.mubr.f32.mxu0 0.0
  %3416 = vmatmul.mubr.f32.gmra.mrb[0].mxu0 %v3264
  %v3417 = vpop.f32.mrb[0].mxu0
  %v3418 = vadd.f32 0.0, %v3417
  %v3419 = vpop.f32.mrb[0].mxu0
  %3420 = vmatprep.mubr.f32.mxu0 0.0
  %3421 = vmatmul.mubr.f32.gmra.mrb[0].mxu0 %v3266
  %v3422 = vpop.f32.mrb[0].mxu0
  %v3423 = vadd.f32 0.0, %v3422
  %v3424 = vpop.f32.mrb[0].mxu0
  %3425 = vmatprep.mubr.f32.mxu0 0.0
  %3426 = vmatmul.mubr.f32.gmra.mrb[0].mxu0 %v3268
  %v3427 = vpop.f32.mrb[0].mxu0
  %v3428 = vadd.f32 0.0, %v3427
  %v3429 = vpop.f32.mrb[0].mxu0
  %3430 = vmatprep.mubr.f32.mxu0 0.0
  %3431 = vmatmul.mubr.f32.gmra.mrb[0].mxu0 %v3270
  %v3432 = vpop.f32.mrb[0].mxu0
  %v3433 = vadd.f32 0.0, %v3432
  %v3434 = vpop.f32.mrb[0].mxu0
  %3435 = vmatprep.mubr.f32.mxu0 0.0
  %3436 = vmatmul.mubr.f32.gmra.mrb[0].mxu0 %v3272
  %v3437 = vpop.f32.mrb[0].mxu0
  %v3438 = vadd.f32 0.0, %v3437
  %v3439 = vpop.f32.mrb[0].mxu0
  %3440 = vmatprep.mubr.f32.mxu0 0.0
  %3441 = vmatmul.mubr.f32.gmra.mrb[0].mxu0 %v3274
  %v3442 = vpop.f32.mrb[0].mxu0
  %v3443 = vadd.f32 0.0, %v3442
  %v3444 = vpop.f32.mrb[0].mxu0
  %3445 = vmatprep.mubr.f32.mxu0 0.0
  %3446 = vmatmul.mubr.f32.gmra.mrb[0].mxu0 %v3276
  %v3447 = vpop.f32.mrb[0].mxu0
  %v3448 = vadd.f32 0.0, %v3447
  %v3449 = vpop.f32.mrb[0].mxu0
  %3450 = vmatprep.mubr.f32.mxu0 0.0
  %3451 = vmatmul.mubr.f32.gmra.mrb[0].mxu0 %v3278
  %v3452 = vpop.f32.mrb[0].mxu0
  %v3453 = vadd.f32 0.0, %v3452
  %v3454 = vpop.f32.mrb[0].mxu0
  %3455 = vmatprep.mubr.f32.mxu0 0.0
  %3456 = vmatmul.mubr.f32.gmra.mrb[0].mxu0 %v3280
  %v3457 = vpop.f32.mrb[0].mxu0
  %v3458 = vadd.f32 0.0, %v3457
  %v3459 = vpop.f32.mrb[0].mxu0
  %3460 = vmatprep.mubr.f32.mxu0 0.0
  %3461 = vmatmul.mubr.f32.gmra.mrb[0].mxu0 %v3282
  %v3462 = vpop.f32.mrb[0].mxu0
  %v3463 = vadd.f32 0.0, %v3462
  %v3464 = vpop.f32.mrb[0].mxu0
  %3465 = vmatprep.mubr.f32.mxu0 0.0
  %3466 = vmatmul.mubr.f32.gmra.mrb[0].mxu0 %v3284
  %v3467 = vpop.f32.mrb[0].mxu0
  %v3468 = vadd.f32 0.0, %v3467
  %v3469 = vpop.f32.mrb[0].mxu0
  %3470 = vdwg.mxu0
  %v3471 = vadd.f32 %v3080, %v3353
  %v3472 = vadd.f32 %v3081, %v3358
  %v3473 = vadd.f32 %v3082, %v3363
  %v3474 = vadd.f32 %v3083, %v3368
  %v3475 = vadd.f32 %v3084, %v3373
  %v3476 = vadd.f32 %v3085, %v3378
  %v3477 = vadd.f32 %v3086, %v3383
  %v3478 = vadd.f32 %v3087, %v3388
  %v3479 = vadd.f32 %v3088, %v3393
  %v3480 = vadd.f32 %v3089, %v3398
  %v3481 = vadd.f32 %v3090, %v3403
  %v3482 = vadd.f32 %v3091, %v3408
  %v3483 = vadd.f32 %v3092, %v3413
  %v3484 = vadd.f32 %v3093, %v3418
  %v3485 = vadd.f32 %v3094, %v3423
  %v3486 = vadd.f32 %v3095, %v3428
  %v3487 = vadd.f32 %v3096, %v3433
  %v3488 = vadd.f32 %v3097, %v3438
  %v3489 = vadd.f32 %v3098, %v3443
  %v3490 = vadd.f32 %v3099, %v3448
  %v3491 = vadd.f32 %v3100, %v3453
  %v3492 = vadd.f32 %v3101, %v3458
  %v3493 = vadd.f32 %v3102, %v3463
  %v3494 = vadd.f32 %v3103, %v3468
  %3495 = vset.pattern.permute.xlu0 72
  %3496 = vperm.xlu0 %3495, %v113
  %v3497 = vpop.permute.xlu0 %3496
  %3499 = vset.pattern.permute.xlu0 72
  %3500 = vperm.xlu0 %3499, %v114
  %v3501 = vpop.permute.xlu0 %3500
  %3503 = vset.pattern.permute.xlu0 72
  %3504 = vperm.xlu0 %3503, %v115
  %v3505 = vpop.permute.xlu0 %3504
  %3507 = vset.pattern.permute.xlu0 72
  %3508 = vperm.xlu0 %3507, %v116
  %v3509 = vpop.permute.xlu0 %3508
  %3511 = vset.pattern.permute.xlu0 72
  %3512 = vperm.xlu0 %3511, %v117
  %v3513 = vpop.permute.xlu0 %3512
  %3515 = vset.pattern.permute.xlu0 72
  %3516 = vperm.xlu0 %3515, %v118
  %v3517 = vpop.permute.xlu0 %3516
  %3519 = vset.pattern.permute.xlu0 72
  %3520 = vperm.xlu0 %3519, %v119
  %v3521 = vpop.permute.xlu0 %3520
  %3523 = vset.pattern.permute.xlu0 72
  %3524 = vperm.xlu0 %3523, %v120
  %v3525 = vpop.permute.xlu0 %3524
  %3527 = vset.pattern.permute.xlu0 72
  %3528 = vperm.xlu0 %3527, %v121
  %v3529 = vpop.permute.xlu0 %3528
  %3531 = vset.pattern.permute.xlu0 72
  %3532 = vperm.xlu0 %3531, %v122
  %v3533 = vpop.permute.xlu0 %3532
  %3535 = vset.pattern.permute.xlu0 72
  %3536 = vperm.xlu0 %3535, %v123
  %v3537 = vpop.permute.xlu0 %3536
  %3539 = vset.pattern.permute.xlu0 72
  %3540 = vperm.xlu0 %3539, %v124
  %v3541 = vpop.permute.xlu0 %3540
  %3543 = vset.pattern.permute.xlu0 72
  %3544 = vperm.xlu0 %3543, %v125
  %v3545 = vpop.permute.xlu0 %3544
  %3547 = vset.pattern.permute.xlu0 72
  %3548 = vperm.xlu0 %3547, %v126
  %v3549 = vpop.permute.xlu0 %3548
  %3551 = vset.pattern.permute.xlu0 72
  %3552 = vperm.xlu0 %3551, %v127
  %v3553 = vpop.permute.xlu0 %3552
  %3555 = vset.pattern.permute.xlu0 72
  %3556 = vperm.xlu0 %3555, %v128
  %v3557 = vpop.permute.xlu0 %3556
  %3559 = vset.pattern.permute.xlu0 72
  %3560 = vperm.xlu0 %3559, %v129
  %v3561 = vpop.permute.xlu0 %3560
  %3563 = vset.pattern.permute.xlu0 72
  %3564 = vperm.xlu0 %3563, %v130
  %v3565 = vpop.permute.xlu0 %3564
  %3567 = vset.pattern.permute.xlu0 72
  %3568 = vperm.xlu0 %3567, %v131
  %v3569 = vpop.permute.xlu0 %3568
  %3571 = vset.pattern.permute.xlu0 72
  %3572 = vperm.xlu0 %3571, %v132
  %v3573 = vpop.permute.xlu0 %3572
  %3575 = vset.pattern.permute.xlu0 72
  %3576 = vperm.xlu0 %3575, %v133
  %v3577 = vpop.permute.xlu0 %3576
  %3579 = vset.pattern.permute.xlu0 72
  %3580 = vperm.xlu0 %3579, %v134
  %v3581 = vpop.permute.xlu0 %3580
  %3583 = vset.pattern.permute.xlu0 72
  %3584 = vperm.xlu0 %3583, %v135
  %v3585 = vpop.permute.xlu0 %3584
  %3587 = vset.pattern.permute.xlu0 72
  %3588 = vperm.xlu0 %3587, %v136
  %v3589 = vpop.permute.xlu0 %3588
  %v3591 = vadd.f32 %v3471, %v3497
  %v3592 = vadd.f32 %v3472, %v3501
  %v3593 = vadd.f32 %v3473, %v3505
  %v3594 = vadd.f32 %v3474, %v3509
  %v3595 = vadd.f32 %v3475, %v3513
  %v3596 = vadd.f32 %v3476, %v3517
  %v3597 = vadd.f32 %v3477, %v3521
  %v3598 = vadd.f32 %v3478, %v3525
  %v3599 = vadd.f32 %v3479, %v3529
  %v3600 = vadd.f32 %v3480, %v3533
  %v3601 = vadd.f32 %v3481, %v3537
  %v3602 = vadd.f32 %v3482, %v3541
  %v3603 = vadd.f32 %v3483, %v3545
  %v3604 = vadd.f32 %v3484, %v3549
  %v3605 = vadd.f32 %v3485, %v3553
  %v3606 = vadd.f32 %v3486, %v3557
  %v3607 = vadd.f32 %v3487, %v3561
  %v3608 = vadd.f32 %v3488, %v3565
  %v3609 = vadd.f32 %v3489, %v3569
  %v3610 = vadd.f32 %v3490, %v3573
  %v3611 = vadd.f32 %v3491, %v3577
  %v3612 = vadd.f32 %v3492, %v3581
  %v3613 = vadd.f32 %v3493, %v3585
  %v3614 = vadd.f32 %v3494, %v3589
  %3615 = vset.pattern.permute.xlu0 73
  %3616 = vperm.xlu0 %3615, %v113
  %v3617 = vpop.permute.xlu0 %3616
  %3619 = vset.pattern.permute.xlu0 73
  %3620 = vperm.xlu0 %3619, %v114
  %v3621 = vpop.permute.xlu0 %3620
  %3623 = vset.pattern.permute.xlu0 73
  %3624 = vperm.xlu0 %3623, %v115
  %v3625 = vpop.permute.xlu0 %3624
  %3627 = vset.pattern.permute.xlu0 73
  %3628 = vperm.xlu0 %3627, %v116
  %v3629 = vpop.permute.xlu0 %3628
  %3631 = vset.pattern.permute.xlu0 73
  %3632 = vperm.xlu0 %3631, %v117
  %v3633 = vpop.permute.xlu0 %3632
  %3635 = vset.pattern.permute.xlu0 73
  %3636 = vperm.xlu0 %3635, %v118
  %v3637 = vpop.permute.xlu0 %3636
  %3639 = vset.pattern.permute.xlu0 73
  %3640 = vperm.xlu0 %3639, %v119
  %v3641 = vpop.permute.xlu0 %3640
  %3643 = vset.pattern.permute.xlu0 73
  %3644 = vperm.xlu0 %3643, %v120
  %v3645 = vpop.permute.xlu0 %3644
  %3647 = vset.pattern.permute.xlu0 73
  %3648 = vperm.xlu0 %3647, %v121
  %v3649 = vpop.permute.xlu0 %3648
  %3651 = vset.pattern.permute.xlu0 73
  %3652 = vperm.xlu0 %3651, %v122
  %v3653 = vpop.permute.xlu0 %3652
  %3655 = vset.pattern.permute.xlu0 73
  %3656 = vperm.xlu0 %3655, %v123
  %v3657 = vpop.permute.xlu0 %3656
  %3659 = vset.pattern.permute.xlu0 73
  %3660 = vperm.xlu0 %3659, %v124
  %v3661 = vpop.permute.xlu0 %3660
  %3663 = vset.pattern.permute.xlu0 73
  %3664 = vperm.xlu0 %3663, %v125
  %v3665 = vpop.permute.xlu0 %3664
  %3667 = vset.pattern.permute.xlu0 73
  %3668 = vperm.xlu0 %3667, %v126
  %v3669 = vpop.permute.xlu0 %3668
  %3671 = vset.pattern.permute.xlu0 73
  %3672 = vperm.xlu0 %3671, %v127
  %v3673 = vpop.permute.xlu0 %3672
  %3675 = vset.pattern.permute.xlu0 73
  %3676 = vperm.xlu0 %3675, %v128
  %v3677 = vpop.permute.xlu0 %3676
  %3679 = vset.pattern.permute.xlu0 73
  %3680 = vperm.xlu0 %3679, %v129
  %v3681 = vpop.permute.xlu0 %3680
  %3683 = vset.pattern.permute.xlu0 73
  %3684 = vperm.xlu0 %3683, %v130
  %v3685 = vpop.permute.xlu0 %3684
  %3687 = vset.pattern.permute.xlu0 73
  %3688 = vperm.xlu0 %3687, %v131
  %v3689 = vpop.permute.xlu0 %3688
  %3691 = vset.pattern.permute.xlu0 73
  %3692 = vperm.xlu0 %3691, %v132
  %v3693 = vpop.permute.xlu0 %3692
  %3695 = vset.pattern.permute.xlu0 73
  %3696 = vperm.xlu0 %3695, %v133
  %v3697 = vpop.permute.xlu0 %3696
  %3699 = vset.pattern.permute.xlu0 73
  %3700 = vperm.xlu0 %3699, %v134
  %v3701 = vpop.permute.xlu0 %3700
  %3703 = vset.pattern.permute.xlu0 73
  %3704 = vperm.xlu0 %3703, %v135
  %v3705 = vpop.permute.xlu0 %3704
  %3707 = vset.pattern.permute.xlu0 73
  %3708 = vperm.xlu0 %3707, %v136
  %v3709 = vpop.permute.xlu0 %3708
  %v3711 = vmul.f32 %v3591, %v3617
  %v3712 = vmul.f32 %v3592, %v3621
  %v3713 = vmul.f32 %v3593, %v3625
  %v3714 = vmul.f32 %v3594, %v3629
  %v3715 = vmul.f32 %v3595, %v3633
  %v3716 = vmul.f32 %v3596, %v3637
  %v3717 = vmul.f32 %v3597, %v3641
  %v3718 = vmul.f32 %v3598, %v3645
  %v3719 = vmul.f32 %v3599, %v3649
  %v3720 = vmul.f32 %v3600, %v3653
  %v3721 = vmul.f32 %v3601, %v3657
  %v3722 = vmul.f32 %v3602, %v3661
  %v3723 = vmul.f32 %v3603, %v3665
  %v3724 = vmul.f32 %v3604, %v3669
  %v3725 = vmul.f32 %v3605, %v3673
  %v3726 = vmul.f32 %v3606, %v3677
  %v3727 = vmul.f32 %v3607, %v3681
  %v3728 = vmul.f32 %v3608, %v3685
  %v3729 = vmul.f32 %v3609, %v3689
  %v3730 = vmul.f32 %v3610, %v3693
  %v3731 = vmul.f32 %v3611, %v3697
  %v3732 = vmul.f32 %v3612, %v3701
  %v3733 = vmul.f32 %v3613, %v3705
  %v3734 = vmul.f32 %v3614, %v3709
  %vm3735 = vcmask 130048
  %3736 = vst.msk [vmem:[%s2] sm:$0xff] %vm3735, %v3711
  %3737 = vst.msk [vmem:[%s2 + $0x8] sm:$0xff] %vm3735, %v3712
  %3738 = vst.msk [vmem:[%s2 + $0x10] sm:$0xff] %vm3735, %v3713
  %3739 = vst.msk [vmem:[%s2 + $0x18] sm:$0xff] %vm3735, %v3714
  %3740 = vst.msk [vmem:[%s2 + $0x20] sm:$0xff] %vm3735, %v3715
  %3741 = vst.msk [vmem:[%s2 + $0x28] sm:$0xff] %vm3735, %v3716
  %3742 = vst.msk [vmem:[%s2 + $0x30] sm:$0xff] %vm3735, %v3717
  %3743 = vst.msk [vmem:[%s2 + $0x38] sm:$0xff] %vm3735, %v3718
  %3744 = vst.msk [vmem:[%s2 + $0x40] sm:$0xff] %vm3735, %v3719
  %3745 = vst.msk [vmem:[%s2 + $0x48] sm:$0xff] %vm3735, %v3720
  %3746 = vst.msk [vmem:[%s2 + $0x50] sm:$0xff] %vm3735, %v3721
  %3747 = vst.msk [vmem:[%s2 + $0x58] sm:$0xff] %vm3735, %v3722
  %3748 = vst.msk [vmem:[%s2 + $0x60] sm:$0xff] %vm3735, %v3723
  %3749 = vst.msk [vmem:[%s2 + $0x68] sm:$0xff] %vm3735, %v3724
  %3750 = vst.msk [vmem:[%s2 + $0x70] sm:$0xff] %vm3735, %v3725
  %3751 = vst.msk [vmem:[%s2 + $0x78] sm:$0xff] %vm3735, %v3726
  %3752 = vst.msk [vmem:[%s2 + $0x80] sm:$0xff] %vm3735, %v3727
  %3753 = vst.msk [vmem:[%s2 + $0x88] sm:$0xff] %vm3735, %v3728
  %3754 = vst.msk [vmem:[%s2 + $0x90] sm:$0xff] %vm3735, %v3729
  %3755 = vst.msk [vmem:[%s2 + $0x98] sm:$0xff] %vm3735, %v3730
  %3756 = vst.msk [vmem:[%s2 + $0xa0] sm:$0xff] %vm3735, %v3731
  %3757 = vst.msk [vmem:[%s2 + $0xa8] sm:$0xff] %vm3735, %v3732
  %3758 = vst.msk [vmem:[%s2 + $0xb0] sm:$0xff] %vm3735, %v3733
  %3759 = vst.msk [vmem:[%s2 + $0xb8] sm:$0xff] %vm3735, %v3734
  // Predicated region
  $region10: #{_template_update.1} parent=0 // pred_check
    _
  $region11: #{_template_update.1} parent=0 // pred_check_branch
    %3761 = sbr.rel (0) target = $region13
  $region12: #{_template_update.1} parent=0 // pred_region
    _
  $region13: #{_template_update.1} parent=0 // pred_fallthru
    _
  // Predicated region
  $region14: #{_template_update.1} parent=0 // pred_check
    _
  $region15: #{_template_update.1} parent=0 // pred_check_branch
    %3763 = sbr.rel (0) target = $region17
  $region16: #{_template_update.1} parent=0 // pred_region
    _
  $region17: #{_template_update.1} parent=0 // pred_fallthru
    _

</llo_original>
